<compile_context>
chip_gen: v7x
topology: tpu7x:2x2x1
jax: 0.10.0
libtpu: 0.0.40
codegen_flags: <defaults>
</compile_context>

<pallas_src>
import functools
import math

import numpy as np
import jax
import jax.numpy as jnp
from jax.experimental import pallas as pl
from jax.experimental.pallas import tpu as pltpu

_BASIS = 15


# --------------------------------------------------------------------------- #
# Host-built constants (0/1 selectors shared by every batch / layer).
# --------------------------------------------------------------------------- #
def _build_selectors(n):
    nn2 = n * n
    r = np.arange(nn2)
    i_idx, j_idx = r // n, r % n
    k = np.arange(n)
    P = (i_idx[None, :] == k[:, None]).astype(np.float32)     # (n, n^2) row-sum selector
    Q = (j_idx[None, :] == k[:, None]).astype(np.float32)     # (n, n^2) col-sum selector
    Dg = P * Q                                                # (n, n^2) diagonal selector
    # 1/n and 1/n^2 folded into the selector rows (exact in bf16 for power-of-two n,
    # otherwise bf16-rounded which is within the kernel's overall bf16 error budget).
    RBS = np.concatenate([P / n, Q / n, Dg,
                          Dg.sum(0, keepdims=True) / n,              # gd = trace/n
                          np.full((1, nn2), 1.0 / (n * n), np.float32)],  # ga = total/n^2
                         axis=0)                              # (3n+2, n^2)
    RC = np.concatenate([P.T, Q.T], axis=0)                   # (2n^2, n)  outer-product expand
    EXP = np.concatenate([Dg.T, P.T, Q.T], axis=1)            # (n^2, 3n)  diag|row|col expand
    T = np.zeros((nn2, nn2), np.float32)
    T[r, j_idx * n + i_idx] = 1.0                             # (n^2, n^2) spatial transpose
    SUM = np.ones((1, nn2), np.float32)                       # (1, n^2)   spatial pooling
    to_bf16 = lambda a: jnp.asarray(a, dtype=jnp.bfloat16)    # 0/1 and 1/2^k exact in bf16
    return to_bf16(RBS), to_bf16(RC), to_bf16(EXP), to_bf16(T), to_bf16(SUM)


def _kron_eye(m, b):
    """kron(I_b, m) over the last two axes (block-diagonal across the batch tile)."""
    eye = jnp.eye(b, dtype=jnp.float32)
    out = jnp.einsum('ab,...ds->...adbs', eye, m.astype(jnp.float32))
    sh = m.shape
    return out.reshape(sh[:-2] + (b * sh[-2], b * sh[-1]))


# --------------------------------------------------------------------------- #
# Kernel: one batch tile per grid step, all activations (n^2, b_tile*nhid).
# --------------------------------------------------------------------------- #
def _eq2net_kernel(feats_ref, kwenc_ref, benc_ref, kwdec_ref, bdec_ref,
                   w3_ref, wb_ref, w99_ref, bias_ref, dbias_ref,
                   rbs_ref, rc_ref, exp_ref, t_ref, sum_ref,
                   o_ref, *, n, nlayers, bd):
    f32, bf16 = jnp.float32, jnp.bfloat16
    nn2 = n * n

    def mxu(a, w):
        # Both operands already bf16; f32 accumulation on the MXU.
        return jnp.dot(a, w, preferred_element_type=f32)

    rbs = rbs_ref[...]
    rc = rc_ref[...]
    expm = exp_ref[...]
    tmat = t_ref[...]
    bias_all = bias_ref[...]
    dbias_all = dbias_ref[...]

    # ---- encoder: (n, b*nin) @ kron(I_b, Wenc) -> (n, b*D); lane index = (batch, d) ----
    hr = mxu(feats_ref[0].astype(bf16), kwenc_ref[...]) + benc_ref[...]      # f32

    # ---- init: x[(i,j), (b,d)] = h[b,i,d] * h[b,j,d] ----
    hb = hr.astype(bf16)
    rcm = mxu(rc, hb)                          # (2n^2, bD): [row-expanded h; col-expanded h]
    x = rcm[:nn2, :] * rcm[nn2:, :]            # (n^2, bD) f32

    for l in range(nlayers):
        # TODO(synk): for nlayers >> 4 move this loop onto an 'arbitrary' grid axis (or
        # lax.fori_loop) so code size / vreg live ranges stay bounded per layer.
        xb = x.astype(bf16)                    # hoisted: single bf16 cast of x per layer

        # One matmul for all per-row reductions: [sr; sc; dg; gd; ga] (1/n pre-folded).
        red = mxu(rbs, xb)                     # (3n+2, bD) f32
        sr = red[0:n]
        sc = red[n:2 * n]
        dg = red[2 * n:3 * n]
        gd = red[3 * n:3 * n + 1]
        ga = red[3 * n + 1:3 * n + 2]

        # K/N-concatenated coef matmuls, grouped by the expansion they share.
        small = jnp.concatenate([dg, sr, sc], axis=1).astype(bf16)   # (n, 3bD)
        a3 = mxu(small, w3_ref[l])                                   # (n, 3bD): diag|row|col
        pool = jnp.concatenate([gd, ga], axis=1).astype(bf16)        # (1, 2bD)
        pb = mxu(pool, wb_ref[l])                                    # (1, 2bD): diag|row bcast

        a_diag = a3[:, 0:bd] + pb[:, 0:bd] + dbias_all[l:l + 1, :]        # (n, bD)
        a_row = a3[:, bd:2 * bd] + pb[:, bd:2 * bd] + bias_all[l:l + 1, :]
        a_col = a3[:, 2 * bd:3 * bd]

        # Identity + spatial-transpose basis ops: x @ [c9|c10], then one shared
        # (n^2, n^2) permutation (no per-batch kron since batch lives on lanes).
        z = mxu(xb, w99_ref[l])                                      # (n^2, 2bD)
        amat = jnp.concatenate([a_diag, a_row, a_col], axis=0).astype(bf16)  # (3n, bD)
        y = z[:, 0:bd] + mxu(tmat, z[:, bd:2 * bd].astype(bf16)) + mxu(expm, amat)
        x = jnp.maximum(y, 0.0)                                      # ReLU, lane-dense f32

    pooled = mxu(sum_ref[...], x.astype(bf16))                       # (1, bD)  sum over (i,j)
    yout = mxu(pooled.astype(bf16), kwdec_ref[...]) + bdec_ref[...]  # (1, b*nout)
    o_ref[0] = yout.astype(o_ref.dtype)


# --------------------------------------------------------------------------- #
# Parameters / wrapper.
# --------------------------------------------------------------------------- #
def init_params(key, nin, nhid, nout, nlayers):
    ks = jax.random.split(key, 7)

    def linear_init(kw, kb, fan_in, fan_out):
        lim = 1.0 / math.sqrt(fan_in)
        w = jax.random.uniform(kw, (fan_in, fan_out), jnp.float32, -lim, lim)
        b = jax.random.uniform(kb, (1, fan_out), jnp.float32, -lim, lim)
        return w, b

    wenc, benc = linear_init(ks[0], ks[1], nin, nhid)
    wdec, bdec = linear_init(ks[2], ks[3], nhid, nout)
    std = math.sqrt(2.0 / (nhid + nhid + 1))
    coefs = std * jax.random.normal(ks[4], (nlayers, _BASIS, nhid, nhid), jnp.float32)
    bias = 0.01 * jax.random.normal(ks[5], (nlayers, nhid), jnp.float32)
    dbias = 0.01 * jax.random.normal(ks[6], (nlayers, nhid), jnp.float32)
    return dict(wenc=wenc, benc=benc, coefs=coefs, bias=bias, dbias=dbias,
                wdec=wdec, bdec=bdec)


def _ceil(a, m):
    return -(-a // m) * m


def _blk_bytes(shape, dtype):
    it = np.dtype(dtype).itemsize
    sub = max(8, 32 // it)                 # sublane tile: 8 for f32, 16 for bf16
    s = list(shape)
    if len(s) == 1:
        s = [1] + s
    lead = 1
    for d in s[:-2]:
        lead *= d
    return lead * _ceil(s[-2], sub) * _ceil(s[-1], 128) * it


def eq2net_forward(adj, feats, params, *, b_tile=None):
    # `adj` is accepted for interface parity with the PyTorch module; the reference
    # forward never uses it.
    del adj
    B, n, nin = feats.shape
    nhid = params["wenc"].shape[1]
    nout = params["wdec"].shape[1]
    nlayers = params["coefs"].shape[0]
    bf16, f32 = jnp.bfloat16, jnp.float32

    if b_tile is None:
        # Lane width of every activation / matmul output is b_tile*nhid: one full
        # 128-lane vreg by default.  On v6e/v7x raise to 256//nhid when the batch is
        # large enough to still leave >= 2 grid tiles for megacore sharding.
        b_tile = max(1, 128 // nhid)
    bd = b_tile * nhid
    num_tiles = -(-B // b_tile)
    b_pad = num_tiles * b_tile
    if b_pad != B:
        feats = jnp.pad(feats, ((0, b_pad - B), (0, 0), (0, 0)))

    # feats -> (num_tiles, n, b_tile*nin); lane index batch-major (b, c).
    fr = (feats.astype(f32)
               .reshape(num_tiles, b_tile, n, nin)
               .transpose(0, 2, 1, 3)
               .reshape(num_tiles, n, b_tile * nin))

    # ---- fold params into the lane layout (kron over the batch tile), bf16 weights ----
    kwenc = _kron_eye(params["wenc"], b_tile).astype(bf16)        # (b*nin, bD)
    kwdec = _kron_eye(params["wdec"], b_tile).astype(bf16)        # (bD, b*nout)
    benc_t = jnp.tile(params["benc"].astype(f32), (1, b_tile))    # (1, bD)
    bdec_t = jnp.tile(params["bdec"].astype(f32), (1, b_tile))    # (1, b*nout)
    bias_t = jnp.tile(params["bias"].astype(f32), (1, b_tile))    # (nlayers, bD)
    dbias_t = jnp.tile(params["dbias"].astype(f32), (1, b_tile))  # (nlayers, bD)

    K = _kron_eye(params["coefs"], b_tile)                        # (nlayers, 15, bD, bD)
    # W3 row-blocks: inputs [dg; sr; sc]; column-blocks: outputs [a_diag | a_row | a_col].
    w3 = jnp.concatenate([
        jnp.concatenate([K[:, 0], K[:, 11], K[:, 12]], axis=-1),  # dg -> ops 1,12,13
        jnp.concatenate([K[:, 2], K[:, 6], K[:, 8]], axis=-1),    # sr -> ops 3,7,9
        jnp.concatenate([K[:, 3], K[:, 5], K[:, 7]], axis=-1),    # sc -> ops 4,6,8
    ], axis=-2).astype(bf16)                                      # (nlayers, 3bD, 3bD)
    wb = jnp.concatenate([
        jnp.concatenate([K[:, 1], K[:, 13]], axis=-1),            # gd -> ops 2,14
        jnp.concatenate([K[:, 4], K[:, 14]], axis=-1),            # ga -> ops 5,15
    ], axis=-2).astype(bf16)                                      # (nlayers, 2bD, 2bD)
    w99 = jnp.concatenate([K[:, 9], K[:, 10]], axis=-1).astype(bf16)  # (nlayers, bD, 2bD)

    rbs, rc, expm, tmat, summ = _build_selectors(n)

    # ---- explicit VMEM budget from padded block sizes (double-buffered inputs) ----
    in_blocks = [((1, n, b_tile * nin), f32), (kwenc.shape, bf16), (benc_t.shape, f32),
                 (kwdec.shape, bf16), (bdec_t.shape, f32), (w3.shape, bf16),
                 (wb.shape, bf16), (w99.shape, bf16), (bias_t.shape, f32),
                 (dbias_t.shape, f32), (rbs.shape, bf16), (rc.shape, bf16),
                 (expm.shape, bf16), (tmat.shape, bf16), (summ.shape, bf16)]
    io_bytes = sum(_blk_bytes(s, d) for s, d in in_blocks)
    io_bytes += _blk_bytes((1, 1, b_tile * nout), f32)
    act_bytes = 32 * n * n * bd * 4        # generous bound on live f32/bf16 intermediates
    # Cap at 40 MiB so the same tiling also fits the 64-MiB-VMEM v7x generation.
    vmem_limit = int(min(max(2 * io_bytes + act_bytes + (4 << 20), 16 << 20), 40 << 20))

    kernel = functools.partial(_eq2net_kernel, n=n, nlayers=nlayers, bd=bd)

    out = pl.pallas_call(
        kernel,
        out_shape=jax.ShapeDtypeStruct((num_tiles, 1, b_tile * nout), f32),
        grid_spec=pltpu.PrefetchScalarGridSpec(
            num_scalar_prefetch=0,
            grid=(num_tiles,),
            in_specs=[
                pl.BlockSpec((1, n, b_tile * nin), lambda t: (t, 0, 0)),   # feats tile
                pl.BlockSpec(kwenc.shape, lambda t: (0, 0)),               # kron(I_b, Wenc)
                pl.BlockSpec(benc_t.shape, lambda t: (0, 0)),
                pl.BlockSpec(kwdec.shape, lambda t: (0, 0)),               # kron(I_b, Wdec)
                pl.BlockSpec(bdec_t.shape, lambda t: (0, 0)),
                pl.BlockSpec(w3.shape, lambda t: (0, 0, 0)),               # stacked coefs
                pl.BlockSpec(wb.shape, lambda t: (0, 0, 0)),
                pl.BlockSpec(w99.shape, lambda t: (0, 0, 0)),
                pl.BlockSpec(bias_t.shape, lambda t: (0, 0)),
                pl.BlockSpec(dbias_t.shape, lambda t: (0, 0)),
                pl.BlockSpec(rbs.shape, lambda t: (0, 0)),                 # reductions
                pl.BlockSpec(rc.shape, lambda t: (0, 0)),                  # outer-prod expand
                pl.BlockSpec(expm.shape, lambda t: (0, 0)),                # diag/row/col expand
                pl.BlockSpec(tmat.shape, lambda t: (0, 0)),                # (n^2,n^2) transpose
                pl.BlockSpec(summ.shape, lambda t: (0, 0)),                # spatial pooling
            ],
            out_specs=pl.BlockSpec((1, 1, b_tile * nout), lambda t: (t, 0, 0)),
        ),
        compiler_params=pltpu.CompilerParams(
            dimension_semantics=("parallel",),       # independent batch tiles (v7x megacore)
            vmem_limit_bytes=vmem_limit),
    )(fr, kwenc, benc_t, kwdec, bdec_t, w3, wb, w99, bias_t, dbias_t,
      rbs, rc, expm, tmat, summ)

    return out.reshape(b_pad, nout)[:B]              # (B, nout)


# --------------------------------------------------------------------------- #
# Pure-JAX f32 reference with the explicit 15 basis ops (mirrors the PyTorch module).
# --------------------------------------------------------------------------- #
def eq2net_reference(adj, feats, params):
    del adj
    wenc, benc = params["wenc"], params["benc"]
    wdec, bdec = params["wdec"], params["bdec"]
    coefs, bias, dbias = params["coefs"], params["bias"], params["dbias"]
    nlayers = coefs.shape[0]
    _, n, _ = feats.shape
    hp = jax.lax.Precision.HIGHEST
    h = jnp.einsum('bni,io->bno', feats, wenc, precision=hp) + benc
    x = jnp.einsum('bid,bjd->bijd', h, h, precision=hp)            # (B, n, n, D)
    eye = jnp.eye(n, dtype=jnp.float32)[None, :, :, None]
    for l in range(nlayers):
        sr = x.sum(2) / n
        sc = x.sum(1) / n
        dg = jnp.einsum('biid->bid', x)
        gd = dg.sum(1) / n
        ga = x.sum((1, 2)) / (n * n)
        bi = lambda v: jnp.broadcast_to(v[:, :, None, :], x.shape)
        bj = lambda v: jnp.broadcast_to(v[:, None, :, :], x.shape)
        bc = lambda v: jnp.broadcast_to(v[:, None, None, :], x.shape)
        ops = jnp.stack([
            eye * bi(dg), eye * bc(gd), eye * bi(sr), eye * bi(sc), eye * bc(ga),
            bi(sc), bi(sr), bj(sc), bj(sr),
            x, jnp.swapaxes(x, 1, 2), bi(dg), bj(dg), bc(gd), bc(ga)], axis=3)
        y = (jnp.einsum('bijkd,kds->bijs', ops, coefs[l], precision=hp)
             + bias[l] + eye * dbias[l])
        x = jnp.maximum(y, 0.0)
    pooled = x.sum((1, 2))
    return jnp.einsum('bd,do->bo', pooled, wdec, precision=hp) + bdec


if __name__ == "__main__":
    # B=8 with the default b_tile=4 gives exactly 2 grid tiles (even, no batch padding).
    B, n, nin, nhid, nout, nlayers = 8, 8, 16, 32, 8, 2
    key = jax.random.PRNGKey(0)
    kp, kf, ka = jax.random.split(key, 3)
    params = init_params(kp, nin, nhid, nout, nlayers)
    feats = jax.random.normal(kf, (B, n, nin), jnp.float32)
    adj = (jax.random.uniform(ka, (B, n, n)) > 0.5).astype(jnp.float32)  # unused by forward

    out = eq2net_forward(adj, feats, params)
    jax.block_until_ready(out)
    assert out.shape == (B, nout) and out.dtype == jnp.float32

    # Numerical check against the explicit (unfolded) f32 reference; the kernel feeds
    # the MXU with bf16 operands so a few-percent budget is allowed.
    ref = eq2net_reference(adj, feats, params)
    err = float(jnp.max(jnp.abs(out - ref)))
    scale = max(1.0, float(jnp.max(jnp.abs(ref))))
    assert err <= 0.05 * scale + 0.05, f"kernel/reference mismatch: err={err}, scale={scale}"
    print("KERNEL_OK")
</pallas_src>

<mosaic_0001>
module attributes {stable_mosaic.version = 11 : i64} {
  func.func @_eq2net_kernel(%arg0: i32, %arg1: memref<1x8x64xf32, #tpu.memory_space<vmem>>, %arg2: memref<64x128xbf16, #tpu.memory_space<vmem>>, %arg3: memref<1x128xf32, #tpu.memory_space<vmem>>, %arg4: memref<128x32xbf16, #tpu.memory_space<vmem>>, %arg5: memref<1x32xf32, #tpu.memory_space<vmem>>, %arg6: memref<2x384x384xbf16, #tpu.memory_space<vmem>>, %arg7: memref<2x256x256xbf16, #tpu.memory_space<vmem>>, %arg8: memref<2x128x256xbf16, #tpu.memory_space<vmem>>, %arg9: memref<2x128xf32, #tpu.memory_space<vmem>>, %arg10: memref<2x128xf32, #tpu.memory_space<vmem>>, %arg11: memref<26x64xbf16, #tpu.memory_space<vmem>>, %arg12: memref<128x8xbf16, #tpu.memory_space<vmem>>, %arg13: memref<64x24xbf16, #tpu.memory_space<vmem>>, %arg14: memref<64x64xbf16, #tpu.memory_space<vmem>>, %arg15: memref<1x64xbf16, #tpu.memory_space<vmem>>, %arg16: memref<1x1x32xf32, #tpu.memory_space<vmem>>) attributes {dimension_semantics = [#tpu.dimension_semantics<parallel>], iteration_bounds = array<i64: 2>, scalar_prefetch = 0 : i64, scratch_operands = 0 : i64, tpu.core_type = #tpu.core_type<tc>, window_params = [{transform_indices = @transform_0, window_bounds = array<i64: 1, 8, 64>}, {pipeline_mode = #tpu.pipeline_mode<synchronous>, transform_indices = @transform_1, window_bounds = array<i64: 64, 128>}, {pipeline_mode = #tpu.pipeline_mode<synchronous>, transform_indices = @transform_2, window_bounds = array<i64: 1, 128>}, {pipeline_mode = #tpu.pipeline_mode<synchronous>, transform_indices = @transform_3, window_bounds = array<i64: 128, 32>}, {pipeline_mode = #tpu.pipeline_mode<synchronous>, transform_indices = @transform_4, window_bounds = array<i64: 1, 32>}, {pipeline_mode = #tpu.pipeline_mode<synchronous>, transform_indices = @transform_5, window_bounds = array<i64: 2, 384, 384>}, {pipeline_mode = #tpu.pipeline_mode<synchronous>, transform_indices = @transform_6, window_bounds = array<i64: 2, 256, 256>}, {pipeline_mode = #tpu.pipeline_mode<synchronous>, transform_indices = @transform_7, window_bounds = array<i64: 2, 128, 256>}, {pipeline_mode = #tpu.pipeline_mode<synchronous>, transform_indices = @transform_8, window_bounds = array<i64: 2, 128>}, {pipeline_mode = #tpu.pipeline_mode<synchronous>, transform_indices = @transform_9, window_bounds = array<i64: 2, 128>}, {pipeline_mode = #tpu.pipeline_mode<synchronous>, transform_indices = @transform_10, window_bounds = array<i64: 26, 64>}, {pipeline_mode = #tpu.pipeline_mode<synchronous>, transform_indices = @transform_11, window_bounds = array<i64: 128, 8>}, {pipeline_mode = #tpu.pipeline_mode<synchronous>, transform_indices = @transform_12, window_bounds = array<i64: 64, 24>}, {pipeline_mode = #tpu.pipeline_mode<synchronous>, transform_indices = @transform_13, window_bounds = array<i64: 64, 64>}, {pipeline_mode = #tpu.pipeline_mode<synchronous>, transform_indices = @transform_14, window_bounds = array<i64: 1, 64>}, {transform_indices = @transform_15, window_bounds = array<i64: 1, 1, 32>}]} {
    %c0 = arith.constant 0 : index
    %c0_0 = arith.constant 0 : index
    %0 = vector.load %arg11[%c0, %c0_0] : memref<26x64xbf16, #tpu.memory_space<vmem>>, vector<26x64xbf16>
    %c0_1 = arith.constant 0 : index
    %c0_2 = arith.constant 0 : index
    %1 = vector.load %arg12[%c0_1, %c0_2] : memref<128x8xbf16, #tpu.memory_space<vmem>>, vector<128x8xbf16>
    %c0_3 = arith.constant 0 : index
    %c0_4 = arith.constant 0 : index
    %2 = vector.load %arg13[%c0_3, %c0_4] : memref<64x24xbf16, #tpu.memory_space<vmem>>, vector<64x24xbf16>
    %c0_5 = arith.constant 0 : index
    %c0_6 = arith.constant 0 : index
    %3 = vector.load %arg14[%c0_5, %c0_6] : memref<64x64xbf16, #tpu.memory_space<vmem>>, vector<64x64xbf16>
    %c0_7 = arith.constant 0 : index
    %c0_8 = arith.constant 0 : index
    %4 = vector.load %arg9[%c0_7, %c0_8] : memref<2x128xf32, #tpu.memory_space<vmem>>, vector<2x128xf32>
    %c0_9 = arith.constant 0 : index
    %c0_10 = arith.constant 0 : index
    %5 = vector.load %arg10[%c0_9, %c0_10] : memref<2x128xf32, #tpu.memory_space<vmem>>, vector<2x128xf32>
    %c0_11 = arith.constant 0 : index
    %c0_12 = arith.constant 0 : index
    %c0_13 = arith.constant 0 : index
    %6 = vector.load %arg1[%c0_11, %c0_12, %c0_13] : memref<1x8x64xf32, #tpu.memory_space<vmem>>, vector<1x8x64xf32>
    %7 = vector.shape_cast %6 : vector<1x8x64xf32> to vector<8x64xf32>
    %8 = arith.truncf %7 : vector<8x64xf32> to vector<8x64xbf16>
    %c0_14 = arith.constant 0 : index
    %c0_15 = arith.constant 0 : index
    %9 = vector.load %arg2[%c0_14, %c0_15] : memref<64x128xbf16, #tpu.memory_space<vmem>>, vector<64x128xbf16>
    %cst = arith.constant dense<0.000000e+00> : vector<8x128xf32>
    %10 = tpu.matmul %8, %9, %cst {dimension_numbers = #tpu.dot_dimension_numbers<[1], [0], [0], [1], [0, 0, 1, 1], [], []>} : vector<8x64xbf16>, vector<64x128xbf16>, vector<8x128xf32> -> vector<8x128xf32>
    %c0_16 = arith.constant 0 : index
    %c0_17 = arith.constant 0 : index
    %11 = vector.load %arg3[%c0_16, %c0_17] : memref<1x128xf32, #tpu.memory_space<vmem>>, vector<1x128xf32>
    %12 = vector.broadcast %11 : vector<1x128xf32> to vector<8x128xf32>
    %13 = arith.addf %10, %12 : vector<8x128xf32>
    %14 = arith.truncf %13 : vector<8x128xf32> to vector<8x128xbf16>
    %cst_18 = arith.constant dense<0.000000e+00> : vector<128x128xf32>
    %15 = tpu.matmul %1, %14, %cst_18 {dimension_numbers = #tpu.dot_dimension_numbers<[1], [0], [0], [1], [0, 0, 1, 1], [], []>} : vector<128x8xbf16>, vector<8x128xbf16>, vector<128x128xf32> -> vector<128x128xf32>
    %16 = vector.extract_strided_slice %15 {offsets = [0, 0], sizes = [64, 128], strides = [1, 1]} : vector<128x128xf32> to vector<64x128xf32>
    %17 = vector.extract_strided_slice %15 {offsets = [64, 0], sizes = [64, 128], strides = [1, 1]} : vector<128x128xf32> to vector<64x128xf32>
    %18 = arith.mulf %16, %17 : vector<64x128xf32>
    %19 = arith.truncf %18 : vector<64x128xf32> to vector<64x128xbf16>
    %cst_19 = arith.constant dense<0.000000e+00> : vector<26x128xf32>
    %20 = tpu.matmul %0, %19, %cst_19 {dimension_numbers = #tpu.dot_dimension_numbers<[1], [0], [0], [1], [0, 0, 1, 1], [], []>} : vector<26x64xbf16>, vector<64x128xbf16>, vector<26x128xf32> -> vector<26x128xf32>
    %21 = vector.extract_strided_slice %20 {offsets = [0, 0], sizes = [8, 128], strides = [1, 1]} : vector<26x128xf32> to vector<8x128xf32>
    %22 = vector.extract_strided_slice %20 {offsets = [8, 0], sizes = [8, 128], strides = [1, 1]} : vector<26x128xf32> to vector<8x128xf32>
    %23 = vector.extract_strided_slice %20 {offsets = [16, 0], sizes = [8, 128], strides = [1, 1]} : vector<26x128xf32> to vector<8x128xf32>
    %24 = vector.extract_strided_slice %20 {offsets = [24, 0], sizes = [1, 128], strides = [1, 1]} : vector<26x128xf32> to vector<1x128xf32>
    %25 = vector.extract_strided_slice %20 {offsets = [25, 0], sizes = [1, 128], strides = [1, 1]} : vector<26x128xf32> to vector<1x128xf32>
    %26 = tpu.concatenate %23, %21, %22 in 1 : vector<8x128xf32>, vector<8x128xf32>, vector<8x128xf32> -> vector<8x384xf32>
    %27 = arith.truncf %26 : vector<8x384xf32> to vector<8x384xbf16>
    %c0_20 = arith.constant 0 : index
    %c0_21 = arith.constant 0 : index
    %c0_22 = arith.constant 0 : index
    %28 = vector.load %arg6[%c0_20, %c0_21, %c0_22] : memref<2x384x384xbf16, #tpu.memory_space<vmem>>, vector<1x384x384xbf16>
    %29 = vector.shape_cast %28 : vector<1x384x384xbf16> to vector<384x384xbf16>
    %cst_23 = arith.constant dense<0.000000e+00> : vector<8x384xf32>
    %30 = tpu.matmul %27, %29, %cst_23 {dimension_numbers = #tpu.dot_dimension_numbers<[1], [0], [0], [1], [0, 0, 1, 1], [], []>} : vector<8x384xbf16>, vector<384x384xbf16>, vector<8x384xf32> -> vector<8x384xf32>
    %31 = tpu.concatenate %24, %25 in 1 : vector<1x128xf32>, vector<1x128xf32> -> vector<1x256xf32>
    %32 = arith.truncf %31 : vector<1x256xf32> to vector<1x256xbf16>
    %c0_24 = arith.constant 0 : index
    %c0_25 = arith.constant 0 : index
    %c0_26 = arith.constant 0 : index
    %33 = vector.load %arg7[%c0_24, %c0_25, %c0_26] : memref<2x256x256xbf16, #tpu.memory_space<vmem>>, vector<1x256x256xbf16>
    %34 = vector.shape_cast %33 : vector<1x256x256xbf16> to vector<256x256xbf16>
    %cst_27 = arith.constant dense<0.000000e+00> : vector<1x256xf32>
    %35 = tpu.matmul %32, %34, %cst_27 {dimension_numbers = #tpu.dot_dimension_numbers<[1], [0], [0], [1], [0, 0, 1, 1], [], []>} : vector<1x256xbf16>, vector<256x256xbf16>, vector<1x256xf32> -> vector<1x256xf32>
    %36 = vector.extract_strided_slice %30 {offsets = [0, 0], sizes = [8, 128], strides = [1, 1]} : vector<8x384xf32> to vector<8x128xf32>
    %37 = vector.extract_strided_slice %35 {offsets = [0, 0], sizes = [1, 128], strides = [1, 1]} : vector<1x256xf32> to vector<1x128xf32>
    %38 = vector.broadcast %37 : vector<1x128xf32> to vector<8x128xf32>
    %39 = arith.addf %36, %38 : vector<8x128xf32>
    %40 = vector.extract_strided_slice %5 {offsets = [0, 0], sizes = [1, 128], strides = [1, 1]} : vector<2x128xf32> to vector<1x128xf32>
    %41 = vector.broadcast %40 : vector<1x128xf32> to vector<8x128xf32>
    %42 = arith.addf %39, %41 : vector<8x128xf32>
    %43 = vector.extract_strided_slice %30 {offsets = [0, 128], sizes = [8, 128], strides = [1, 1]} : vector<8x384xf32> to vector<8x128xf32>
    %44 = vector.extract_strided_slice %35 {offsets = [0, 128], sizes = [1, 128], strides = [1, 1]} : vector<1x256xf32> to vector<1x128xf32>
    %45 = vector.broadcast %44 : vector<1x128xf32> to vector<8x128xf32>
    %46 = arith.addf %43, %45 : vector<8x128xf32>
    %47 = vector.extract_strided_slice %4 {offsets = [0, 0], sizes = [1, 128], strides = [1, 1]} : vector<2x128xf32> to vector<1x128xf32>
    %48 = vector.broadcast %47 : vector<1x128xf32> to vector<8x128xf32>
    %49 = arith.addf %46, %48 : vector<8x128xf32>
    %50 = vector.extract_strided_slice %30 {offsets = [0, 256], sizes = [8, 128], strides = [1, 1]} : vector<8x384xf32> to vector<8x128xf32>
    %c0_28 = arith.constant 0 : index
    %c0_29 = arith.constant 0 : index
    %c0_30 = arith.constant 0 : index
    %51 = vector.load %arg8[%c0_28, %c0_29, %c0_30] : memref<2x128x256xbf16, #tpu.memory_space<vmem>>, vector<1x128x256xbf16>
    %52 = vector.shape_cast %51 : vector<1x128x256xbf16> to vector<128x256xbf16>
    %cst_31 = arith.constant dense<0.000000e+00> : vector<64x256xf32>
    %53 = tpu.matmul %19, %52, %cst_31 {dimension_numbers = #tpu.dot_dimension_numbers<[1], [0], [0], [1], [0, 0, 1, 1], [], []>} : vector<64x128xbf16>, vector<128x256xbf16>, vector<64x256xf32> -> vector<64x256xf32>
    %54 = tpu.concatenate %42, %49, %50 in 0 : vector<8x128xf32>, vector<8x128xf32>, vector<8x128xf32> -> vector<24x128xf32>
    %55 = arith.truncf %54 : vector<24x128xf32> to vector<24x128xbf16>
    %56 = vector.extract_strided_slice %53 {offsets = [0, 0], sizes = [64, 128], strides = [1, 1]} : vector<64x256xf32> to vector<64x128xf32>
    %57 = vector.extract_strided_slice %53 {offsets = [0, 128], sizes = [64, 128], strides = [1, 1]} : vector<64x256xf32> to vector<64x128xf32>
    %58 = arith.truncf %57 : vector<64x128xf32> to vector<64x128xbf16>
    %cst_32 = arith.constant dense<0.000000e+00> : vector<64x128xf32>
    %59 = tpu.matmul %3, %58, %cst_32 {dimension_numbers = #tpu.dot_dimension_numbers<[1], [0], [0], [1], [0, 0, 1, 1], [], []>} : vector<64x64xbf16>, vector<64x128xbf16>, vector<64x128xf32> -> vector<64x128xf32>
    %60 = arith.addf %56, %59 : vector<64x128xf32>
    %cst_33 = arith.constant dense<0.000000e+00> : vector<64x128xf32>
    %61 = tpu.matmul %2, %55, %cst_33 {dimension_numbers = #tpu.dot_dimension_numbers<[1], [0], [0], [1], [0, 0, 1, 1], [], []>} : vector<64x24xbf16>, vector<24x128xbf16>, vector<64x128xf32> -> vector<64x128xf32>
    %62 = arith.addf %60, %61 : vector<64x128xf32>
    %cst_34 = arith.constant 0.000000e+00 : f32
    %63 = vector.broadcast %cst_34 : f32 to vector<64x128xf32>
    %64 = arith.maximumf %62, %63 : vector<64x128xf32>
    %65 = arith.truncf %64 : vector<64x128xf32> to vector<64x128xbf16>
    %cst_35 = arith.constant dense<0.000000e+00> : vector<26x128xf32>
    %66 = tpu.matmul %0, %65, %cst_35 {dimension_numbers = #tpu.dot_dimension_numbers<[1], [0], [0], [1], [0, 0, 1, 1], [], []>} : vector<26x64xbf16>, vector<64x128xbf16>, vector<26x128xf32> -> vector<26x128xf32>
    %67 = vector.extract_strided_slice %66 {offsets = [0, 0], sizes = [8, 128], strides = [1, 1]} : vector<26x128xf32> to vector<8x128xf32>
    %68 = vector.extract_strided_slice %66 {offsets = [8, 0], sizes = [8, 128], strides = [1, 1]} : vector<26x128xf32> to vector<8x128xf32>
    %69 = vector.extract_strided_slice %66 {offsets = [16, 0], sizes = [8, 128], strides = [1, 1]} : vector<26x128xf32> to vector<8x128xf32>
    %70 = vector.extract_strided_slice %66 {offsets = [24, 0], sizes = [1, 128], strides = [1, 1]} : vector<26x128xf32> to vector<1x128xf32>
    %71 = vector.extract_strided_slice %66 {offsets = [25, 0], sizes = [1, 128], strides = [1, 1]} : vector<26x128xf32> to vector<1x128xf32>
    %72 = tpu.concatenate %69, %67, %68 in 1 : vector<8x128xf32>, vector<8x128xf32>, vector<8x128xf32> -> vector<8x384xf32>
    %73 = arith.truncf %72 : vector<8x384xf32> to vector<8x384xbf16>
    %c1 = arith.constant 1 : index
    %c0_36 = arith.constant 0 : index
    %c0_37 = arith.constant 0 : index
    %74 = vector.load %arg6[%c1, %c0_36, %c0_37] : memref<2x384x384xbf16, #tpu.memory_space<vmem>>, vector<1x384x384xbf16>
    %75 = vector.shape_cast %74 : vector<1x384x384xbf16> to vector<384x384xbf16>
    %cst_38 = arith.constant dense<0.000000e+00> : vector<8x384xf32>
    %76 = tpu.matmul %73, %75, %cst_38 {dimension_numbers = #tpu.dot_dimension_numbers<[1], [0], [0], [1], [0, 0, 1, 1], [], []>} : vector<8x384xbf16>, vector<384x384xbf16>, vector<8x384xf32> -> vector<8x384xf32>
    %77 = tpu.concatenate %70, %71 in 1 : vector<1x128xf32>, vector<1x128xf32> -> vector<1x256xf32>
    %78 = arith.truncf %77 : vector<1x256xf32> to vector<1x256xbf16>
    %c1_39 = arith.constant 1 : index
    %c0_40 = arith.constant 0 : index
    %c0_41 = arith.constant 0 : index
    %79 = vector.load %arg7[%c1_39, %c0_40, %c0_41] : memref<2x256x256xbf16, #tpu.memory_space<vmem>>, vector<1x256x256xbf16>
    %80 = vector.shape_cast %79 : vector<1x256x256xbf16> to vector<256x256xbf16>
    %cst_42 = arith.constant dense<0.000000e+00> : vector<1x256xf32>
    %81 = tpu.matmul %78, %80, %cst_42 {dimension_numbers = #tpu.dot_dimension_numbers<[1], [0], [0], [1], [0, 0, 1, 1], [], []>} : vector<1x256xbf16>, vector<256x256xbf16>, vector<1x256xf32> -> vector<1x256xf32>
    %82 = vector.extract_strided_slice %76 {offsets = [0, 0], sizes = [8, 128], strides = [1, 1]} : vector<8x384xf32> to vector<8x128xf32>
    %83 = vector.extract_strided_slice %81 {offsets = [0, 0], sizes = [1, 128], strides = [1, 1]} : vector<1x256xf32> to vector<1x128xf32>
    %84 = vector.broadcast %83 : vector<1x128xf32> to vector<8x128xf32>
    %85 = arith.addf %82, %84 : vector<8x128xf32>
    %86 = vector.extract_strided_slice %5 {offsets = [1, 0], sizes = [1, 128], strides = [1, 1]} : vector<2x128xf32> to vector<1x128xf32>
    %87 = vector.broadcast %86 : vector<1x128xf32> to vector<8x128xf32>
    %88 = arith.addf %85, %87 : vector<8x128xf32>
    %89 = vector.extract_strided_slice %76 {offsets = [0, 128], sizes = [8, 128], strides = [1, 1]} : vector<8x384xf32> to vector<8x128xf32>
    %90 = vector.extract_strided_slice %81 {offsets = [0, 128], sizes = [1, 128], strides = [1, 1]} : vector<1x256xf32> to vector<1x128xf32>
    %91 = vector.broadcast %90 : vector<1x128xf32> to vector<8x128xf32>
    %92 = arith.addf %89, %91 : vector<8x128xf32>
    %93 = vector.extract_strided_slice %4 {offsets = [1, 0], sizes = [1, 128], strides = [1, 1]} : vector<2x128xf32> to vector<1x128xf32>
    %94 = vector.broadcast %93 : vector<1x128xf32> to vector<8x128xf32>
    %95 = arith.addf %92, %94 : vector<8x128xf32>
    %96 = vector.extract_strided_slice %76 {offsets = [0, 256], sizes = [8, 128], strides = [1, 1]} : vector<8x384xf32> to vector<8x128xf32>
    %c1_43 = arith.constant 1 : index
    %c0_44 = arith.constant 0 : index
    %c0_45 = arith.constant 0 : index
    %97 = vector.load %arg8[%c1_43, %c0_44, %c0_45] : memref<2x128x256xbf16, #tpu.memory_space<vmem>>, vector<1x128x256xbf16>
    %98 = vector.shape_cast %97 : vector<1x128x256xbf16> to vector<128x256xbf16>
    %cst_46 = arith.constant dense<0.000000e+00> : vector<64x256xf32>
    %99 = tpu.matmul %65, %98, %cst_46 {dimension_numbers = #tpu.dot_dimension_numbers<[1], [0], [0], [1], [0, 0, 1, 1], [], []>} : vector<64x128xbf16>, vector<128x256xbf16>, vector<64x256xf32> -> vector<64x256xf32>
    %100 = tpu.concatenate %88, %95, %96 in 0 : vector<8x128xf32>, vector<8x128xf32>, vector<8x128xf32> -> vector<24x128xf32>
    %101 = arith.truncf %100 : vector<24x128xf32> to vector<24x128xbf16>
    %102 = vector.extract_strided_slice %99 {offsets = [0, 0], sizes = [64, 128], strides = [1, 1]} : vector<64x256xf32> to vector<64x128xf32>
    %103 = vector.extract_strided_slice %99 {offsets = [0, 128], sizes = [64, 128], strides = [1, 1]} : vector<64x256xf32> to vector<64x128xf32>
    %104 = arith.truncf %103 : vector<64x128xf32> to vector<64x128xbf16>
    %cst_47 = arith.constant dense<0.000000e+00> : vector<64x128xf32>
    %105 = tpu.matmul %3, %104, %cst_47 {dimension_numbers = #tpu.dot_dimension_numbers<[1], [0], [0], [1], [0, 0, 1, 1], [], []>} : vector<64x64xbf16>, vector<64x128xbf16>, vector<64x128xf32> -> vector<64x128xf32>
    %106 = arith.addf %102, %105 : vector<64x128xf32>
    %cst_48 = arith.constant dense<0.000000e+00> : vector<64x128xf32>
    %107 = tpu.matmul %2, %101, %cst_48 {dimension_numbers = #tpu.dot_dimension_numbers<[1], [0], [0], [1], [0, 0, 1, 1], [], []>} : vector<64x24xbf16>, vector<24x128xbf16>, vector<64x128xf32> -> vector<64x128xf32>
    %108 = arith.addf %106, %107 : vector<64x128xf32>
    %cst_49 = arith.constant 0.000000e+00 : f32
    %109 = vector.broadcast %cst_49 : f32 to vector<64x128xf32>
    %110 = arith.maximumf %108, %109 : vector<64x128xf32>
    %c0_50 = arith.constant 0 : index
    %c0_51 = arith.constant 0 : index
    %111 = vector.load %arg15[%c0_50, %c0_51] : memref<1x64xbf16, #tpu.memory_space<vmem>>, vector<1x64xbf16>
    %112 = arith.truncf %110 : vector<64x128xf32> to vector<64x128xbf16>
    %cst_52 = arith.constant dense<0.000000e+00> : vector<1x128xf32>
    %113 = tpu.matmul %111, %112, %cst_52 {dimension_numbers = #tpu.dot_dimension_numbers<[1], [0], [0], [1], [0, 0, 1, 1], [], []>} : vector<1x64xbf16>, vector<64x128xbf16>, vector<1x128xf32> -> vector<1x128xf32>
    %114 = arith.truncf %113 : vector<1x128xf32> to vector<1x128xbf16>
    %c0_53 = arith.constant 0 : index
    %c0_54 = arith.constant 0 : index
    %115 = vector.load %arg4[%c0_53, %c0_54] : memref<128x32xbf16, #tpu.memory_space<vmem>>, vector<128x32xbf16>
    %cst_55 = arith.constant dense<0.000000e+00> : vector<1x32xf32>
    %116 = tpu.matmul %114, %115, %cst_55 {dimension_numbers = #tpu.dot_dimension_numbers<[1], [0], [0], [1], [0, 0, 1, 1], [], []>} : vector<1x128xbf16>, vector<128x32xbf16>, vector<1x32xf32> -> vector<1x32xf32>
    %c0_56 = arith.constant 0 : index
    %c0_57 = arith.constant 0 : index
    %117 = vector.load %arg5[%c0_56, %c0_57] : memref<1x32xf32, #tpu.memory_space<vmem>>, vector<1x32xf32>
    %118 = arith.addf %116, %117 : vector<1x32xf32>
    %c0_58 = arith.constant 0 : index
    %c0_59 = arith.constant 0 : index
    %c0_60 = arith.constant 0 : index
    %119 = vector.load %arg16[%c0_58, %c0_59, %c0_60] : memref<1x1x32xf32, #tpu.memory_space<vmem>>, vector<1x1x32xf32>
    %120 = vector.shape_cast %119 : vector<1x1x32xf32> to vector<1x32xf32>
    %121 = vector.shape_cast %118 : vector<1x32xf32> to vector<1x1x32xf32>
    tpu.vector_store %arg16[%c0_58, %c0_59, %c0_60], %121 {strides = array<i32>} : memref<1x1x32xf32, #tpu.memory_space<vmem>>, vector<1x1x32xf32>,
    return
  }
  func.func @transform_0(%arg0: i32) -> (i32, i32, i32) {
    %c0_i32 = arith.constant 0 : i32
    %c0_i32_0 = arith.constant 0 : i32
    %c0_i32_1 = arith.constant 0 : i32
    return %arg0, %c0_i32, %c0_i32_0 : i32, i32, i32
  }
  func.func @transform_1(%arg0: i32) -> (i32, i32) {
    %c0_i32 = arith.constant 0 : i32
    %c0_i32_0 = arith.constant 0 : i32
    %c0_i32_1 = arith.constant 0 : i32
    return %c0_i32, %c0_i32_0 : i32, i32
  }
  func.func @transform_2(%arg0: i32) -> (i32, i32) {
    %c0_i32 = arith.constant 0 : i32
    %c0_i32_0 = arith.constant 0 : i32
    %c0_i32_1 = arith.constant 0 : i32
    return %c0_i32, %c0_i32_0 : i32, i32
  }
  func.func @transform_3(%arg0: i32) -> (i32, i32) {
    %c0_i32 = arith.constant 0 : i32
    %c0_i32_0 = arith.constant 0 : i32
    %c0_i32_1 = arith.constant 0 : i32
    return %c0_i32, %c0_i32_0 : i32, i32
  }
  func.func @transform_4(%arg0: i32) -> (i32, i32) {
    %c0_i32 = arith.constant 0 : i32
    %c0_i32_0 = arith.constant 0 : i32
    %c0_i32_1 = arith.constant 0 : i32
    return %c0_i32, %c0_i32_0 : i32, i32
  }
  func.func @transform_5(%arg0: i32) -> (i32, i32, i32) {
    %c0_i32 = arith.constant 0 : i32
    %c0_i32_0 = arith.constant 0 : i32
    %c0_i32_1 = arith.constant 0 : i32
    %c0_i32_2 = arith.constant 0 : i32
    return %c0_i32, %c0_i32_0, %c0_i32_1 : i32, i32, i32
  }
  func.func @transform_6(%arg0: i32) -> (i32, i32, i32) {
    %c0_i32 = arith.constant 0 : i32
    %c0_i32_0 = arith.constant 0 : i32
    %c0_i32_1 = arith.constant 0 : i32
    %c0_i32_2 = arith.constant 0 : i32
    return %c0_i32, %c0_i32_0, %c0_i32_1 : i32, i32, i32
  }
  func.func @transform_7(%arg0: i32) -> (i32, i32, i32) {
    %c0_i32 = arith.constant 0 : i32
    %c0_i32_0 = arith.constant 0 : i32
    %c0_i32_1 = arith.constant 0 : i32
    %c0_i32_2 = arith.constant 0 : i32
    return %c0_i32, %c0_i32_0, %c0_i32_1 : i32, i32, i32
  }
  func.func @transform_8(%arg0: i32) -> (i32, i32) {
    %c0_i32 = arith.constant 0 : i32
    %c0_i32_0 = arith.constant 0 : i32
    %c0_i32_1 = arith.constant 0 : i32
    return %c0_i32, %c0_i32_0 : i32, i32
  }
  func.func @transform_9(%arg0: i32) -> (i32, i32) {
    %c0_i32 = arith.constant 0 : i32
    %c0_i32_0 = arith.constant 0 : i32
    %c0_i32_1 = arith.constant 0 : i32
    return %c0_i32, %c0_i32_0 : i32, i32
  }
  func.func @transform_10(%arg0: i32) -> (i32, i32) {
    %c0_i32 = arith.constant 0 : i32
    %c0_i32_0 = arith.constant 0 : i32
    %c0_i32_1 = arith.constant 0 : i32
    return %c0_i32, %c0_i32_0 : i32, i32
  }
  func.func @transform_11(%arg0: i32) -> (i32, i32) {
    %c0_i32 = arith.constant 0 : i32
    %c0_i32_0 = arith.constant 0 : i32
    %c0_i32_1 = arith.constant 0 : i32
    return %c0_i32, %c0_i32_0 : i32, i32
  }
  func.func @transform_12(%arg0: i32) -> (i32, i32) {
    %c0_i32 = arith.constant 0 : i32
    %c0_i32_0 = arith.constant 0 : i32
    %c0_i32_1 = arith.constant 0 : i32
    return %c0_i32, %c0_i32_0 : i32, i32
  }
  func.func @transform_13(%arg0: i32) -> (i32, i32) {
    %c0_i32 = arith.constant 0 : i32
    %c0_i32_0 = arith.constant 0 : i32
    %c0_i32_1 = arith.constant 0 : i32
    return %c0_i32, %c0_i32_0 : i32, i32
  }
  func.func @transform_14(%arg0: i32) -> (i32, i32) {
    %c0_i32 = arith.constant 0 : i32
    %c0_i32_0 = arith.constant 0 : i32
    %c0_i32_1 = arith.constant 0 : i32
    return %c0_i32, %c0_i32_0 : i32, i32
  }
  func.func @transform_15(%arg0: i32) -> (i32, i32, i32) {
    %c0_i32 = arith.constant 0 : i32
    %c0_i32_0 = arith.constant 0 : i32
    %c0_i32_1 = arith.constant 0 : i32
    return %arg0, %c0_i32, %c0_i32_0 : i32, i32, i32
  }
}

</mosaic_0001>

<llo_original>
// kernel: tpu_custom_call.1
$region0: #{tpu_custom_call.1}
  #allocation0 [shape = 'u32[]', space=smem, size = 0x4, offset = 0x4, fixed_abs, tag = 'smem constant byte address 0x4 - core index']
  #allocation1 [shape = 'u32[144,128]{1,0:T(1,128)}', space=vmem, size = 0x12000, scoped, tag = 'internal scratch']
  %s0 = inlined_call_operand.vmem [shape: f32[2,8,64], index: 0, kind: input, shape index: {}]
  %s1 = inlined_call_operand.vmem [shape: bf16[64,128], index: 1, kind: input, shape index: {}]
  %s2 = inlined_call_operand.vmem [shape: f32[1,128], index: 2, kind: input, shape index: {}]
  %s3 = inlined_call_operand.vmem [shape: bf16[128,32], index: 3, kind: input, shape index: {}]
  %s4 = inlined_call_operand.vmem [shape: f32[1,32], index: 4, kind: input, shape index: {}]
  %s5 = inlined_call_operand.hbm [shape: bf16[2,384,384], index: 5, kind: input, shape index: {}]
  %s6 = inlined_call_operand.hbm [shape: bf16[2,256,256], index: 6, kind: input, shape index: {}]
  %s7 = inlined_call_operand.hbm [shape: bf16[2,128,256], index: 7, kind: input, shape index: {}]
  %s8 = inlined_call_operand.vmem [shape: f32[2,128], index: 8, kind: input, shape index: {}]
  %s9 = inlined_call_operand.vmem [shape: f32[2,128], index: 9, kind: input, shape index: {}]
  %s10 = inlined_call_operand.vmem [shape: bf16[26,64], index: 10, kind: input, shape index: {}]
  %s11 = inlined_call_operand.vmem [shape: bf16[128,8], index: 11, kind: input, shape index: {}]
  %s12 = inlined_call_operand.vmem [shape: bf16[64,24], index: 12, kind: input, shape index: {}]
  %s13 = inlined_call_operand.vmem [shape: bf16[64,64], index: 13, kind: input, shape index: {}]
  %s14 = inlined_call_operand.vmem [shape: bf16[1,64], index: 14, kind: input, shape index: {}]
  %s15 = inlined_call_operand.hbm [shape: f32[2,1,32], index: 15, kind: output, shape index: {}]
  %s16 = sld [smem:[#allocation0]]
  $region105: #{tpu_custom_call.1} parent=0
    _
  %s18 = ssub.s32 1, %s16
  %s19 = scalar_select 0, %s18, %s16
  $region1: #{tpu_custom_call.1} parent=0
    #allocation2 [shape = 'u8[589824]{0}', space=vmem, size = 0x90000, scoped, tag = 'input window, operand 5, single buffered']
    #allocation3 [shape = 's32[2]{0}', space=sflag, size = 0x8, scoped, tag = 'scoped memory for tpu_custom_call.1']
    #allocation4 [shape = 's32[2]{0}', space=sflag, size = 0x8, scoped, tag = 'scoped memory for tpu_custom_call.1']
    #allocation5 [shape = 'u8[262144]{0}', space=vmem, size = 0x40000, scoped, tag = 'input window, operand 6, single buffered']
    #allocation6 [shape = 's32[1]{0}', space=sflag, size = 0x4, scoped, tag = 'scoped memory for tpu_custom_call.1']
    #allocation7 [shape = 'u8[131072]{0}', space=vmem, size = 0x20000, scoped, tag = 'input window, operand 7, single buffered']
    #allocation8 [shape = 'u8[1024]{0}', space=vmem, size = 0x400, scoped, tag = 'output window, operand 0']
    %20 = vsyncpa [#allocation3], 0
    %21 = vsyncpa [#allocation6], 0
    %22 = vsyncpa [#allocation4], 0
    %s23 = scalar_lea.sflag [#allocation4], 1
    %24 = vsyncpa %s23, 0
    loop: start=0, step=1, limit=4
    $region2: #{tpu_custom_call.1} parent=1 // loop_pre_header
      _
    $region3: #{tpu_custom_call.1} parent=1 // loop_header
      %s26 = sphi 0, %s30
      %p27 = scmp.ge.s32.totalorder %s26, 4
      %s36 = sphi 0, %s38
      %s39 = sphi 0, %s36
      %s40 = sphi 0, %s39
      %s56 = sphi 0, %s40
      %s60 = sphi 0, %s60
      %s62 = sphi 0, %s60
      %s63 = sphi 0, %s62
      %s77 = sphi 0, %s63
      %s81 = sphi 0, %s81
      %s83 = sphi 0, %s81
      %s84 = sphi 0, %s83
      %s98 = sphi 0, %s84
      %s102 = sphi 0, %s102
      %s104 = sphi 0, %s102
      %s105 = sphi 0, %s104
      %s119 = sphi 0, %s105
      %s123 = sphi 0, %s123
      %s125 = sphi 0, %s123
      %s126 = sphi 0, %s125
      %s140 = sphi 0, %s126
      %s144 = sphi 0, %s144
      %s146 = sphi 0, %s144
      %s147 = sphi 0, %s146
      %s161 = sphi 0, %s147
      %s165 = sphi 0, %s165
      %s167 = sphi 0, %s165
      %s168 = sphi 0, %s167
      %s182 = sphi 0, %s168
      %s186 = sphi 0, %s186
      %s188 = sphi 0, %s186
      %s189 = sphi 0, %s188
      %s203 = sphi 0, %s189
      %s207 = sphi 0, %s207
      %s209 = sphi 0, %s207
      %s210 = sphi 0, %s209
      %s224 = sphi 0, %s210
      %s228 = sphi 0, %s228
      %s230 = sphi 0, %s228
      %s231 = sphi 0, %s230
      %s245 = sphi 0, %s231
      %s249 = sphi 0, %s249
      %s251 = sphi 0, %s249
      %s252 = sphi 0, %s251
      %s266 = sphi 0, %s252
      %s270 = sphi 0, %s270
      %s272 = sphi 0, %s270
      %s273 = sphi 0, %s272
      %s287 = sphi 0, %s273
      %s291 = sphi 0, %s291
      %s293 = sphi 0, %s291
      %s294 = sphi 0, %s293
      %s308 = sphi 0, %s294
      %s312 = sphi 0, %s312
      %s314 = sphi 0, %s312
      %s315 = sphi 0, %s314
      %s329 = sphi 0, %s315
      %s333 = sphi 0, %s333
      %s335 = sphi 0, %s333
      %s336 = sphi 0, %s335
      %s350 = sphi 0, %s336
      %s356 = sphi 0, %s358
      %s359 = sphi 0, %s356
      %s360 = sphi 0, %s359
      %s376 = sphi 0, %s360
    $region4: #{tpu_custom_call.1} parent=1 // loop_header_branch
      %29 = sbr.rel (%p27) target = $region8
    $region5: #{tpu_custom_call.1} parent=1 // loop_body
      %s31 = ssub.s32 %s26, 1
      %s32 = ssub.s32 %s26, 2
      %s33 = sadd.s32 %s26, 1
      %s34 = ssub.s32 %s26, %s33
      %p35 = scmp.eq.s32.totalorder %s34, 0
      %s37 = sadd.s32 %s36, 1
      %s38 = scalar_select %p35, %s36, %s37
      %p41 = pneg %p35
      %p42 = scmp.eq.s32.totalorder %s26, 1
      %p43 = por %p41, %p42
      %p44 = scmp.ne.s32.totalorder %s36, %s39
      %p45 = scmp.eq.s32.totalorder %s26, 0
      %p46 = por %p44, %p45
      %p47 = scmp.ne.s32.totalorder %s36, %s39
      %p48 = scmp.eq.s32.totalorder %s31, 1
      %p49 = por %p47, %p48
      %p50 = scmp.ne.s32.totalorder %s39, %s40
      %p51 = scmp.eq.s32.totalorder %s31, 0
      %p52 = por %p50, %p51
      %p53 = scmp.ne.s32.totalorder %s39, %s40
      %p54 = scmp.eq.s32.totalorder %s32, 1
      %p55 = por %p53, %p54
      %p57 = scmp.ne.s32.totalorder %s40, %s56
      %p58 = scmp.eq.s32.totalorder %s32, 0
      %p59 = por %p57, %p58
      %s61 = sadd.s32 %s60, 1
      %p64 = scmp.eq.s32.totalorder %s26, 1
      %p65 = scmp.ne.s32.totalorder %s60, %s62
      %p66 = scmp.eq.s32.totalorder %s26, 0
      %p67 = por %p65, %p66
      %p68 = scmp.ne.s32.totalorder %s60, %s62
      %p69 = scmp.eq.s32.totalorder %s31, 1
      %p70 = por %p68, %p69
      %p71 = scmp.ne.s32.totalorder %s62, %s63
      %p72 = scmp.eq.s32.totalorder %s31, 0
      %p73 = por %p71, %p72
      %p74 = scmp.ne.s32.totalorder %s62, %s63
      %p75 = scmp.eq.s32.totalorder %s32, 1
      %p76 = por %p74, %p75
      %p78 = scmp.ne.s32.totalorder %s63, %s77
      %p79 = scmp.eq.s32.totalorder %s32, 0
      %p80 = por %p78, %p79
      %s82 = sadd.s32 %s81, 1
      %p85 = scmp.eq.s32.totalorder %s26, 1
      %p86 = scmp.ne.s32.totalorder %s81, %s83
      %p87 = scmp.eq.s32.totalorder %s26, 0
      %p88 = por %p86, %p87
      %p89 = scmp.ne.s32.totalorder %s81, %s83
      %p90 = scmp.eq.s32.totalorder %s31, 1
      %p91 = por %p89, %p90
      %p92 = scmp.ne.s32.totalorder %s83, %s84
      %p93 = scmp.eq.s32.totalorder %s31, 0
      %p94 = por %p92, %p93
      %p95 = scmp.ne.s32.totalorder %s83, %s84
      %p96 = scmp.eq.s32.totalorder %s32, 1
      %p97 = por %p95, %p96
      %p99 = scmp.ne.s32.totalorder %s84, %s98
      %p100 = scmp.eq.s32.totalorder %s32, 0
      %p101 = por %p99, %p100
      %s103 = sadd.s32 %s102, 1
      %p106 = scmp.eq.s32.totalorder %s26, 1
      %p107 = scmp.ne.s32.totalorder %s102, %s104
      %p108 = scmp.eq.s32.totalorder %s26, 0
      %p109 = por %p107, %p108
      %p110 = scmp.ne.s32.totalorder %s102, %s104
      %p111 = scmp.eq.s32.totalorder %s31, 1
      %p112 = por %p110, %p111
      %p113 = scmp.ne.s32.totalorder %s104, %s105
      %p114 = scmp.eq.s32.totalorder %s31, 0
      %p115 = por %p113, %p114
      %p116 = scmp.ne.s32.totalorder %s104, %s105
      %p117 = scmp.eq.s32.totalorder %s32, 1
      %p118 = por %p116, %p117
      %p120 = scmp.ne.s32.totalorder %s105, %s119
      %p121 = scmp.eq.s32.totalorder %s32, 0
      %p122 = por %p120, %p121
      %s124 = sadd.s32 %s123, 1
      %p127 = scmp.eq.s32.totalorder %s26, 1
      %p128 = scmp.ne.s32.totalorder %s123, %s125
      %p129 = scmp.eq.s32.totalorder %s26, 0
      %p130 = por %p128, %p129
      %p131 = scmp.ne.s32.totalorder %s123, %s125
      %p132 = scmp.eq.s32.totalorder %s31, 1
      %p133 = por %p131, %p132
      %p134 = scmp.ne.s32.totalorder %s125, %s126
      %p135 = scmp.eq.s32.totalorder %s31, 0
      %p136 = por %p134, %p135
      %p137 = scmp.ne.s32.totalorder %s125, %s126
      %p138 = scmp.eq.s32.totalorder %s32, 1
      %p139 = por %p137, %p138
      %p141 = scmp.ne.s32.totalorder %s126, %s140
      %p142 = scmp.eq.s32.totalorder %s32, 0
      %p143 = por %p141, %p142
      %s145 = sadd.s32 %s144, 1
      %p148 = scmp.eq.s32.totalorder %s26, 1
      %p149 = scmp.ne.s32.totalorder %s144, %s146
      %p150 = scmp.eq.s32.totalorder %s26, 0
      %p151 = por %p149, %p150
      %p152 = scmp.ne.s32.totalorder %s144, %s146
      %p153 = scmp.eq.s32.totalorder %s31, 1
      %p154 = por %p152, %p153
      %p155 = scmp.ne.s32.totalorder %s146, %s147
      %p156 = scmp.eq.s32.totalorder %s31, 0
      %p157 = por %p155, %p156
      %p158 = scmp.ne.s32.totalorder %s146, %s147
      %p159 = scmp.eq.s32.totalorder %s32, 1
      %p160 = por %p158, %p159
      %p162 = scmp.ne.s32.totalorder %s147, %s161
      %p163 = scmp.eq.s32.totalorder %s32, 0
      %p164 = por %p162, %p163
      %s166 = sadd.s32 %s165, 1
      %p169 = scmp.eq.s32.totalorder %s26, 1
      %p170 = scmp.ne.s32.totalorder %s165, %s167
      %p171 = scmp.eq.s32.totalorder %s26, 0
      %p172 = por %p170, %p171
      %p173 = scmp.ne.s32.totalorder %s165, %s167
      %p174 = scmp.eq.s32.totalorder %s31, 1
      %p175 = por %p173, %p174
      %p176 = scmp.ne.s32.totalorder %s167, %s168
      %p177 = scmp.eq.s32.totalorder %s31, 0
      %p178 = por %p176, %p177
      %p179 = scmp.ne.s32.totalorder %s167, %s168
      %p180 = scmp.eq.s32.totalorder %s32, 1
      %p181 = por %p179, %p180
      %p183 = scmp.ne.s32.totalorder %s168, %s182
      %p184 = scmp.eq.s32.totalorder %s32, 0
      %p185 = por %p183, %p184
      %s187 = sadd.s32 %s186, 1
      %p190 = scmp.eq.s32.totalorder %s26, 1
      %p191 = scmp.ne.s32.totalorder %s186, %s188
      %p192 = scmp.eq.s32.totalorder %s26, 0
      %p193 = por %p191, %p192
      %p194 = scmp.ne.s32.totalorder %s186, %s188
      %p195 = scmp.eq.s32.totalorder %s31, 1
      %p196 = por %p194, %p195
      %p197 = scmp.ne.s32.totalorder %s188, %s189
      %p198 = scmp.eq.s32.totalorder %s31, 0
      %p199 = por %p197, %p198
      %p200 = scmp.ne.s32.totalorder %s188, %s189
      %p201 = scmp.eq.s32.totalorder %s32, 1
      %p202 = por %p200, %p201
      %p204 = scmp.ne.s32.totalorder %s189, %s203
      %p205 = scmp.eq.s32.totalorder %s32, 0
      %p206 = por %p204, %p205
      %s208 = sadd.s32 %s207, 1
      %p211 = scmp.eq.s32.totalorder %s26, 1
      %p212 = scmp.ne.s32.totalorder %s207, %s209
      %p213 = scmp.eq.s32.totalorder %s26, 0
      %p214 = por %p212, %p213
      %p215 = scmp.ne.s32.totalorder %s207, %s209
      %p216 = scmp.eq.s32.totalorder %s31, 1
      %p217 = por %p215, %p216
      %p218 = scmp.ne.s32.totalorder %s209, %s210
      %p219 = scmp.eq.s32.totalorder %s31, 0
      %p220 = por %p218, %p219
      %p221 = scmp.ne.s32.totalorder %s209, %s210
      %p222 = scmp.eq.s32.totalorder %s32, 1
      %p223 = por %p221, %p222
      %p225 = scmp.ne.s32.totalorder %s210, %s224
      %p226 = scmp.eq.s32.totalorder %s32, 0
      %p227 = por %p225, %p226
      %s229 = sadd.s32 %s228, 1
      %p232 = scmp.eq.s32.totalorder %s26, 1
      %p233 = scmp.ne.s32.totalorder %s228, %s230
      %p234 = scmp.eq.s32.totalorder %s26, 0
      %p235 = por %p233, %p234
      %p236 = scmp.ne.s32.totalorder %s228, %s230
      %p237 = scmp.eq.s32.totalorder %s31, 1
      %p238 = por %p236, %p237
      %p239 = scmp.ne.s32.totalorder %s230, %s231
      %p240 = scmp.eq.s32.totalorder %s31, 0
      %p241 = por %p239, %p240
      %p242 = scmp.ne.s32.totalorder %s230, %s231
      %p243 = scmp.eq.s32.totalorder %s32, 1
      %p244 = por %p242, %p243
      %p246 = scmp.ne.s32.totalorder %s231, %s245
      %p247 = scmp.eq.s32.totalorder %s32, 0
      %p248 = por %p246, %p247
      %s250 = sadd.s32 %s249, 1
      %p253 = scmp.eq.s32.totalorder %s26, 1
      %p254 = scmp.ne.s32.totalorder %s249, %s251
      %p255 = scmp.eq.s32.totalorder %s26, 0
      %p256 = por %p254, %p255
      %p257 = scmp.ne.s32.totalorder %s249, %s251
      %p258 = scmp.eq.s32.totalorder %s31, 1
      %p259 = por %p257, %p258
      %p260 = scmp.ne.s32.totalorder %s251, %s252
      %p261 = scmp.eq.s32.totalorder %s31, 0
      %p262 = por %p260, %p261
      %p263 = scmp.ne.s32.totalorder %s251, %s252
      %p264 = scmp.eq.s32.totalorder %s32, 1
      %p265 = por %p263, %p264
      %p267 = scmp.ne.s32.totalorder %s252, %s266
      %p268 = scmp.eq.s32.totalorder %s32, 0
      %p269 = por %p267, %p268
      %s271 = sadd.s32 %s270, 1
      %p274 = scmp.eq.s32.totalorder %s26, 1
      %p275 = scmp.ne.s32.totalorder %s270, %s272
      %p276 = scmp.eq.s32.totalorder %s26, 0
      %p277 = por %p275, %p276
      %p278 = scmp.ne.s32.totalorder %s270, %s272
      %p279 = scmp.eq.s32.totalorder %s31, 1
      %p280 = por %p278, %p279
      %p281 = scmp.ne.s32.totalorder %s272, %s273
      %p282 = scmp.eq.s32.totalorder %s31, 0
      %p283 = por %p281, %p282
      %p284 = scmp.ne.s32.totalorder %s272, %s273
      %p285 = scmp.eq.s32.totalorder %s32, 1
      %p286 = por %p284, %p285
      %p288 = scmp.ne.s32.totalorder %s273, %s287
      %p289 = scmp.eq.s32.totalorder %s32, 0
      %p290 = por %p288, %p289
      %s292 = sadd.s32 %s291, 1
      %p295 = scmp.eq.s32.totalorder %s26, 1
      %p296 = scmp.ne.s32.totalorder %s291, %s293
      %p297 = scmp.eq.s32.totalorder %s26, 0
      %p298 = por %p296, %p297
      %p299 = scmp.ne.s32.totalorder %s291, %s293
      %p300 = scmp.eq.s32.totalorder %s31, 1
      %p301 = por %p299, %p300
      %p302 = scmp.ne.s32.totalorder %s293, %s294
      %p303 = scmp.eq.s32.totalorder %s31, 0
      %p304 = por %p302, %p303
      %p305 = scmp.ne.s32.totalorder %s293, %s294
      %p306 = scmp.eq.s32.totalorder %s32, 1
      %p307 = por %p305, %p306
      %p309 = scmp.ne.s32.totalorder %s294, %s308
      %p310 = scmp.eq.s32.totalorder %s32, 0
      %p311 = por %p309, %p310
      %s313 = sadd.s32 %s312, 1
      %p316 = scmp.eq.s32.totalorder %s26, 1
      %p317 = scmp.ne.s32.totalorder %s312, %s314
      %p318 = scmp.eq.s32.totalorder %s26, 0
      %p319 = por %p317, %p318
      %p320 = scmp.ne.s32.totalorder %s312, %s314
      %p321 = scmp.eq.s32.totalorder %s31, 1
      %p322 = por %p320, %p321
      %p323 = scmp.ne.s32.totalorder %s314, %s315
      %p324 = scmp.eq.s32.totalorder %s31, 0
      %p325 = por %p323, %p324
      %p326 = scmp.ne.s32.totalorder %s314, %s315
      %p327 = scmp.eq.s32.totalorder %s32, 1
      %p328 = por %p326, %p327
      %p330 = scmp.ne.s32.totalorder %s315, %s329
      %p331 = scmp.eq.s32.totalorder %s32, 0
      %p332 = por %p330, %p331
      %s334 = sadd.s32 %s333, 1
      %p337 = scmp.eq.s32.totalorder %s26, 1
      %p338 = scmp.ne.s32.totalorder %s333, %s335
      %p339 = scmp.eq.s32.totalorder %s26, 0
      %p340 = por %p338, %p339
      %p341 = scmp.ne.s32.totalorder %s333, %s335
      %p342 = scmp.eq.s32.totalorder %s31, 1
      %p343 = por %p341, %p342
      %p344 = scmp.ne.s32.totalorder %s335, %s336
      %p345 = scmp.eq.s32.totalorder %s31, 0
      %p346 = por %p344, %p345
      %p347 = scmp.ne.s32.totalorder %s335, %s336
      %p348 = scmp.eq.s32.totalorder %s32, 1
      %p349 = por %p347, %p348
      %p351 = scmp.ne.s32.totalorder %s336, %s350
      %p352 = scmp.eq.s32.totalorder %s32, 0
      %p353 = por %p351, %p352
      %s354 = ssub.s32 %s26, %s33
      %p355 = scmp.eq.s32.totalorder %s354, 0
      %s357 = sadd.s32 %s356, 1
      %s358 = scalar_select %p355, %s356, %s357
      %p361 = pneg %p355
      %p362 = scmp.eq.s32.totalorder %s26, 1
      %p363 = por %p361, %p362
      %p364 = scmp.ne.s32.totalorder %s356, %s359
      %p365 = scmp.eq.s32.totalorder %s26, 0
      %p366 = por %p364, %p365
      %p367 = scmp.ne.s32.totalorder %s356, %s359
      %p368 = scmp.eq.s32.totalorder %s31, 1
      %p369 = por %p367, %p368
      %p370 = scmp.ne.s32.totalorder %s359, %s360
      %p371 = scmp.eq.s32.totalorder %s31, 0
      %p372 = por %p370, %p371
      %p373 = scmp.ne.s32.totalorder %s359, %s360
      %p374 = scmp.eq.s32.totalorder %s32, 1
      %p375 = por %p373, %p374
      %p377 = scmp.ne.s32.totalorder %s360, %s376
      %p378 = scmp.eq.s32.totalorder %s32, 0
      %p379 = por %p377, %p378
      %p380 = scmp.le.s32.totalorder 1, %s26
      %p381 = scmp.lt.s32.totalorder %s26, 3
      %p382 = pnand %p380, %p381
      %p383 = pneg %p382
      // Predicated region
      $region9: #{tpu_custom_call.1} parent=5 // pred_check
        _
      $region10: #{tpu_custom_call.1} parent=5 // pred_check_branch
        %385 = sbr.rel (%p382) target = $region12
      $region11: #{tpu_custom_call.1} parent=5 // pred_region
        %s386 = ssub.s32 %s26, 1
        // Predicated region
        $region13: #{tpu_custom_call.1} parent=11 // pred_check
          %p387 = pneg %p73
        $region14: #{tpu_custom_call.1} parent=11 // pred_check_branch
          %389 = sbr.rel (%p387) target = $region16
        $region15: #{tpu_custom_call.1} parent=11 // pred_region
          _
        $region16: #{tpu_custom_call.1} parent=11 // pred_fallthru
          _
        // Predicated region
        $region17: #{tpu_custom_call.1} parent=11 // pred_check
          %p390 = pneg %p94
        $region18: #{tpu_custom_call.1} parent=11 // pred_check_branch
          %392 = sbr.rel (%p390) target = $region20
        $region19: #{tpu_custom_call.1} parent=11 // pred_region
          _
        $region20: #{tpu_custom_call.1} parent=11 // pred_fallthru
          _
        // Predicated region
        $region21: #{tpu_custom_call.1} parent=11 // pred_check
          %p393 = pneg %p115
        $region22: #{tpu_custom_call.1} parent=11 // pred_check_branch
          %395 = sbr.rel (%p393) target = $region24
        $region23: #{tpu_custom_call.1} parent=11 // pred_region
          _
        $region24: #{tpu_custom_call.1} parent=11 // pred_fallthru
          _
        // Predicated region
        $region25: #{tpu_custom_call.1} parent=11 // pred_check
          %p396 = pneg %p136
        $region26: #{tpu_custom_call.1} parent=11 // pred_check_branch
          %398 = sbr.rel (%p396) target = $region28
        $region27: #{tpu_custom_call.1} parent=11 // pred_region
          _
        $region28: #{tpu_custom_call.1} parent=11 // pred_fallthru
          _
        // Predicated region
        $region29: #{tpu_custom_call.1} parent=11 // pred_check
          %p399 = pneg %p157
        $region30: #{tpu_custom_call.1} parent=11 // pred_check_branch
          %401 = sbr.rel (%p399) target = $region32
        $region31: #{tpu_custom_call.1} parent=11 // pred_region
          %s403 = ssub.s32 18432, 18432
          %404 = vsyncadd [#allocation3], %s403
          %s405 = sshll.u32 [#allocation2], 4
          %s406 = int_to_ptr.vmem [resolvable:$true] %s405
          %411 = dma.hbm_to_vmem [thread:$0]  %s5, 18432, %s406, [#allocation3], 192, 192, 12
        $region32: #{tpu_custom_call.1} parent=11 // pred_fallthru
          _
        // Predicated region
        $region33: #{tpu_custom_call.1} parent=11 // pred_check
          %p412 = pneg %p178
        $region34: #{tpu_custom_call.1} parent=11 // pred_check_branch
          %414 = sbr.rel (%p412) target = $region36
        $region35: #{tpu_custom_call.1} parent=11 // pred_region
          %s416 = ssub.s32 8192, 8192
          %417 = vsyncadd [#allocation6], %s416
          %s418 = sshll.u32 [#allocation5], 4
          %s419 = int_to_ptr.vmem [resolvable:$true] %s418
          %424 = dma.hbm_to_vmem [thread:$0]  %s6, 8192, %s419, [#allocation6], 128, 128, 8
        $region36: #{tpu_custom_call.1} parent=11 // pred_fallthru
          _
        // Predicated region
        $region37: #{tpu_custom_call.1} parent=11 // pred_check
          %p425 = pneg %p199
        $region38: #{tpu_custom_call.1} parent=11 // pred_check_branch
          %427 = sbr.rel (%p425) target = $region40
        $region39: #{tpu_custom_call.1} parent=11 // pred_region
          %s429 = ssub.s32 4096, 4096
          %430 = vsyncadd [#allocation6], %s429
          %s431 = sshll.u32 [#allocation7], 4
          %s432 = int_to_ptr.vmem [resolvable:$true] %s431
          %437 = dma.hbm_to_vmem [thread:$0]  %s7, 4096, %s432, [#allocation6], 128, 128, 8
        $region40: #{tpu_custom_call.1} parent=11 // pred_fallthru
          _
        // Predicated region
        $region41: #{tpu_custom_call.1} parent=11 // pred_check
          %p438 = pneg %p220
        $region42: #{tpu_custom_call.1} parent=11 // pred_check_branch
          %440 = sbr.rel (%p438) target = $region44
        $region43: #{tpu_custom_call.1} parent=11 // pred_region
          _
        $region44: #{tpu_custom_call.1} parent=11 // pred_fallthru
          _
        // Predicated region
        $region45: #{tpu_custom_call.1} parent=11 // pred_check
          %p441 = pneg %p241
        $region46: #{tpu_custom_call.1} parent=11 // pred_check_branch
          %443 = sbr.rel (%p441) target = $region48
        $region47: #{tpu_custom_call.1} parent=11 // pred_region
          _
        $region48: #{tpu_custom_call.1} parent=11 // pred_fallthru
          _
        // Predicated region
        $region49: #{tpu_custom_call.1} parent=11 // pred_check
          %p444 = pneg %p262
        $region50: #{tpu_custom_call.1} parent=11 // pred_check_branch
          %446 = sbr.rel (%p444) target = $region52
        $region51: #{tpu_custom_call.1} parent=11 // pred_region
          _
        $region52: #{tpu_custom_call.1} parent=11 // pred_fallthru
          _
        // Predicated region
        $region53: #{tpu_custom_call.1} parent=11 // pred_check
          %p447 = pneg %p283
        $region54: #{tpu_custom_call.1} parent=11 // pred_check_branch
          %449 = sbr.rel (%p447) target = $region56
        $region55: #{tpu_custom_call.1} parent=11 // pred_region
          _
        $region56: #{tpu_custom_call.1} parent=11 // pred_fallthru
          _
        // Predicated region
        $region57: #{tpu_custom_call.1} parent=11 // pred_check
          %p450 = pneg %p304
        $region58: #{tpu_custom_call.1} parent=11 // pred_check_branch
          %452 = sbr.rel (%p450) target = $region60
        $region59: #{tpu_custom_call.1} parent=11 // pred_region
          _
        $region60: #{tpu_custom_call.1} parent=11 // pred_fallthru
          _
        // Predicated region
        $region61: #{tpu_custom_call.1} parent=11 // pred_check
          %p453 = pneg %p325
        $region62: #{tpu_custom_call.1} parent=11 // pred_check_branch
          %455 = sbr.rel (%p453) target = $region64
        $region63: #{tpu_custom_call.1} parent=11 // pred_region
          _
        $region64: #{tpu_custom_call.1} parent=11 // pred_fallthru
          _
        // Predicated region
        $region65: #{tpu_custom_call.1} parent=11 // pred_check
          %p456 = pneg %p346
        $region66: #{tpu_custom_call.1} parent=11 // pred_check_branch
          %458 = sbr.rel (%p456) target = $region68
        $region67: #{tpu_custom_call.1} parent=11 // pred_region
          _
        $region68: #{tpu_custom_call.1} parent=11 // pred_fallthru
          _
      $region12: #{tpu_custom_call.1} parent=5 // pred_fallthru
        _
      %p459 = scmp.lt.s32.totalorder %s26, 2
      // Predicated region
      $region69: #{tpu_custom_call.1} parent=5 // pred_check
        %p460 = pneg %p459
      $region70: #{tpu_custom_call.1} parent=5 // pred_check_branch
        %462 = sbr.rel (%p460) target = $region72
      $region71: #{tpu_custom_call.1} parent=5 // pred_region
        // Predicated region
        $region73: #{tpu_custom_call.1} parent=71 // pred_check
          %p463 = pneg %p46
        $region74: #{tpu_custom_call.1} parent=71 // pred_check_branch
          %465 = sbr.rel (%p463) target = $region76
        $region75: #{tpu_custom_call.1} parent=71 // pred_region
          %p466 = scmp.lt.s32.totalorder %s26, 1
          %s467 = scalar_select %p466, %s26, 1
          %s468 = smul.addr %s467, 8
          %s469 = scalar_lea.vmem %s0, %s468
        $region76: #{tpu_custom_call.1} parent=71 // pred_fallthru
          _
      $region72: #{tpu_custom_call.1} parent=5 // pred_fallthru
        _
      %p470 = scmp.le.s32.totalorder 1, %s26
      %p471 = scmp.lt.s32.totalorder %s26, 3
      %p472 = pnand %p470, %p471
      %p473 = pneg %p472
      // Predicated region
      $region77: #{tpu_custom_call.1} parent=5 // pred_check
        _
      $region78: #{tpu_custom_call.1} parent=5 // pred_check_branch
        %475 = sbr.rel (%p472) target = $region80
      $region79: #{tpu_custom_call.1} parent=5 // pred_region
        %s476 = ssub.s32 %s26, 1
        // Predicated region
        $region81: #{tpu_custom_call.1} parent=79 // pred_check
          %p477 = pneg %p157
        $region82: #{tpu_custom_call.1} parent=79 // pred_check_branch
          %479 = sbr.rel (%p477) target = $region84
        $region83: #{tpu_custom_call.1} parent=79 // pred_region
          %480 = dma.done [#allocation3], 18432
        $region84: #{tpu_custom_call.1} parent=79 // pred_fallthru
          _
        // Predicated region
        $region85: #{tpu_custom_call.1} parent=79 // pred_check
          %p481 = pneg %p178
        $region86: #{tpu_custom_call.1} parent=79 // pred_check_branch
          %483 = sbr.rel (%p481) target = $region88
        $region87: #{tpu_custom_call.1} parent=79 // pred_region
          %484 = dma.done [#allocation6], 8192
        $region88: #{tpu_custom_call.1} parent=79 // pred_fallthru
          _
        // Predicated region
        $region89: #{tpu_custom_call.1} parent=79 // pred_check
          %p485 = pneg %p199
        $region90: #{tpu_custom_call.1} parent=79 // pred_check_branch
          %487 = sbr.rel (%p485) target = $region92
        $region91: #{tpu_custom_call.1} parent=79 // pred_region
          %488 = dma.done [#allocation6], 4096
        $region92: #{tpu_custom_call.1} parent=79 // pred_fallthru
          _
        %p489 = scmp.lt.s32.totalorder %s31, 1
        %s490 = scalar_select %p489, %s31, 1
        %s491 = smul.addr %s490, 8
        %s492 = scalar_lea.vmem %s0, %s491
        %p493 = pneg %p52
        %p494 = pneg %p49
        %p495 = pneg %p73
        %p496 = pneg %p70
        %p497 = pneg %p94
        %p498 = pneg %p91
        %p499 = pneg %p115
        %p500 = pneg %p112
        %p501 = pneg %p136
        %p502 = pneg %p133
        %p503 = pneg %p157
        %p504 = pneg %p154
        %p505 = pneg %p178
        %p506 = pneg %p175
        %p507 = pneg %p199
        %p508 = pneg %p196
        %p509 = pneg %p220
        %p510 = pneg %p217
        %p511 = pneg %p241
        %p512 = pneg %p238
        %p513 = pneg %p262
        %p514 = pneg %p259
        %p515 = pneg %p283
        %p516 = pneg %p280
        %p517 = pneg %p304
        %p518 = pneg %p301
        %p519 = pneg %p325
        %p520 = pneg %p322
        %p521 = pneg %p346
        %p522 = pneg %p343
        %p523 = pneg %p372
        %p524 = pneg %p369
        %s525 = sand.u32 %s359, 1
        %s526 = scalar_lea.sflag [#allocation4], %s525
        %s527 = sand.u32 %s359, 1
        %s528 = scalar_lea.vmem [#allocation8], %s527
        %p529 = scmp.lt.s32.totalorder %s31, 1
        %s530 = scalar_select %p529, %s31, 1
        %s531 = smul.addr %s530, 8
        %s532 = scalar_lea.vmem %s0, %s531
        %v534 = vld [vmem:[%s10] sm:$0xf]
        %v535 = vld [vmem:[%s10 + $0x4] sm:$0xf]
        %v536 = vld [vmem:[%s10 + $0x8] sm:$0xf]
        %v537 = vld [vmem:[%s10 + $0xc] sm:$0x1]
        %v538 = vld [vmem:[%s11] sm:$0xf]
        %v539 = vld [vmem:[%s11 + $0x4] sm:$0xf]
        %v540 = vld [vmem:[%s11 + $0x8] sm:$0xf]
        %v541 = vld [vmem:[%s11 + $0xc] sm:$0xf]
        %v542 = vld [vmem:[%s11 + $0x10] sm:$0xf]
        %v543 = vld [vmem:[%s11 + $0x14] sm:$0xf]
        %v544 = vld [vmem:[%s11 + $0x18] sm:$0xf]
        %v545 = vld [vmem:[%s11 + $0x1c] sm:$0xf]
        %v546 = vld [vmem:[%s11 + $0x20] sm:$0xf]
        %v547 = vld [vmem:[%s11 + $0x24] sm:$0xf]
        %v548 = vld [vmem:[%s11 + $0x28] sm:$0xf]
        %v549 = vld [vmem:[%s11 + $0x2c] sm:$0xf]
        %v550 = vld [vmem:[%s11 + $0x30] sm:$0xf]
        %v551 = vld [vmem:[%s11 + $0x34] sm:$0xf]
        %v552 = vld [vmem:[%s11 + $0x38] sm:$0xf]
        %v553 = vld [vmem:[%s11 + $0x3c] sm:$0xf]
        %v554 = vld [vmem:[%s12] sm:$0xf]
        %v555 = vld [vmem:[%s12 + $0x4] sm:$0xf]
        %v556 = vld [vmem:[%s12 + $0x8] sm:$0xf]
        %v557 = vld [vmem:[%s12 + $0xc] sm:$0xf]
        %v558 = vld [vmem:[%s12 + $0x10] sm:$0xf]
        %v559 = vld [vmem:[%s12 + $0x14] sm:$0xf]
        %v560 = vld [vmem:[%s12 + $0x18] sm:$0xf]
        %v561 = vld [vmem:[%s12 + $0x1c] sm:$0xf]
        %v562 = vld [vmem:[%s13] sm:$0xf]
        %v563 = vld [vmem:[%s13 + $0x4] sm:$0xf]
        %v564 = vld [vmem:[%s13 + $0x8] sm:$0xf]
        %v565 = vld [vmem:[%s13 + $0xc] sm:$0xf]
        %v566 = vld [vmem:[%s13 + $0x10] sm:$0xf]
        %v567 = vld [vmem:[%s13 + $0x14] sm:$0xf]
        %v568 = vld [vmem:[%s13 + $0x18] sm:$0xf]
        %v569 = vld [vmem:[%s13 + $0x1c] sm:$0xf]
        %v570 = vld [vmem:[%s8] sm:$0x3]
        %v571 = vld [vmem:[%s9] sm:$0x3]
        %v572 = vld [vmem:[%s532] sm:$0xff]
        %v573 = vpack.c.bf16 %v572, %v572
        %v574 = vld [vmem:[%s1] sm:$0xf]
        %v575 = vld [vmem:[%s1 + $0x4] sm:$0xf]
        %v576 = vld [vmem:[%s1 + $0x8] sm:$0xf]
        %v577 = vld [vmem:[%s1 + $0xc] sm:$0xf]
        %v578 = vld [vmem:[%s1 + $0x10] sm:$0xf]
        %v579 = vld [vmem:[%s1 + $0x14] sm:$0xf]
        %v580 = vld [vmem:[%s1 + $0x18] sm:$0xf]
        %v581 = vld [vmem:[%s1 + $0x1c] sm:$0xf]
        %v582 = vld [vmem:[%s2] sm:$0x1]
        %v584 = vlaneseq
        %v585 = vshrl.u32 %v584, 7
        %v586 = vsub.s32 0, %v585
        %v587 = vrot.slane %v582, %v586
        %v597 = vunpack.c.l.b16 %v574
        %v598 = vunpack.c.l.b16 %v575
        %v599 = vunpack.c.l.b16 %v576
        %v600 = vunpack.c.l.b16 %v577
        %v601 = vunpack.c.l.b16 %v578
        %v602 = vunpack.c.l.b16 %v579
        %v603 = vunpack.c.l.b16 %v580
        %v604 = vunpack.c.l.b16 %v581
        %v605 = vpack.c.b16 %v598, %v597
        %v606 = vpack.c.b16 %v600, %v599
        %v607 = vpack.c.b16 %v602, %v601
        %v608 = vpack.c.b16 %v604, %v603
        %vm613 = vcmask 523264
        %v615 = vsel %vm613, %v573, 0
        %617 = vmatprep.subr.bf16.mxu0 0
        %618 = vmatpush1.bf16.msra.mxu0 %v605
        %619 = vmatprep.subr.bf16.mxu0 0
        %620 = vmatpush1.bf16.msra.mxu0 %v606
        %621 = vmatprep.subr.bf16.mxu0 0
        %622 = vmatpush1.bf16.msra.mxu0 %v607
        %623 = vmatprep.subr.bf16.mxu0 0
        %624 = vmatpush1.bf16.msra.mxu0 %v608
        %625 = vmatprep.subr.bf16.mxu0 0
        %626 = vmatpush1.bf16.msra.mxu0 0
        %627 = vmatprep.subr.bf16.mxu0 0
        %628 = vmatpush1.bf16.msra.mxu0 0
        %629 = vmatprep.subr.bf16.mxu0 0
        %630 = vmatpush1.bf16.msra.mxu0 0
        %631 = vmatprep.subr.bf16.mxu0 0
        %632 = vmatpush1.bf16.msra.mxu0 0
        %633 = vmatprep.subr.bf16.mxu0 0
        %634 = vmatpush1.bf16.msra.mxu0 0
        %635 = vmatprep.subr.bf16.mxu0 0
        %636 = vmatpush1.bf16.msra.mxu0 0
        %637 = vmatprep.subr.bf16.mxu0 0
        %638 = vmatpush1.bf16.msra.mxu0 0
        %639 = vmatprep.subr.bf16.mxu0 0
        %640 = vmatpush1.bf16.msra.mxu0 0
        %641 = vmatprep.subr.bf16.mxu0 0
        %642 = vmatpush1.bf16.msra.mxu0 0
        %643 = vmatprep.subr.bf16.mxu0 0
        %644 = vmatpush1.bf16.msra.mxu0 0
        %645 = vmatprep.subr.bf16.mxu0 0
        %646 = vmatpush1.bf16.msra.mxu0 0
        %647 = vmatprep.subr.bf16.mxu0 0
        %648 = vmatpush1.bf16.msra.mxu0 0
        %649 = vmatprep.mubr.bf16.mxu0 0
        %650 = vmatmul.mubr.bf16.gmra.mrb[0].mxu0 %v615
        %v651 = vpop.f32.mrb[0].mxu0
        %v652 = vadd.f32 %v587, %v651
        %v653 = vpop.f32.mrb[0].mxu0
        %v654 = vpop.f32.mrb[0].mxu0
        %v655 = vpop.f32.mrb[0].mxu0
        %656 = vdwg.mxu0
        %v657 = vpack.c.bf16 %v652, %v652
        %v674 = vunpack.c.l.b16 %v538
        %v675 = vunpack.c.l.b16 %v539
        %v676 = vunpack.c.l.b16 %v540
        %v677 = vunpack.c.l.b16 %v541
        %v678 = vunpack.c.l.b16 %v542
        %v679 = vunpack.c.l.b16 %v543
        %v680 = vunpack.c.l.b16 %v544
        %v681 = vunpack.c.l.b16 %v545
        %v682 = vunpack.c.l.b16 %v546
        %v683 = vunpack.c.l.b16 %v547
        %v684 = vunpack.c.l.b16 %v548
        %v685 = vunpack.c.l.b16 %v549
        %v686 = vunpack.c.l.b16 %v550
        %v687 = vunpack.c.l.b16 %v551
        %v688 = vunpack.c.l.b16 %v552
        %v689 = vunpack.c.l.b16 %v553
        %v690 = vpack.c.b16 %v675, %v674
        %v691 = vpack.c.b16 %v677, %v676
        %v692 = vpack.c.b16 %v679, %v678
        %v693 = vpack.c.b16 %v681, %v680
        %v694 = vpack.c.b16 %v683, %v682
        %v695 = vpack.c.b16 %v685, %v684
        %v696 = vpack.c.b16 %v687, %v686
        %v697 = vpack.c.b16 %v689, %v688
        %vm698 = vcmask 64512
        %v700 = vsel %vm698, %v690, 0
        %v703 = vsel %vm698, %v691, 0
        %v706 = vsel %vm698, %v692, 0
        %v709 = vsel %vm698, %v693, 0
        %v712 = vsel %vm698, %v694, 0
        %v715 = vsel %vm698, %v695, 0
        %v718 = vsel %vm698, %v696, 0
        %v721 = vsel %vm698, %v697, 0
        %vm723 = vcmask 1043456
        %v725 = vsel %vm723, %v657, 0
        %727 = vmatprep.subr.bf16.mxu0 0
        %728 = vmatpush1.bf16.msra.mxu0 %v725
        %729 = vmatprep.subr.bf16.mxu0 0
        %730 = vmatpush1.bf16.msra.mxu0 0
        %731 = vmatprep.subr.bf16.mxu0 0
        %732 = vmatpush1.bf16.msra.mxu0 0
        %733 = vmatprep.subr.bf16.mxu0 0
        %734 = vmatpush1.bf16.msra.mxu0 0
        %735 = vmatprep.subr.bf16.mxu0 0
        %736 = vmatpush1.bf16.msra.mxu0 0
        %737 = vmatprep.subr.bf16.mxu0 0
        %738 = vmatpush1.bf16.msra.mxu0 0
        %739 = vmatprep.subr.bf16.mxu0 0
        %740 = vmatpush1.bf16.msra.mxu0 0
        %741 = vmatprep.subr.bf16.mxu0 0
        %742 = vmatpush1.bf16.msra.mxu0 0
        %743 = vmatprep.subr.bf16.mxu0 0
        %744 = vmatpush1.bf16.msra.mxu0 0
        %745 = vmatprep.subr.bf16.mxu0 0
        %746 = vmatpush1.bf16.msra.mxu0 0
        %747 = vmatprep.subr.bf16.mxu0 0
        %748 = vmatpush1.bf16.msra.mxu0 0
        %749 = vmatprep.subr.bf16.mxu0 0
        %750 = vmatpush1.bf16.msra.mxu0 0
        %751 = vmatprep.subr.bf16.mxu0 0
        %752 = vmatpush1.bf16.msra.mxu0 0
        %753 = vmatprep.subr.bf16.mxu0 0
        %754 = vmatpush1.bf16.msra.mxu0 0
        %755 = vmatprep.subr.bf16.mxu0 0
        %756 = vmatpush1.bf16.msra.mxu0 0
        %757 = vmatprep.subr.bf16.mxu0 0
        %758 = vmatpush1.bf16.msra.mxu0 0
        %759 = vmatprep.mubr.bf16.mxu0 0
        %760 = vmatmul.mubr.bf16.gmra.mrb[0].mxu0 %v700
        %v761 = vpop.f32.mrb[0].mxu0
        %v762 = vadd.f32 0.0, %v761
        %v763 = vpop.f32.mrb[0].mxu0
        %v764 = vpop.f32.mrb[0].mxu0
        %v765 = vadd.f32 0.0, %v764
        %v766 = vpop.f32.mrb[0].mxu0
        %767 = vmatprep.mubr.bf16.mxu0 0
        %768 = vmatmul.mubr.bf16.gmra.mrb[0].mxu0 %v703
        %v769 = vpop.f32.mrb[0].mxu0
        %v770 = vadd.f32 0.0, %v769
        %v771 = vpop.f32.mrb[0].mxu0
        %v772 = vpop.f32.mrb[0].mxu0
        %v773 = vadd.f32 0.0, %v772
        %v774 = vpop.f32.mrb[0].mxu0
        %775 = vmatprep.mubr.bf16.mxu0 0
        %776 = vmatmul.mubr.bf16.gmra.mrb[0].mxu0 %v706
        %v777 = vpop.f32.mrb[0].mxu0
        %v778 = vadd.f32 0.0, %v777
        %v779 = vpop.f32.mrb[0].mxu0
        %v780 = vpop.f32.mrb[0].mxu0
        %v781 = vadd.f32 0.0, %v780
        %v782 = vpop.f32.mrb[0].mxu0
        %783 = vmatprep.mubr.bf16.mxu0 0
        %784 = vmatmul.mubr.bf16.gmra.mrb[0].mxu0 %v709
        %v785 = vpop.f32.mrb[0].mxu0
        %v786 = vadd.f32 0.0, %v785
        %v787 = vpop.f32.mrb[0].mxu0
        %v788 = vpop.f32.mrb[0].mxu0
        %v789 = vadd.f32 0.0, %v788
        %v790 = vpop.f32.mrb[0].mxu0
        %791 = vmatprep.mubr.bf16.mxu0 0
        %792 = vmatmul.mubr.bf16.gmra.mrb[0].mxu0 %v712
        %v793 = vpop.f32.mrb[0].mxu0
        %v794 = vadd.f32 0.0, %v793
        %v795 = vpop.f32.mrb[0].mxu0
        %v796 = vpop.f32.mrb[0].mxu0
        %v797 = vadd.f32 0.0, %v796
        %v798 = vpop.f32.mrb[0].mxu0
        %799 = vmatprep.mubr.bf16.mxu0 0
        %800 = vmatmul.mubr.bf16.gmra.mrb[0].mxu0 %v715
        %v801 = vpop.f32.mrb[0].mxu0
        %v802 = vadd.f32 0.0, %v801
        %v803 = vpop.f32.mrb[0].mxu0
        %v804 = vpop.f32.mrb[0].mxu0
        %v805 = vadd.f32 0.0, %v804
        %v806 = vpop.f32.mrb[0].mxu0
        %807 = vmatprep.mubr.bf16.mxu0 0
        %808 = vmatmul.mubr.bf16.gmra.mrb[0].mxu0 %v718
        %v809 = vpop.f32.mrb[0].mxu0
        %v810 = vadd.f32 0.0, %v809
        %v811 = vpop.f32.mrb[0].mxu0
        %v812 = vpop.f32.mrb[0].mxu0
        %v813 = vadd.f32 0.0, %v812
        %v814 = vpop.f32.mrb[0].mxu0
        %815 = vmatprep.mubr.bf16.mxu0 0
        %816 = vmatmul.mubr.bf16.gmra.mrb[0].mxu0 %v721
        %v817 = vpop.f32.mrb[0].mxu0
        %v818 = vadd.f32 0.0, %v817
        %v819 = vpop.f32.mrb[0].mxu0
        %v820 = vpop.f32.mrb[0].mxu0
        %v821 = vadd.f32 0.0, %v820
        %v822 = vpop.f32.mrb[0].mxu0
        %823 = vdwg.mxu0
        %v824 = vmul.f32 %v762, %v794
        %v825 = vmul.f32 %v765, %v797
        %v826 = vmul.f32 %v770, %v802
        %v827 = vmul.f32 %v773, %v805
        %v828 = vmul.f32 %v778, %v810
        %v829 = vmul.f32 %v781, %v813
        %v830 = vmul.f32 %v786, %v818
        %v831 = vmul.f32 %v789, %v821
        %v832 = vpack.c.bf16 %v825, %v824
        %v833 = vpack.c.bf16 %v827, %v826
        %v834 = vpack.c.bf16 %v829, %v828
        %v835 = vpack.c.bf16 %v831, %v830
        %v840 = vunpack.c.l.b16 %v534
        %v841 = vunpack.c.l.b16 %v535
        %v842 = vunpack.c.l.b16 %v536
        %v843 = vunpack.c.l.b16 %v537
        %v844 = vpack.c.b16 %v841, %v840
        %v845 = vpack.c.b16 %v843, %v842
        %v847 = vsel %vm613, %v844, 0
        %v850 = vsel %vm613, %v845, 0
        %852 = vmatprep.subr.bf16.mxu0 0
        %853 = vmatpush1.bf16.msra.mxu0 %v832
        %854 = vmatprep.subr.bf16.mxu0 0
        %855 = vmatpush1.bf16.msra.mxu0 %v833
        %856 = vmatprep.subr.bf16.mxu0 0
        %857 = vmatpush1.bf16.msra.mxu0 %v834
        %858 = vmatprep.subr.bf16.mxu0 0
        %859 = vmatpush1.bf16.msra.mxu0 %v835
        %860 = vmatprep.subr.bf16.mxu0 0
        %861 = vmatpush1.bf16.msra.mxu0 0
        %862 = vmatprep.subr.bf16.mxu0 0
        %863 = vmatpush1.bf16.msra.mxu0 0
        %864 = vmatprep.subr.bf16.mxu0 0
        %865 = vmatpush1.bf16.msra.mxu0 0
        %866 = vmatprep.subr.bf16.mxu0 0
        %867 = vmatpush1.bf16.msra.mxu0 0
        %868 = vmatprep.subr.bf16.mxu0 0
        %869 = vmatpush1.bf16.msra.mxu0 0
        %870 = vmatprep.subr.bf16.mxu0 0
        %871 = vmatpush1.bf16.msra.mxu0 0
        %872 = vmatprep.subr.bf16.mxu0 0
        %873 = vmatpush1.bf16.msra.mxu0 0
        %874 = vmatprep.subr.bf16.mxu0 0
        %875 = vmatpush1.bf16.msra.mxu0 0
        %876 = vmatprep.subr.bf16.mxu0 0
        %877 = vmatpush1.bf16.msra.mxu0 0
        %878 = vmatprep.subr.bf16.mxu0 0
        %879 = vmatpush1.bf16.msra.mxu0 0
        %880 = vmatprep.subr.bf16.mxu0 0
        %881 = vmatpush1.bf16.msra.mxu0 0
        %882 = vmatprep.subr.bf16.mxu0 0
        %883 = vmatpush1.bf16.msra.mxu0 0
        %884 = vmatprep.mubr.bf16.mxu0 0
        %885 = vmatmul.mubr.bf16.gmra.mrb[0].mxu0 %v847
        %v886 = vpop.f32.mrb[0].mxu0
        %v887 = vadd.f32 0.0, %v886
        %v888 = vpop.f32.mrb[0].mxu0
        %v889 = vpop.f32.mrb[0].mxu0
        %v890 = vadd.f32 0.0, %v889
        %v891 = vpop.f32.mrb[0].mxu0
        %892 = vmatprep.mubr.bf16.mxu0 0
        %893 = vmatmul.mubr.bf16.gmra.mrb[0].mxu0 %v850
        %v894 = vpop.f32.mrb[0].mxu0
        %v895 = vadd.f32 0.0, %v894
        %v896 = vpop.f32.mrb[0].mxu0
        %v897 = vpop.f32.mrb[0].mxu0
        %v898 = vadd.f32 0.0, %v897
        %v899 = vpop.f32.mrb[0].mxu0
        %900 = vdwg.mxu0
        %v901 = vpack.c.bf16 %v895, %v895
        %v902 = vpack.c.bf16 %v887, %v887
        %v903 = vpack.c.bf16 %v890, %v890
        %v904 = vld [vmem:[#allocation2] sm:$0xff]
        %v905 = vld [vmem:[#allocation2 + $0x8] sm:$0xf]
        %v906 = vld [vmem:[#allocation2 + $0xc] sm:$0xff]
        %v907 = vld [vmem:[#allocation2 + $0x14] sm:$0xf]
        %v908 = vld [vmem:[#allocation2 + $0x18] sm:$0xff]
        %v909 = vld [vmem:[#allocation2 + $0x20] sm:$0xf]
        %v910 = vld [vmem:[#allocation2 + $0x24] sm:$0xff]
        %v911 = vld [vmem:[#allocation2 + $0x2c] sm:$0xf]
        %v912 = vld [vmem:[#allocation2 + $0x30] sm:$0xff]
        %v913 = vld [vmem:[#allocation2 + $0x38] sm:$0xf]
        %v914 = vld [vmem:[#allocation2 + $0x3c] sm:$0xff]
        %v915 = vld [vmem:[#allocation2 + $0x44] sm:$0xf]
        %v916 = vld [vmem:[#allocation2 + $0x48] sm:$0xff]
        %v917 = vld [vmem:[#allocation2 + $0x50] sm:$0xf]
        %v918 = vld [vmem:[#allocation2 + $0x54] sm:$0xff]
        %v919 = vld [vmem:[#allocation2 + $0x5c] sm:$0xf]
        %v920 = vld [vmem:[#allocation2 + $0x60] sm:$0xff]
        %v921 = vld [vmem:[#allocation2 + $0x68] sm:$0xf]
        %v922 = vld [vmem:[#allocation2 + $0x6c] sm:$0xff]
        %v923 = vld [vmem:[#allocation2 + $0x74] sm:$0xf]
        %v924 = vld [vmem:[#allocation2 + $0x78] sm:$0xff]
        %v925 = vld [vmem:[#allocation2 + $0x80] sm:$0xf]
        %v926 = vld [vmem:[#allocation2 + $0x84] sm:$0xff]
        %v927 = vld [vmem:[#allocation2 + $0x8c] sm:$0xf]
        %v928 = vld [vmem:[#allocation2 + $0x90] sm:$0xff]
        %v929 = vld [vmem:[#allocation2 + $0x98] sm:$0xf]
        %v930 = vld [vmem:[#allocation2 + $0x9c] sm:$0xff]
        %v931 = vld [vmem:[#allocation2 + $0xa4] sm:$0xf]
        %v932 = vld [vmem:[#allocation2 + $0xa8] sm:$0xff]
        %v933 = vld [vmem:[#allocation2 + $0xb0] sm:$0xf]
        %v934 = vld [vmem:[#allocation2 + $0xb4] sm:$0xff]
        %v935 = vld [vmem:[#allocation2 + $0xbc] sm:$0xf]
        %v936 = vld [vmem:[#allocation2 + $0xc0] sm:$0xff]
        %v937 = vld [vmem:[#allocation2 + $0xc8] sm:$0xf]
        %v938 = vld [vmem:[#allocation2 + $0xcc] sm:$0xff]
        %v939 = vld [vmem:[#allocation2 + $0xd4] sm:$0xf]
        %v940 = vld [vmem:[#allocation2 + $0xd8] sm:$0xff]
        %v941 = vld [vmem:[#allocation2 + $0xe0] sm:$0xf]
        %v942 = vld [vmem:[#allocation2 + $0xe4] sm:$0xff]
        %v943 = vld [vmem:[#allocation2 + $0xec] sm:$0xf]
        %v944 = vld [vmem:[#allocation2 + $0xf0] sm:$0xff]
        %v945 = vld [vmem:[#allocation2 + $0xf8] sm:$0xf]
        %v946 = vld [vmem:[#allocation2 + $0xfc] sm:$0xff]
        %v947 = vld [vmem:[#allocation2 + $0x104] sm:$0xf]
        %v948 = vld [vmem:[#allocation2 + $0x108] sm:$0xff]
        %v949 = vld [vmem:[#allocation2 + $0x110] sm:$0xf]
        %v950 = vld [vmem:[#allocation2 + $0x114] sm:$0xff]
        %v951 = vld [vmem:[#allocation2 + $0x11c] sm:$0xf]
        %v952 = vld [vmem:[#allocation2 + $0x120] sm:$0xff]
        %v953 = vld [vmem:[#allocation2 + $0x128] sm:$0xf]
        %v954 = vld [vmem:[#allocation2 + $0x12c] sm:$0xff]
        %v955 = vld [vmem:[#allocation2 + $0x134] sm:$0xf]
        %v956 = vld [vmem:[#allocation2 + $0x138] sm:$0xff]
        %v957 = vld [vmem:[#allocation2 + $0x140] sm:$0xf]
        %v958 = vld [vmem:[#allocation2 + $0x144] sm:$0xff]
        %v959 = vld [vmem:[#allocation2 + $0x14c] sm:$0xf]
        %v960 = vld [vmem:[#allocation2 + $0x150] sm:$0xff]
        %v961 = vld [vmem:[#allocation2 + $0x158] sm:$0xf]
        %v962 = vld [vmem:[#allocation2 + $0x15c] sm:$0xff]
        %v963 = vld [vmem:[#allocation2 + $0x164] sm:$0xf]
        %v964 = vld [vmem:[#allocation2 + $0x168] sm:$0xff]
        %v965 = vld [vmem:[#allocation2 + $0x170] sm:$0xf]
        %v966 = vld [vmem:[#allocation2 + $0x174] sm:$0xff]
        %v967 = vld [vmem:[#allocation2 + $0x17c] sm:$0xf]
        %v968 = vld [vmem:[#allocation2 + $0x180] sm:$0xff]
        %v969 = vld [vmem:[#allocation2 + $0x188] sm:$0xf]
        %v970 = vld [vmem:[#allocation2 + $0x18c] sm:$0xff]
        %v971 = vld [vmem:[#allocation2 + $0x194] sm:$0xf]
        %v972 = vld [vmem:[#allocation2 + $0x198] sm:$0xff]
        %v973 = vld [vmem:[#allocation2 + $0x1a0] sm:$0xf]
        %v974 = vld [vmem:[#allocation2 + $0x1a4] sm:$0xff]
        %v975 = vld [vmem:[#allocation2 + $0x1ac] sm:$0xf]
        %v976 = vld [vmem:[#allocation2 + $0x1b0] sm:$0xff]
        %v977 = vld [vmem:[#allocation2 + $0x1b8] sm:$0xf]
        %v978 = vld [vmem:[#allocation2 + $0x1bc] sm:$0xff]
        %v979 = vld [vmem:[#allocation2 + $0x1c4] sm:$0xf]
        %v980 = vld [vmem:[#allocation2 + $0x1c8] sm:$0xff]
        %v981 = vld [vmem:[#allocation2 + $0x1d0] sm:$0xf]
        %v982 = vld [vmem:[#allocation2 + $0x1d4] sm:$0xff]
        %v983 = vld [vmem:[#allocation2 + $0x1dc] sm:$0xf]
        %v984 = vld [vmem:[#allocation2 + $0x1e0] sm:$0xff]
        %v985 = vld [vmem:[#allocation2 + $0x1e8] sm:$0xf]
        %v986 = vld [vmem:[#allocation2 + $0x1ec] sm:$0xff]
        %v987 = vld [vmem:[#allocation2 + $0x1f4] sm:$0xf]
        %v988 = vld [vmem:[#allocation2 + $0x1f8] sm:$0xff]
        %v989 = vld [vmem:[#allocation2 + $0x200] sm:$0xf]
        %v990 = vld [vmem:[#allocation2 + $0x204] sm:$0xff]
        %v991 = vld [vmem:[#allocation2 + $0x20c] sm:$0xf]
        %v992 = vld [vmem:[#allocation2 + $0x210] sm:$0xff]
        %v993 = vld [vmem:[#allocation2 + $0x218] sm:$0xf]
        %v994 = vld [vmem:[#allocation2 + $0x21c] sm:$0xff]
        %v995 = vld [vmem:[#allocation2 + $0x224] sm:$0xf]
        %v996 = vld [vmem:[#allocation2 + $0x228] sm:$0xff]
        %v997 = vld [vmem:[#allocation2 + $0x230] sm:$0xf]
        %v998 = vld [vmem:[#allocation2 + $0x234] sm:$0xff]
        %v999 = vld [vmem:[#allocation2 + $0x23c] sm:$0xf]
        %v1096 = vunpack.c.l.b16 %v904
        %v1097 = vunpack.c.h.b16 %v904
        %v1098 = vunpack.c.l.b16 %v905
        %v1099 = vunpack.c.l.b16 %v906
        %v1100 = vunpack.c.h.b16 %v906
        %v1101 = vunpack.c.l.b16 %v907
        %v1102 = vunpack.c.l.b16 %v908
        %v1103 = vunpack.c.h.b16 %v908
        %v1104 = vunpack.c.l.b16 %v909
        %v1105 = vunpack.c.l.b16 %v910
        %v1106 = vunpack.c.h.b16 %v910
        %v1107 = vunpack.c.l.b16 %v911
        %v1108 = vunpack.c.l.b16 %v912
        %v1109 = vunpack.c.h.b16 %v912
        %v1110 = vunpack.c.l.b16 %v913
        %v1111 = vunpack.c.l.b16 %v914
        %v1112 = vunpack.c.h.b16 %v914
        %v1113 = vunpack.c.l.b16 %v915
        %v1114 = vunpack.c.l.b16 %v916
        %v1115 = vunpack.c.h.b16 %v916
        %v1116 = vunpack.c.l.b16 %v917
        %v1117 = vunpack.c.l.b16 %v918
        %v1118 = vunpack.c.h.b16 %v918
        %v1119 = vunpack.c.l.b16 %v919
        %v1120 = vunpack.c.l.b16 %v920
        %v1121 = vunpack.c.h.b16 %v920
        %v1122 = vunpack.c.l.b16 %v921
        %v1123 = vunpack.c.l.b16 %v922
        %v1124 = vunpack.c.h.b16 %v922
        %v1125 = vunpack.c.l.b16 %v923
        %v1126 = vunpack.c.l.b16 %v924
        %v1127 = vunpack.c.h.b16 %v924
        %v1128 = vunpack.c.l.b16 %v925
        %v1129 = vunpack.c.l.b16 %v926
        %v1130 = vunpack.c.h.b16 %v926
        %v1131 = vunpack.c.l.b16 %v927
        %v1132 = vunpack.c.l.b16 %v928
        %v1133 = vunpack.c.h.b16 %v928
        %v1134 = vunpack.c.l.b16 %v929
        %v1135 = vunpack.c.l.b16 %v930
        %v1136 = vunpack.c.h.b16 %v930
        %v1137 = vunpack.c.l.b16 %v931
        %v1138 = vunpack.c.l.b16 %v932
        %v1139 = vunpack.c.h.b16 %v932
        %v1140 = vunpack.c.l.b16 %v933
        %v1141 = vunpack.c.l.b16 %v934
        %v1142 = vunpack.c.h.b16 %v934
        %v1143 = vunpack.c.l.b16 %v935
        %v1144 = vunpack.c.l.b16 %v936
        %v1145 = vunpack.c.h.b16 %v936
        %v1146 = vunpack.c.l.b16 %v937
        %v1147 = vunpack.c.l.b16 %v938
        %v1148 = vunpack.c.h.b16 %v938
        %v1149 = vunpack.c.l.b16 %v939
        %v1150 = vunpack.c.l.b16 %v940
        %v1151 = vunpack.c.h.b16 %v940
        %v1152 = vunpack.c.l.b16 %v941
        %v1153 = vunpack.c.l.b16 %v942
        %v1154 = vunpack.c.h.b16 %v942
        %v1155 = vunpack.c.l.b16 %v943
        %v1156 = vunpack.c.l.b16 %v944
        %v1157 = vunpack.c.h.b16 %v944
        %v1158 = vunpack.c.l.b16 %v945
        %v1159 = vunpack.c.l.b16 %v946
        %v1160 = vunpack.c.h.b16 %v946
        %v1161 = vunpack.c.l.b16 %v947
        %v1162 = vunpack.c.l.b16 %v948
        %v1163 = vunpack.c.h.b16 %v948
        %v1164 = vunpack.c.l.b16 %v949
        %v1165 = vunpack.c.l.b16 %v950
        %v1166 = vunpack.c.h.b16 %v950
        %v1167 = vunpack.c.l.b16 %v951
        %v1168 = vunpack.c.l.b16 %v952
        %v1169 = vunpack.c.h.b16 %v952
        %v1170 = vunpack.c.l.b16 %v953
        %v1171 = vunpack.c.l.b16 %v954
        %v1172 = vunpack.c.h.b16 %v954
        %v1173 = vunpack.c.l.b16 %v955
        %v1174 = vunpack.c.l.b16 %v956
        %v1175 = vunpack.c.h.b16 %v956
        %v1176 = vunpack.c.l.b16 %v957
        %v1177 = vunpack.c.l.b16 %v958
        %v1178 = vunpack.c.h.b16 %v958
        %v1179 = vunpack.c.l.b16 %v959
        %v1180 = vunpack.c.l.b16 %v960
        %v1181 = vunpack.c.h.b16 %v960
        %v1182 = vunpack.c.l.b16 %v961
        %v1183 = vunpack.c.l.b16 %v962
        %v1184 = vunpack.c.h.b16 %v962
        %v1185 = vunpack.c.l.b16 %v963
        %v1186 = vunpack.c.l.b16 %v964
        %v1187 = vunpack.c.h.b16 %v964
        %v1188 = vunpack.c.l.b16 %v965
        %v1189 = vunpack.c.l.b16 %v966
        %v1190 = vunpack.c.h.b16 %v966
        %v1191 = vunpack.c.l.b16 %v967
        %v1192 = vunpack.c.l.b16 %v968
        %v1193 = vunpack.c.h.b16 %v968
        %v1194 = vunpack.c.l.b16 %v969
        %v1195 = vunpack.c.l.b16 %v970
        %v1196 = vunpack.c.h.b16 %v970
        %v1197 = vunpack.c.l.b16 %v971
        %v1198 = vunpack.c.l.b16 %v972
        %v1199 = vunpack.c.h.b16 %v972
        %v1200 = vunpack.c.l.b16 %v973
        %v1201 = vunpack.c.l.b16 %v974
        %v1202 = vunpack.c.h.b16 %v974
        %v1203 = vunpack.c.l.b16 %v975
        %v1204 = vunpack.c.l.b16 %v976
        %v1205 = vunpack.c.h.b16 %v976
        %v1206 = vunpack.c.l.b16 %v977
        %v1207 = vunpack.c.l.b16 %v978
        %v1208 = vunpack.c.h.b16 %v978
        %v1209 = vunpack.c.l.b16 %v979
        %v1210 = vunpack.c.l.b16 %v980
        %v1211 = vunpack.c.h.b16 %v980
        %v1212 = vunpack.c.l.b16 %v981
        %v1213 = vunpack.c.l.b16 %v982
        %v1214 = vunpack.c.h.b16 %v982
        %v1215 = vunpack.c.l.b16 %v983
        %v1216 = vunpack.c.l.b16 %v984
        %v1217 = vunpack.c.h.b16 %v984
        %v1218 = vunpack.c.l.b16 %v985
        %v1219 = vunpack.c.l.b16 %v986
        %v1220 = vunpack.c.h.b16 %v986
        %v1221 = vunpack.c.l.b16 %v987
        %v1222 = vunpack.c.l.b16 %v988
        %v1223 = vunpack.c.h.b16 %v988
        %v1224 = vunpack.c.l.b16 %v989
        %v1225 = vunpack.c.l.b16 %v990
        %v1226 = vunpack.c.h.b16 %v990
        %v1227 = vunpack.c.l.b16 %v991
        %v1228 = vunpack.c.l.b16 %v992
        %v1229 = vunpack.c.h.b16 %v992
        %v1230 = vunpack.c.l.b16 %v993
        %v1231 = vunpack.c.l.b16 %v994
        %v1232 = vunpack.c.h.b16 %v994
        %v1233 = vunpack.c.l.b16 %v995
        %v1234 = vunpack.c.l.b16 %v996
        %v1235 = vunpack.c.h.b16 %v996
        %v1236 = vunpack.c.l.b16 %v997
        %v1237 = vunpack.c.l.b16 %v998
        %v1238 = vunpack.c.h.b16 %v998
        %v1239 = vunpack.c.l.b16 %v999
        %v1240 = vpack.c.b16 %v1099, %v1096
        %v1241 = vpack.c.b16 %v1100, %v1097
        %v1242 = vpack.c.b16 %v1101, %v1098
        %v1243 = vpack.c.b16 %v1105, %v1102
        %v1244 = vpack.c.b16 %v1106, %v1103
        %v1245 = vpack.c.b16 %v1107, %v1104
        %v1246 = vpack.c.b16 %v1111, %v1108
        %v1247 = vpack.c.b16 %v1112, %v1109
        %v1248 = vpack.c.b16 %v1113, %v1110
        %v1249 = vpack.c.b16 %v1117, %v1114
        %v1250 = vpack.c.b16 %v1118, %v1115
        %v1251 = vpack.c.b16 %v1119, %v1116
        %v1252 = vpack.c.b16 %v1123, %v1120
        %v1253 = vpack.c.b16 %v1124, %v1121
        %v1254 = vpack.c.b16 %v1125, %v1122
        %v1255 = vpack.c.b16 %v1129, %v1126
        %v1256 = vpack.c.b16 %v1130, %v1127
        %v1257 = vpack.c.b16 %v1131, %v1128
        %v1258 = vpack.c.b16 %v1135, %v1132
        %v1259 = vpack.c.b16 %v1136, %v1133
        %v1260 = vpack.c.b16 %v1137, %v1134
        %v1261 = vpack.c.b16 %v1141, %v1138
        %v1262 = vpack.c.b16 %v1142, %v1139
        %v1263 = vpack.c.b16 %v1143, %v1140
        %v1264 = vpack.c.b16 %v1147, %v1144
        %v1265 = vpack.c.b16 %v1148, %v1145
        %v1266 = vpack.c.b16 %v1149, %v1146
        %v1267 = vpack.c.b16 %v1153, %v1150
        %v1268 = vpack.c.b16 %v1154, %v1151
        %v1269 = vpack.c.b16 %v1155, %v1152
        %v1270 = vpack.c.b16 %v1159, %v1156
        %v1271 = vpack.c.b16 %v1160, %v1157
        %v1272 = vpack.c.b16 %v1161, %v1158
        %v1273 = vpack.c.b16 %v1165, %v1162
        %v1274 = vpack.c.b16 %v1166, %v1163
        %v1275 = vpack.c.b16 %v1167, %v1164
        %v1276 = vpack.c.b16 %v1171, %v1168
        %v1277 = vpack.c.b16 %v1172, %v1169
        %v1278 = vpack.c.b16 %v1173, %v1170
        %v1279 = vpack.c.b16 %v1177, %v1174
        %v1280 = vpack.c.b16 %v1178, %v1175
        %v1281 = vpack.c.b16 %v1179, %v1176
        %v1282 = vpack.c.b16 %v1183, %v1180
        %v1283 = vpack.c.b16 %v1184, %v1181
        %v1284 = vpack.c.b16 %v1185, %v1182
        %v1285 = vpack.c.b16 %v1189, %v1186
        %v1286 = vpack.c.b16 %v1190, %v1187
        %v1287 = vpack.c.b16 %v1191, %v1188
        %v1288 = vpack.c.b16 %v1195, %v1192
        %v1289 = vpack.c.b16 %v1196, %v1193
        %v1290 = vpack.c.b16 %v1197, %v1194
        %v1291 = vpack.c.b16 %v1201, %v1198
        %v1292 = vpack.c.b16 %v1202, %v1199
        %v1293 = vpack.c.b16 %v1203, %v1200
        %v1294 = vpack.c.b16 %v1207, %v1204
        %v1295 = vpack.c.b16 %v1208, %v1205
        %v1296 = vpack.c.b16 %v1209, %v1206
        %v1297 = vpack.c.b16 %v1213, %v1210
        %v1298 = vpack.c.b16 %v1214, %v1211
        %v1299 = vpack.c.b16 %v1215, %v1212
        %v1300 = vpack.c.b16 %v1219, %v1216
        %v1301 = vpack.c.b16 %v1220, %v1217
        %v1302 = vpack.c.b16 %v1221, %v1218
        %v1303 = vpack.c.b16 %v1225, %v1222
        %v1304 = vpack.c.b16 %v1226, %v1223
        %v1305 = vpack.c.b16 %v1227, %v1224
        %v1306 = vpack.c.b16 %v1231, %v1228
        %v1307 = vpack.c.b16 %v1232, %v1229
        %v1308 = vpack.c.b16 %v1233, %v1230
        %v1309 = vpack.c.b16 %v1237, %v1234
        %v1310 = vpack.c.b16 %v1238, %v1235
        %v1311 = vpack.c.b16 %v1239, %v1236
        %1384 = vmatprep.subr.bf16.mxu0 %v1241
        %1385 = vmatpush1.bf16.msra.mxu0 %v1240
        %1386 = vmatprep.subr.bf16.mxu0 %v1244
        %1387 = vmatpush1.bf16.msra.mxu0 %v1243
        %1388 = vmatprep.subr.bf16.mxu0 %v1247
        %1389 = vmatpush1.bf16.msra.mxu0 %v1246
        %1390 = vmatprep.subr.bf16.mxu0 %v1250
        %1391 = vmatpush1.bf16.msra.mxu0 %v1249
        %1392 = vmatprep.subr.bf16.mxu0 %v1253
        %1393 = vmatpush1.bf16.msra.mxu0 %v1252
        %1394 = vmatprep.subr.bf16.mxu0 %v1256
        %1395 = vmatpush1.bf16.msra.mxu0 %v1255
        %1396 = vmatprep.subr.bf16.mxu0 %v1259
        %1397 = vmatpush1.bf16.msra.mxu0 %v1258
        %1398 = vmatprep.subr.bf16.mxu0 %v1262
        %1399 = vmatpush1.bf16.msra.mxu0 %v1261
        %1400 = vmatprep.subr.bf16.mxu0 %v1265
        %1401 = vmatpush1.bf16.msra.mxu0 %v1264
        %1402 = vmatprep.subr.bf16.mxu0 %v1268
        %1403 = vmatpush1.bf16.msra.mxu0 %v1267
        %1404 = vmatprep.subr.bf16.mxu0 %v1271
        %1405 = vmatpush1.bf16.msra.mxu0 %v1270
        %1406 = vmatprep.subr.bf16.mxu0 %v1274
        %1407 = vmatpush1.bf16.msra.mxu0 %v1273
        %1408 = vmatprep.subr.bf16.mxu0 %v1277
        %1409 = vmatpush1.bf16.msra.mxu0 %v1276
        %1410 = vmatprep.subr.bf16.mxu0 %v1280
        %1411 = vmatpush1.bf16.msra.mxu0 %v1279
        %1412 = vmatprep.subr.bf16.mxu0 %v1283
        %1413 = vmatpush1.bf16.msra.mxu0 %v1282
        %1414 = vmatprep.subr.bf16.mxu0 %v1286
        %1415 = vmatpush1.bf16.msra.mxu0 %v1285
        %1416 = vmatprep.mubr.bf16.mxu0 %v902
        %1417 = vmatmul.mubr.bf16.gmra.mrb[0].mxu0 %v901
        %v1418 = vpop.f32.mrb[0].mxu0
        %v1419 = vadd.f32 0.0, %v1418
        %v1420 = vpop.f32.mrb[0].mxu0
        %v1421 = vadd.f32 0.0, %v1420
        %v1422 = vpop.f32.mrb[0].mxu0
        %v1423 = vpop.f32.mrb[0].mxu0
        %1424 = vdwg.mxu0
        %1425 = vmatprep.subr.bf16.mxu0 %v1289
        %1426 = vmatpush1.bf16.msra.mxu0 %v1288
        %1427 = vmatprep.subr.bf16.mxu0 %v1292
        %1428 = vmatpush1.bf16.msra.mxu0 %v1291
        %1429 = vmatprep.subr.bf16.mxu0 %v1295
        %1430 = vmatpush1.bf16.msra.mxu0 %v1294
        %1431 = vmatprep.subr.bf16.mxu0 %v1298
        %1432 = vmatpush1.bf16.msra.mxu0 %v1297
        %1433 = vmatprep.subr.bf16.mxu0 %v1301
        %1434 = vmatpush1.bf16.msra.mxu0 %v1300
        %1435 = vmatprep.subr.bf16.mxu0 %v1304
        %1436 = vmatpush1.bf16.msra.mxu0 %v1303
        %1437 = vmatprep.subr.bf16.mxu0 %v1307
        %1438 = vmatpush1.bf16.msra.mxu0 %v1306
        %1439 = vmatprep.subr.bf16.mxu0 %v1310
        %1440 = vmatpush1.bf16.msra.mxu0 %v1309
        %1441 = vmatprep.subr.bf16.mxu0 0
        %1442 = vmatpush1.bf16.msra.mxu0 0
        %1443 = vmatprep.subr.bf16.mxu0 0
        %1444 = vmatpush1.bf16.msra.mxu0 0
        %1445 = vmatprep.subr.bf16.mxu0 0
        %1446 = vmatpush1.bf16.msra.mxu0 0
        %1447 = vmatprep.subr.bf16.mxu0 0
        %1448 = vmatpush1.bf16.msra.mxu0 0
        %1449 = vmatprep.subr.bf16.mxu0 0
        %1450 = vmatpush1.bf16.msra.mxu0 0
        %1451 = vmatprep.subr.bf16.mxu0 0
        %1452 = vmatpush1.bf16.msra.mxu0 0
        %1453 = vmatprep.subr.bf16.mxu0 0
        %1454 = vmatpush1.bf16.msra.mxu0 0
        %1455 = vmatprep.subr.bf16.mxu0 0
        %1456 = vmatpush1.bf16.msra.mxu0 0
        %1457 = vmatprep.mubr.bf16.mxu0 0
        %1458 = vmatmul.mubr.bf16.gmra.mrb[0].mxu0 %v903
        %v1459 = vpop.f32.mrb[0].mxu0
        %v1460 = vadd.f32 %v1419, %v1459
        %v1461 = vpop.f32.mrb[0].mxu0
        %v1462 = vadd.f32 %v1421, %v1461
        %v1463 = vpop.f32.mrb[0].mxu0
        %v1464 = vpop.f32.mrb[0].mxu0
        %1465 = vdwg.mxu0
        %1466 = vmatprep.subr.bf16.mxu0 0
        %1467 = vmatpush1.bf16.msra.mxu0 %v1242
        %1468 = vmatprep.subr.bf16.mxu0 0
        %1469 = vmatpush1.bf16.msra.mxu0 %v1245
        %1470 = vmatprep.subr.bf16.mxu0 0
        %1471 = vmatpush1.bf16.msra.mxu0 %v1248
        %1472 = vmatprep.subr.bf16.mxu0 0
        %1473 = vmatpush1.bf16.msra.mxu0 %v1251
        %1474 = vmatprep.subr.bf16.mxu0 0
        %1475 = vmatpush1.bf16.msra.mxu0 %v1254
        %1476 = vmatprep.subr.bf16.mxu0 0
        %1477 = vmatpush1.bf16.msra.mxu0 %v1257
        %1478 = vmatprep.subr.bf16.mxu0 0
        %1479 = vmatpush1.bf16.msra.mxu0 %v1260
        %1480 = vmatprep.subr.bf16.mxu0 0
        %1481 = vmatpush1.bf16.msra.mxu0 %v1263
        %1482 = vmatprep.subr.bf16.mxu0 0
        %1483 = vmatpush1.bf16.msra.mxu0 %v1266
        %1484 = vmatprep.subr.bf16.mxu0 0
        %1485 = vmatpush1.bf16.msra.mxu0 %v1269
        %1486 = vmatprep.subr.bf16.mxu0 0
        %1487 = vmatpush1.bf16.msra.mxu0 %v1272
        %1488 = vmatprep.subr.bf16.mxu0 0
        %1489 = vmatpush1.bf16.msra.mxu0 %v1275
        %1490 = vmatprep.subr.bf16.mxu0 0
        %1491 = vmatpush1.bf16.msra.mxu0 %v1278
        %1492 = vmatprep.subr.bf16.mxu0 0
        %1493 = vmatpush1.bf16.msra.mxu0 %v1281
        %1494 = vmatprep.subr.bf16.mxu0 0
        %1495 = vmatpush1.bf16.msra.mxu0 %v1284
        %1496 = vmatprep.subr.bf16.mxu0 0
        %1497 = vmatpush1.bf16.msra.mxu0 %v1287
        %1498 = vmatprep.mubr.bf16.mxu0 %v902
        %1499 = vmatmul.mubr.bf16.gmra.mrb[0].mxu0 %v901
        %v1500 = vpop.f32.mrb[0].mxu0
        %v1501 = vadd.f32 0.0, %v1500
        %v1502 = vpop.f32.mrb[0].mxu0
        %v1503 = vpop.f32.mrb[0].mxu0
        %v1504 = vpop.f32.mrb[0].mxu0
        %1505 = vdwg.mxu0
        %1506 = vmatprep.subr.bf16.mxu0 0
        %1507 = vmatpush1.bf16.msra.mxu0 %v1290
        %1508 = vmatprep.subr.bf16.mxu0 0
        %1509 = vmatpush1.bf16.msra.mxu0 %v1293
        %1510 = vmatprep.subr.bf16.mxu0 0
        %1511 = vmatpush1.bf16.msra.mxu0 %v1296
        %1512 = vmatprep.subr.bf16.mxu0 0
        %1513 = vmatpush1.bf16.msra.mxu0 %v1299
        %1514 = vmatprep.subr.bf16.mxu0 0
        %1515 = vmatpush1.bf16.msra.mxu0 %v1302
        %1516 = vmatprep.subr.bf16.mxu0 0
        %1517 = vmatpush1.bf16.msra.mxu0 %v1305
        %1518 = vmatprep.subr.bf16.mxu0 0
        %1519 = vmatpush1.bf16.msra.mxu0 %v1308
        %1520 = vmatprep.subr.bf16.mxu0 0
        %1521 = vmatpush1.bf16.msra.mxu0 %v1311
        %1522 = vmatprep.subr.bf16.mxu0 0
        %1523 = vmatpush1.bf16.msra.mxu0 0
        %1524 = vmatprep.subr.bf16.mxu0 0
        %1525 = vmatpush1.bf16.msra.mxu0 0
        %1526 = vmatprep.subr.bf16.mxu0 0
        %1527 = vmatpush1.bf16.msra.mxu0 0
        %1528 = vmatprep.subr.bf16.mxu0 0
        %1529 = vmatpush1.bf16.msra.mxu0 0
        %1530 = vmatprep.subr.bf16.mxu0 0
        %1531 = vmatpush1.bf16.msra.mxu0 0
        %1532 = vmatprep.subr.bf16.mxu0 0
        %1533 = vmatpush1.bf16.msra.mxu0 0
        %1534 = vmatprep.subr.bf16.mxu0 0
        %1535 = vmatpush1.bf16.msra.mxu0 0
        %1536 = vmatprep.subr.bf16.mxu0 0
        %1537 = vmatpush1.bf16.msra.mxu0 0
        %1538 = vmatprep.mubr.bf16.mxu0 0
        %1539 = vmatmul.mubr.bf16.gmra.mrb[0].mxu0 %v903
        %v1540 = vpop.f32.mrb[0].mxu0
        %v1541 = vadd.f32 %v1501, %v1540
        %v1542 = vpop.f32.mrb[0].mxu0
        %v1543 = vpop.f32.mrb[0].mxu0
        %v1544 = vpop.f32.mrb[0].mxu0
        %1545 = vdwg.mxu0
        %v1547 = vrot.slane %v898, 1
        %v1549 = vpack.c.bf16 %v898, %v898
        %v1550 = vpack.c.bf16 %v1547, %v1547
        %v1551 = vld [vmem:[#allocation5] sm:$0xff]
        %v1552 = vld [vmem:[#allocation5 + $0x8] sm:$0xff]
        %v1553 = vld [vmem:[#allocation5 + $0x10] sm:$0xff]
        %v1554 = vld [vmem:[#allocation5 + $0x18] sm:$0xff]
        %v1555 = vld [vmem:[#allocation5 + $0x20] sm:$0xff]
        %v1556 = vld [vmem:[#allocation5 + $0x28] sm:$0xff]
        %v1557 = vld [vmem:[#allocation5 + $0x30] sm:$0xff]
        %v1558 = vld [vmem:[#allocation5 + $0x38] sm:$0xff]
        %v1559 = vld [vmem:[#allocation5 + $0x40] sm:$0xff]
        %v1560 = vld [vmem:[#allocation5 + $0x48] sm:$0xff]
        %v1561 = vld [vmem:[#allocation5 + $0x50] sm:$0xff]
        %v1562 = vld [vmem:[#allocation5 + $0x58] sm:$0xff]
        %v1563 = vld [vmem:[#allocation5 + $0x60] sm:$0xff]
        %v1564 = vld [vmem:[#allocation5 + $0x68] sm:$0xff]
        %v1565 = vld [vmem:[#allocation5 + $0x70] sm:$0xff]
        %v1566 = vld [vmem:[#allocation5 + $0x78] sm:$0xff]
        %v1567 = vld [vmem:[#allocation5 + $0x80] sm:$0xff]
        %v1568 = vld [vmem:[#allocation5 + $0x88] sm:$0xff]
        %v1569 = vld [vmem:[#allocation5 + $0x90] sm:$0xff]
        %v1570 = vld [vmem:[#allocation5 + $0x98] sm:$0xff]
        %v1571 = vld [vmem:[#allocation5 + $0xa0] sm:$0xff]
        %v1572 = vld [vmem:[#allocation5 + $0xa8] sm:$0xff]
        %v1573 = vld [vmem:[#allocation5 + $0xb0] sm:$0xff]
        %v1574 = vld [vmem:[#allocation5 + $0xb8] sm:$0xff]
        %v1575 = vld [vmem:[#allocation5 + $0xc0] sm:$0xff]
        %v1576 = vld [vmem:[#allocation5 + $0xc8] sm:$0xff]
        %v1577 = vld [vmem:[#allocation5 + $0xd0] sm:$0xff]
        %v1578 = vld [vmem:[#allocation5 + $0xd8] sm:$0xff]
        %v1579 = vld [vmem:[#allocation5 + $0xe0] sm:$0xff]
        %v1580 = vld [vmem:[#allocation5 + $0xe8] sm:$0xff]
        %v1581 = vld [vmem:[#allocation5 + $0xf0] sm:$0xff]
        %v1582 = vld [vmem:[#allocation5 + $0xf8] sm:$0xff]
        %v1615 = vunpack.c.l.b16 %v1551
        %v1616 = vunpack.c.h.b16 %v1551
        %v1617 = vunpack.c.l.b16 %v1552
        %v1618 = vunpack.c.h.b16 %v1552
        %v1619 = vunpack.c.l.b16 %v1553
        %v1620 = vunpack.c.h.b16 %v1553
        %v1621 = vunpack.c.l.b16 %v1554
        %v1622 = vunpack.c.h.b16 %v1554
        %v1623 = vunpack.c.l.b16 %v1555
        %v1624 = vunpack.c.h.b16 %v1555
        %v1625 = vunpack.c.l.b16 %v1556
        %v1626 = vunpack.c.h.b16 %v1556
        %v1627 = vunpack.c.l.b16 %v1557
        %v1628 = vunpack.c.h.b16 %v1557
        %v1629 = vunpack.c.l.b16 %v1558
        %v1630 = vunpack.c.h.b16 %v1558
        %v1631 = vunpack.c.l.b16 %v1559
        %v1632 = vunpack.c.h.b16 %v1559
        %v1633 = vunpack.c.l.b16 %v1560
        %v1634 = vunpack.c.h.b16 %v1560
        %v1635 = vunpack.c.l.b16 %v1561
        %v1636 = vunpack.c.h.b16 %v1561
        %v1637 = vunpack.c.l.b16 %v1562
        %v1638 = vunpack.c.h.b16 %v1562
        %v1639 = vunpack.c.l.b16 %v1563
        %v1640 = vunpack.c.h.b16 %v1563
        %v1641 = vunpack.c.l.b16 %v1564
        %v1642 = vunpack.c.h.b16 %v1564
        %v1643 = vunpack.c.l.b16 %v1565
        %v1644 = vunpack.c.h.b16 %v1565
        %v1645 = vunpack.c.l.b16 %v1566
        %v1646 = vunpack.c.h.b16 %v1566
        %v1647 = vunpack.c.l.b16 %v1567
        %v1648 = vunpack.c.h.b16 %v1567
        %v1649 = vunpack.c.l.b16 %v1568
        %v1650 = vunpack.c.h.b16 %v1568
        %v1651 = vunpack.c.l.b16 %v1569
        %v1652 = vunpack.c.h.b16 %v1569
        %v1653 = vunpack.c.l.b16 %v1570
        %v1654 = vunpack.c.h.b16 %v1570
        %v1655 = vunpack.c.l.b16 %v1571
        %v1656 = vunpack.c.h.b16 %v1571
        %v1657 = vunpack.c.l.b16 %v1572
        %v1658 = vunpack.c.h.b16 %v1572
        %v1659 = vunpack.c.l.b16 %v1573
        %v1660 = vunpack.c.h.b16 %v1573
        %v1661 = vunpack.c.l.b16 %v1574
        %v1662 = vunpack.c.h.b16 %v1574
        %v1663 = vunpack.c.l.b16 %v1575
        %v1664 = vunpack.c.h.b16 %v1575
        %v1665 = vunpack.c.l.b16 %v1576
        %v1666 = vunpack.c.h.b16 %v1576
        %v1667 = vunpack.c.l.b16 %v1577
        %v1668 = vunpack.c.h.b16 %v1577
        %v1669 = vunpack.c.l.b16 %v1578
        %v1670 = vunpack.c.h.b16 %v1578
        %v1671 = vunpack.c.l.b16 %v1579
        %v1672 = vunpack.c.h.b16 %v1579
        %v1673 = vunpack.c.l.b16 %v1580
        %v1674 = vunpack.c.h.b16 %v1580
        %v1675 = vunpack.c.l.b16 %v1581
        %v1676 = vunpack.c.h.b16 %v1581
        %v1677 = vunpack.c.l.b16 %v1582
        %v1678 = vunpack.c.h.b16 %v1582
        %v1679 = vpack.c.b16 %v1617, %v1615
        %v1680 = vpack.c.b16 %v1618, %v1616
        %v1681 = vpack.c.b16 %v1621, %v1619
        %v1682 = vpack.c.b16 %v1622, %v1620
        %v1683 = vpack.c.b16 %v1625, %v1623
        %v1684 = vpack.c.b16 %v1626, %v1624
        %v1685 = vpack.c.b16 %v1629, %v1627
        %v1686 = vpack.c.b16 %v1630, %v1628
        %v1687 = vpack.c.b16 %v1633, %v1631
        %v1688 = vpack.c.b16 %v1634, %v1632
        %v1689 = vpack.c.b16 %v1637, %v1635
        %v1690 = vpack.c.b16 %v1638, %v1636
        %v1691 = vpack.c.b16 %v1641, %v1639
        %v1692 = vpack.c.b16 %v1642, %v1640
        %v1693 = vpack.c.b16 %v1645, %v1643
        %v1694 = vpack.c.b16 %v1646, %v1644
        %v1695 = vpack.c.b16 %v1649, %v1647
        %v1696 = vpack.c.b16 %v1650, %v1648
        %v1697 = vpack.c.b16 %v1653, %v1651
        %v1698 = vpack.c.b16 %v1654, %v1652
        %v1699 = vpack.c.b16 %v1657, %v1655
        %v1700 = vpack.c.b16 %v1658, %v1656
        %v1701 = vpack.c.b16 %v1661, %v1659
        %v1702 = vpack.c.b16 %v1662, %v1660
        %v1703 = vpack.c.b16 %v1665, %v1663
        %v1704 = vpack.c.b16 %v1666, %v1664
        %v1705 = vpack.c.b16 %v1669, %v1667
        %v1706 = vpack.c.b16 %v1670, %v1668
        %v1707 = vpack.c.b16 %v1673, %v1671
        %v1708 = vpack.c.b16 %v1674, %v1672
        %v1709 = vpack.c.b16 %v1677, %v1675
        %v1710 = vpack.c.b16 %v1678, %v1676
        %1743 = vmatprep.subr.bf16.mxu0 %v1680
        %1744 = vmatpush1.bf16.msra.mxu0 %v1679
        %1745 = vmatprep.subr.bf16.mxu0 %v1682
        %1746 = vmatpush1.bf16.msra.mxu0 %v1681
        %1747 = vmatprep.subr.bf16.mxu0 %v1684
        %1748 = vmatpush1.bf16.msra.mxu0 %v1683
        %1749 = vmatprep.subr.bf16.mxu0 %v1686
        %1750 = vmatpush1.bf16.msra.mxu0 %v1685
        %1751 = vmatprep.subr.bf16.mxu0 %v1688
        %1752 = vmatpush1.bf16.msra.mxu0 %v1687
        %1753 = vmatprep.subr.bf16.mxu0 %v1690
        %1754 = vmatpush1.bf16.msra.mxu0 %v1689
        %1755 = vmatprep.subr.bf16.mxu0 %v1692
        %1756 = vmatpush1.bf16.msra.mxu0 %v1691
        %1757 = vmatprep.subr.bf16.mxu0 %v1694
        %1758 = vmatpush1.bf16.msra.mxu0 %v1693
        %1759 = vmatprep.subr.bf16.mxu0 %v1696
        %1760 = vmatpush1.bf16.msra.mxu0 %v1695
        %1761 = vmatprep.subr.bf16.mxu0 %v1698
        %1762 = vmatpush1.bf16.msra.mxu0 %v1697
        %1763 = vmatprep.subr.bf16.mxu0 %v1700
        %1764 = vmatpush1.bf16.msra.mxu0 %v1699
        %1765 = vmatprep.subr.bf16.mxu0 %v1702
        %1766 = vmatpush1.bf16.msra.mxu0 %v1701
        %1767 = vmatprep.subr.bf16.mxu0 %v1704
        %1768 = vmatpush1.bf16.msra.mxu0 %v1703
        %1769 = vmatprep.subr.bf16.mxu0 %v1706
        %1770 = vmatpush1.bf16.msra.mxu0 %v1705
        %1771 = vmatprep.subr.bf16.mxu0 %v1708
        %1772 = vmatpush1.bf16.msra.mxu0 %v1707
        %1773 = vmatprep.subr.bf16.mxu0 %v1710
        %1774 = vmatpush1.bf16.msra.mxu0 %v1709
        %1775 = vmatprep.mubr.bf16.mxu0 %v1550
        %1776 = vmatmul.mubr.bf16.gmra.mrb[0].mxu0 %v1549
        %v1777 = vpop.f32.mrb[0].mxu0
        %v1778 = vadd.f32 0.0, %v1777
        %v1779 = vpop.f32.mrb[0].mxu0
        %v1780 = vadd.f32 0.0, %v1779
        %v1781 = vpop.f32.mrb[0].mxu0
        %v1782 = vpop.f32.mrb[0].mxu0
        %1783 = vdwg.mxu0
        %v1784 = vlaneseq
        %v1785 = vshrl.u32 %v1784, 7
        %v1786 = vsub.s32 0, %v1785
        %v1787 = vrot.slane %v1778, %v1786
        %v1788 = vadd.f32 %v1460, %v1787
        %v1789 = vlaneseq
        %v1790 = vshrl.u32 %v1789, 7
        %v1791 = vsub.s32 0, %v1790
        %v1792 = vrot.slane %v571, %v1791
        %v1793 = vadd.f32 %v1788, %v1792
        %v1794 = vlaneseq
        %v1795 = vshrl.u32 %v1794, 7
        %v1796 = vsub.s32 0, %v1795
        %v1797 = vrot.slane %v1780, %v1796
        %v1798 = vadd.f32 %v1462, %v1797
        %v1799 = vlaneseq
        %v1800 = vshrl.u32 %v1799, 7
        %v1801 = vsub.s32 0, %v1800
        %v1802 = vrot.slane %v570, %v1801
        %v1803 = vadd.f32 %v1798, %v1802
        %v1804 = vld [vmem:[#allocation7] sm:$0xff]
        %v1805 = vld [vmem:[#allocation7 + $0x8] sm:$0xff]
        %v1806 = vld [vmem:[#allocation7 + $0x10] sm:$0xff]
        %v1807 = vld [vmem:[#allocation7 + $0x18] sm:$0xff]
        %v1808 = vld [vmem:[#allocation7 + $0x20] sm:$0xff]
        %v1809 = vld [vmem:[#allocation7 + $0x28] sm:$0xff]
        %v1810 = vld [vmem:[#allocation7 + $0x30] sm:$0xff]
        %v1811 = vld [vmem:[#allocation7 + $0x38] sm:$0xff]
        %v1812 = vld [vmem:[#allocation7 + $0x40] sm:$0xff]
        %v1813 = vld [vmem:[#allocation7 + $0x48] sm:$0xff]
        %v1814 = vld [vmem:[#allocation7 + $0x50] sm:$0xff]
        %v1815 = vld [vmem:[#allocation7 + $0x58] sm:$0xff]
        %v1816 = vld [vmem:[#allocation7 + $0x60] sm:$0xff]
        %v1817 = vld [vmem:[#allocation7 + $0x68] sm:$0xff]
        %v1818 = vld [vmem:[#allocation7 + $0x70] sm:$0xff]
        %v1819 = vld [vmem:[#allocation7 + $0x78] sm:$0xff]
        %v1836 = vunpack.c.l.b16 %v1804
        %v1837 = vunpack.c.h.b16 %v1804
        %v1838 = vunpack.c.l.b16 %v1805
        %v1839 = vunpack.c.h.b16 %v1805
        %v1840 = vunpack.c.l.b16 %v1806
        %v1841 = vunpack.c.h.b16 %v1806
        %v1842 = vunpack.c.l.b16 %v1807
        %v1843 = vunpack.c.h.b16 %v1807
        %v1844 = vunpack.c.l.b16 %v1808
        %v1845 = vunpack.c.h.b16 %v1808
        %v1846 = vunpack.c.l.b16 %v1809
        %v1847 = vunpack.c.h.b16 %v1809
        %v1848 = vunpack.c.l.b16 %v1810
        %v1849 = vunpack.c.h.b16 %v1810
        %v1850 = vunpack.c.l.b16 %v1811
        %v1851 = vunpack.c.h.b16 %v1811
        %v1852 = vunpack.c.l.b16 %v1812
        %v1853 = vunpack.c.h.b16 %v1812
        %v1854 = vunpack.c.l.b16 %v1813
        %v1855 = vunpack.c.h.b16 %v1813
        %v1856 = vunpack.c.l.b16 %v1814
        %v1857 = vunpack.c.h.b16 %v1814
        %v1858 = vunpack.c.l.b16 %v1815
        %v1859 = vunpack.c.h.b16 %v1815
        %v1860 = vunpack.c.l.b16 %v1816
        %v1861 = vunpack.c.h.b16 %v1816
        %v1862 = vunpack.c.l.b16 %v1817
        %v1863 = vunpack.c.h.b16 %v1817
        %v1864 = vunpack.c.l.b16 %v1818
        %v1865 = vunpack.c.h.b16 %v1818
        %v1866 = vunpack.c.l.b16 %v1819
        %v1867 = vunpack.c.h.b16 %v1819
        %v1868 = vpack.c.b16 %v1838, %v1836
        %v1869 = vpack.c.b16 %v1839, %v1837
        %v1870 = vpack.c.b16 %v1842, %v1840
        %v1871 = vpack.c.b16 %v1843, %v1841
        %v1872 = vpack.c.b16 %v1846, %v1844
        %v1873 = vpack.c.b16 %v1847, %v1845
        %v1874 = vpack.c.b16 %v1850, %v1848
        %v1875 = vpack.c.b16 %v1851, %v1849
        %v1876 = vpack.c.b16 %v1854, %v1852
        %v1877 = vpack.c.b16 %v1855, %v1853
        %v1878 = vpack.c.b16 %v1858, %v1856
        %v1879 = vpack.c.b16 %v1859, %v1857
        %v1880 = vpack.c.b16 %v1862, %v1860
        %v1881 = vpack.c.b16 %v1863, %v1861
        %v1882 = vpack.c.b16 %v1866, %v1864
        %v1883 = vpack.c.b16 %v1867, %v1865
        %1900 = vmatprep.subr.bf16.mxu0 %v1869
        %1901 = vmatpush1.bf16.msra.mxu0 %v1868
        %1902 = vmatprep.subr.bf16.mxu0 %v1871
        %1903 = vmatpush1.bf16.msra.mxu0 %v1870
        %1904 = vmatprep.subr.bf16.mxu0 %v1873
        %1905 = vmatpush1.bf16.msra.mxu0 %v1872
        %1906 = vmatprep.subr.bf16.mxu0 %v1875
        %1907 = vmatpush1.bf16.msra.mxu0 %v1874
        %1908 = vmatprep.subr.bf16.mxu0 %v1877
        %1909 = vmatpush1.bf16.msra.mxu0 %v1876
        %1910 = vmatprep.subr.bf16.mxu0 %v1879
        %1911 = vmatpush1.bf16.msra.mxu0 %v1878
        %1912 = vmatprep.subr.bf16.mxu0 %v1881
        %1913 = vmatpush1.bf16.msra.mxu0 %v1880
        %1914 = vmatprep.subr.bf16.mxu0 %v1883
        %1915 = vmatpush1.bf16.msra.mxu0 %v1882
        %1916 = vmatprep.subr.bf16.mxu0 0
        %1917 = vmatpush1.bf16.msra.mxu0 0
        %1918 = vmatprep.subr.bf16.mxu0 0
        %1919 = vmatpush1.bf16.msra.mxu0 0
        %1920 = vmatprep.subr.bf16.mxu0 0
        %1921 = vmatpush1.bf16.msra.mxu0 0
        %1922 = vmatprep.subr.bf16.mxu0 0
        %1923 = vmatpush1.bf16.msra.mxu0 0
        %1924 = vmatprep.subr.bf16.mxu0 0
        %1925 = vmatpush1.bf16.msra.mxu0 0
        %1926 = vmatprep.subr.bf16.mxu0 0
        %1927 = vmatpush1.bf16.msra.mxu0 0
        %1928 = vmatprep.subr.bf16.mxu0 0
        %1929 = vmatpush1.bf16.msra.mxu0 0
        %1930 = vmatprep.subr.bf16.mxu0 0
        %1931 = vmatpush1.bf16.msra.mxu0 0
        %1932 = vmatprep.mubr.bf16.mxu0 0
        %1933 = vmatmul.mubr.bf16.gmra.mrb[0].mxu0 %v832
        %v1934 = vpop.f32.mrb[0].mxu0
        %v1935 = vadd.f32 0.0, %v1934
        %v1936 = vpop.f32.mrb[0].mxu0
        %v1937 = vadd.f32 0.0, %v1936
        %v1938 = vpop.f32.mrb[0].mxu0
        %v1939 = vadd.f32 0.0, %v1938
        %v1940 = vpop.f32.mrb[0].mxu0
        %v1941 = vadd.f32 0.0, %v1940
        %1942 = vmatprep.mubr.bf16.mxu0 0
        %1943 = vmatmul.mubr.bf16.gmra.mrb[0].mxu0 %v833
        %v1944 = vpop.f32.mrb[0].mxu0
        %v1945 = vadd.f32 0.0, %v1944
        %v1946 = vpop.f32.mrb[0].mxu0
        %v1947 = vadd.f32 0.0, %v1946
        %v1948 = vpop.f32.mrb[0].mxu0
        %v1949 = vadd.f32 0.0, %v1948
        %v1950 = vpop.f32.mrb[0].mxu0
        %v1951 = vadd.f32 0.0, %v1950
        %1952 = vmatprep.mubr.bf16.mxu0 0
        %1953 = vmatmul.mubr.bf16.gmra.mrb[0].mxu0 %v834
        %v1954 = vpop.f32.mrb[0].mxu0
        %v1955 = vadd.f32 0.0, %v1954
        %v1956 = vpop.f32.mrb[0].mxu0
        %v1957 = vadd.f32 0.0, %v1956
        %v1958 = vpop.f32.mrb[0].mxu0
        %v1959 = vadd.f32 0.0, %v1958
        %v1960 = vpop.f32.mrb[0].mxu0
        %v1961 = vadd.f32 0.0, %v1960
        %1962 = vmatprep.mubr.bf16.mxu0 0
        %1963 = vmatmul.mubr.bf16.gmra.mrb[0].mxu0 %v835
        %v1964 = vpop.f32.mrb[0].mxu0
        %v1965 = vadd.f32 0.0, %v1964
        %v1966 = vpop.f32.mrb[0].mxu0
        %v1967 = vadd.f32 0.0, %v1966
        %v1968 = vpop.f32.mrb[0].mxu0
        %v1969 = vadd.f32 0.0, %v1968
        %v1970 = vpop.f32.mrb[0].mxu0
        %v1971 = vadd.f32 0.0, %v1970
        %1972 = vdwg.mxu0
        %v1973 = vpack.c.bf16 %v1803, %v1793
        %v1974 = vpack.c.bf16 %v1541, %v1541
        %v1975 = vpack.c.bf16 %v1941, %v1937
        %v1976 = vpack.c.bf16 %v1951, %v1947
        %v1977 = vpack.c.bf16 %v1961, %v1957
        %v1978 = vpack.c.bf16 %v1971, %v1967
        %v1987 = vunpack.c.l.b16 %v562
        %v1988 = vunpack.c.l.b16 %v563
        %v1989 = vunpack.c.l.b16 %v564
        %v1990 = vunpack.c.l.b16 %v565
        %v1991 = vunpack.c.l.b16 %v566
        %v1992 = vunpack.c.l.b16 %v567
        %v1993 = vunpack.c.l.b16 %v568
        %v1994 = vunpack.c.l.b16 %v569
        %v1995 = vpack.c.b16 %v1988, %v1987
        %v1996 = vpack.c.b16 %v1990, %v1989
        %v1997 = vpack.c.b16 %v1992, %v1991
        %v1998 = vpack.c.b16 %v1994, %v1993
        %v2000 = vsel %vm613, %v1995, 0
        %v2003 = vsel %vm613, %v1996, 0
        %v2006 = vsel %vm613, %v1997, 0
        %v2009 = vsel %vm613, %v1998, 0
        %2011 = vmatprep.subr.bf16.mxu0 0
        %2012 = vmatpush1.bf16.msra.mxu0 %v1975
        %2013 = vmatprep.subr.bf16.mxu0 0
        %2014 = vmatpush1.bf16.msra.mxu0 %v1976
        %2015 = vmatprep.subr.bf16.mxu0 0
        %2016 = vmatpush1.bf16.msra.mxu0 %v1977
        %2017 = vmatprep.subr.bf16.mxu0 0
        %2018 = vmatpush1.bf16.msra.mxu0 %v1978
        %2019 = vmatprep.subr.bf16.mxu0 0
        %2020 = vmatpush1.bf16.msra.mxu0 0
        %2021 = vmatprep.subr.bf16.mxu0 0
        %2022 = vmatpush1.bf16.msra.mxu0 0
        %2023 = vmatprep.subr.bf16.mxu0 0
        %2024 = vmatpush1.bf16.msra.mxu0 0
        %2025 = vmatprep.subr.bf16.mxu0 0
        %2026 = vmatpush1.bf16.msra.mxu0 0
        %2027 = vmatprep.subr.bf16.mxu0 0
        %2028 = vmatpush1.bf16.msra.mxu0 0
        %2029 = vmatprep.subr.bf16.mxu0 0
        %2030 = vmatpush1.bf16.msra.mxu0 0
        %2031 = vmatprep.subr.bf16.mxu0 0
        %2032 = vmatpush1.bf16.msra.mxu0 0
        %2033 = vmatprep.subr.bf16.mxu0 0
        %2034 = vmatpush1.bf16.msra.mxu0 0
        %2035 = vmatprep.subr.bf16.mxu0 0
        %2036 = vmatpush1.bf16.msra.mxu0 0
        %2037 = vmatprep.subr.bf16.mxu0 0
        %2038 = vmatpush1.bf16.msra.mxu0 0
        %2039 = vmatprep.subr.bf16.mxu0 0
        %2040 = vmatpush1.bf16.msra.mxu0 0
        %2041 = vmatprep.subr.bf16.mxu0 0
        %2042 = vmatpush1.bf16.msra.mxu0 0
        %2043 = vmatprep.mubr.bf16.mxu0 0
        %2044 = vmatmul.mubr.bf16.gmra.mrb[0].mxu0 %v2000
        %v2045 = vpop.f32.mrb[0].mxu0
        %v2046 = vadd.f32 0.0, %v2045
        %v2047 = vpop.f32.mrb[0].mxu0
        %v2048 = vpop.f32.mrb[0].mxu0
        %v2049 = vadd.f32 0.0, %v2048
        %v2050 = vpop.f32.mrb[0].mxu0
        %2051 = vmatprep.mubr.bf16.mxu0 0
        %2052 = vmatmul.mubr.bf16.gmra.mrb[0].mxu0 %v2003
        %v2053 = vpop.f32.mrb[0].mxu0
        %v2054 = vadd.f32 0.0, %v2053
        %v2055 = vpop.f32.mrb[0].mxu0
        %v2056 = vpop.f32.mrb[0].mxu0
        %v2057 = vadd.f32 0.0, %v2056
        %v2058 = vpop.f32.mrb[0].mxu0
        %2059 = vmatprep.mubr.bf16.mxu0 0
        %2060 = vmatmul.mubr.bf16.gmra.mrb[0].mxu0 %v2006
        %v2061 = vpop.f32.mrb[0].mxu0
        %v2062 = vadd.f32 0.0, %v2061
        %v2063 = vpop.f32.mrb[0].mxu0
        %v2064 = vpop.f32.mrb[0].mxu0
        %v2065 = vadd.f32 0.0, %v2064
        %v2066 = vpop.f32.mrb[0].mxu0
        %2067 = vmatprep.mubr.bf16.mxu0 0
        %2068 = vmatmul.mubr.bf16.gmra.mrb[0].mxu0 %v2009
        %v2069 = vpop.f32.mrb[0].mxu0
        %v2070 = vadd.f32 0.0, %v2069
        %v2071 = vpop.f32.mrb[0].mxu0
        %v2072 = vpop.f32.mrb[0].mxu0
        %v2073 = vadd.f32 0.0, %v2072
        %v2074 = vpop.f32.mrb[0].mxu0
        %2075 = vdwg.mxu0
        %v2076 = vadd.f32 %v1935, %v2046
        %v2077 = vadd.f32 %v1939, %v2049
        %v2078 = vadd.f32 %v1945, %v2054
        %v2079 = vadd.f32 %v1949, %v2057
        %v2080 = vadd.f32 %v1955, %v2062
        %v2081 = vadd.f32 %v1959, %v2065
        %v2082 = vadd.f32 %v1965, %v2070
        %v2083 = vadd.f32 %v1969, %v2073
        %v2092 = vunpack.c.l.b16 %v554
        %v2093 = vunpack.c.l.b16 %v555
        %v2094 = vunpack.c.l.b16 %v556
        %v2095 = vunpack.c.l.b16 %v557
        %v2096 = vunpack.c.l.b16 %v558
        %v2097 = vunpack.c.l.b16 %v559
        %v2098 = vunpack.c.l.b16 %v560
        %v2099 = vunpack.c.l.b16 %v561
        %v2100 = vpack.c.b16 %v2093, %v2092
        %v2101 = vpack.c.b16 %v2095, %v2094
        %v2102 = vpack.c.b16 %v2097, %v2096
        %v2103 = vpack.c.b16 %v2099, %v2098
        %vm2104 = vcmask 195584
        %v2106 = vsel %vm2104, %v2100, 0
        %v2109 = vsel %vm2104, %v2101, 0
        %v2112 = vsel %vm2104, %v2102, 0
        %v2115 = vsel %vm2104, %v2103, 0
        %v2118 = vsel %vm723, %v1974, 0
        %2120 = vmatprep.subr.bf16.mxu0 0
        %2121 = vmatpush1.bf16.msra.mxu0 %v1973
        %2122 = vmatprep.subr.bf16.mxu0 0
        %2123 = vmatpush1.bf16.msra.mxu0 %v2118
        %2124 = vmatprep.subr.bf16.mxu0 0
        %2125 = vmatpush1.bf16.msra.mxu0 0
        %2126 = vmatprep.subr.bf16.mxu0 0
        %2127 = vmatpush1.bf16.msra.mxu0 0
        %2128 = vmatprep.subr.bf16.mxu0 0
        %2129 = vmatpush1.bf16.msra.mxu0 0
        %2130 = vmatprep.subr.bf16.mxu0 0
        %2131 = vmatpush1.bf16.msra.mxu0 0
        %2132 = vmatprep.subr.bf16.mxu0 0
        %2133 = vmatpush1.bf16.msra.mxu0 0
        %2134 = vmatprep.subr.bf16.mxu0 0
        %2135 = vmatpush1.bf16.msra.mxu0 0
        %2136 = vmatprep.subr.bf16.mxu0 0
        %2137 = vmatpush1.bf16.msra.mxu0 0
        %2138 = vmatprep.subr.bf16.mxu0 0
        %2139 = vmatpush1.bf16.msra.mxu0 0
        %2140 = vmatprep.subr.bf16.mxu0 0
        %2141 = vmatpush1.bf16.msra.mxu0 0
        %2142 = vmatprep.subr.bf16.mxu0 0
        %2143 = vmatpush1.bf16.msra.mxu0 0
        %2144 = vmatprep.subr.bf16.mxu0 0
        %2145 = vmatpush1.bf16.msra.mxu0 0
        %2146 = vmatprep.subr.bf16.mxu0 0
        %2147 = vmatpush1.bf16.msra.mxu0 0
        %2148 = vmatprep.subr.bf16.mxu0 0
        %2149 = vmatpush1.bf16.msra.mxu0 0
        %2150 = vmatprep.subr.bf16.mxu0 0
        %2151 = vmatpush1.bf16.msra.mxu0 0
        %2152 = vmatprep.mubr.bf16.mxu0 0
        %2153 = vmatmul.mubr.bf16.gmra.mrb[0].mxu0 %v2106
        %v2154 = vpop.f32.mrb[0].mxu0
        %v2155 = vadd.f32 0.0, %v2154
        %v2156 = vpop.f32.mrb[0].mxu0
        %v2157 = vpop.f32.mrb[0].mxu0
        %v2158 = vadd.f32 0.0, %v2157
        %v2159 = vpop.f32.mrb[0].mxu0
        %2160 = vmatprep.mubr.bf16.mxu0 0
        %2161 = vmatmul.mubr.bf16.gmra.mrb[0].mxu0 %v2109
        %v2162 = vpop.f32.mrb[0].mxu0
        %v2163 = vadd.f32 0.0, %v2162
        %v2164 = vpop.f32.mrb[0].mxu0
        %v2165 = vpop.f32.mrb[0].mxu0
        %v2166 = vadd.f32 0.0, %v2165
        %v2167 = vpop.f32.mrb[0].mxu0
        %2168 = vmatprep.mubr.bf16.mxu0 0
        %2169 = vmatmul.mubr.bf16.gmra.mrb[0].mxu0 %v2112
        %v2170 = vpop.f32.mrb[0].mxu0
        %v2171 = vadd.f32 0.0, %v2170
        %v2172 = vpop.f32.mrb[0].mxu0
        %v2173 = vpop.f32.mrb[0].mxu0
        %v2174 = vadd.f32 0.0, %v2173
        %v2175 = vpop.f32.mrb[0].mxu0
        %2176 = vmatprep.mubr.bf16.mxu0 0
        %2177 = vmatmul.mubr.bf16.gmra.mrb[0].mxu0 %v2115
        %v2178 = vpop.f32.mrb[0].mxu0
        %v2179 = vadd.f32 0.0, %v2178
        %v2180 = vpop.f32.mrb[0].mxu0
        %v2181 = vpop.f32.mrb[0].mxu0
        %v2182 = vadd.f32 0.0, %v2181
        %v2183 = vpop.f32.mrb[0].mxu0
        %2184 = vdwg.mxu0
        %v2185 = vadd.f32 %v2076, %v2155
        %v2186 = vadd.f32 %v2077, %v2158
        %v2187 = vadd.f32 %v2078, %v2163
        %v2188 = vadd.f32 %v2079, %v2166
        %v2189 = vadd.f32 %v2080, %v2171
        %v2190 = vadd.f32 %v2081, %v2174
        %v2191 = vadd.f32 %v2082, %v2179
        %v2192 = vadd.f32 %v2083, %v2182
        %v2193 = vmax.f32 %v2185, 0.0
        %v2194 = vmax.f32 %v2186, 0.0
        %v2195 = vmax.f32 %v2187, 0.0
        %v2196 = vmax.f32 %v2188, 0.0
        %v2197 = vmax.f32 %v2189, 0.0
        %v2198 = vmax.f32 %v2190, 0.0
        %v2199 = vmax.f32 %v2191, 0.0
        %v2200 = vmax.f32 %v2192, 0.0
        %v2201 = vpack.c.bf16 %v2194, %v2193
        %v2202 = vpack.c.bf16 %v2196, %v2195
        %v2203 = vpack.c.bf16 %v2198, %v2197
        %v2204 = vpack.c.bf16 %v2200, %v2199
        %2205 = vmatprep.subr.bf16.mxu0 0
        %2206 = vmatpush1.bf16.msra.mxu0 %v2201
        %2207 = vmatprep.subr.bf16.mxu0 0
        %2208 = vmatpush1.bf16.msra.mxu0 %v2202
        %2209 = vmatprep.subr.bf16.mxu0 0
        %2210 = vmatpush1.bf16.msra.mxu0 %v2203
        %2211 = vmatprep.subr.bf16.mxu0 0
        %2212 = vmatpush1.bf16.msra.mxu0 %v2204
        %2213 = vmatprep.subr.bf16.mxu0 0
        %2214 = vmatpush1.bf16.msra.mxu0 0
        %2215 = vmatprep.subr.bf16.mxu0 0
        %2216 = vmatpush1.bf16.msra.mxu0 0
        %2217 = vmatprep.subr.bf16.mxu0 0
        %2218 = vmatpush1.bf16.msra.mxu0 0
        %2219 = vmatprep.subr.bf16.mxu0 0
        %2220 = vmatpush1.bf16.msra.mxu0 0
        %2221 = vmatprep.subr.bf16.mxu0 0
        %2222 = vmatpush1.bf16.msra.mxu0 0
        %2223 = vmatprep.subr.bf16.mxu0 0
        %2224 = vmatpush1.bf16.msra.mxu0 0
        %2225 = vmatprep.subr.bf16.mxu0 0
        %2226 = vmatpush1.bf16.msra.mxu0 0
        %2227 = vmatprep.subr.bf16.mxu0 0
        %2228 = vmatpush1.bf16.msra.mxu0 0
        %2229 = vmatprep.subr.bf16.mxu0 0
        %2230 = vmatpush1.bf16.msra.mxu0 0
        %2231 = vmatprep.subr.bf16.mxu0 0
        %2232 = vmatpush1.bf16.msra.mxu0 0
        %2233 = vmatprep.subr.bf16.mxu0 0
        %2234 = vmatpush1.bf16.msra.mxu0 0
        %2235 = vmatprep.subr.bf16.mxu0 0
        %2236 = vmatpush1.bf16.msra.mxu0 0
        %2237 = vmatprep.mubr.bf16.mxu0 0
        %2238 = vmatmul.mubr.bf16.gmra.mrb[0].mxu0 %v847
        %v2239 = vpop.f32.mrb[0].mxu0
        %v2240 = vadd.f32 0.0, %v2239
        %v2241 = vpop.f32.mrb[0].mxu0
        %v2242 = vpop.f32.mrb[0].mxu0
        %v2243 = vadd.f32 0.0, %v2242
        %v2244 = vpop.f32.mrb[0].mxu0
        %2245 = vmatprep.mubr.bf16.mxu0 0
        %2246 = vmatmul.mubr.bf16.gmra.mrb[0].mxu0 %v850
        %v2247 = vpop.f32.mrb[0].mxu0
        %v2248 = vadd.f32 0.0, %v2247
        %v2249 = vpop.f32.mrb[0].mxu0
        %v2250 = vpop.f32.mrb[0].mxu0
        %v2251 = vadd.f32 0.0, %v2250
        %v2252 = vpop.f32.mrb[0].mxu0
        %2253 = vdwg.mxu0
        %v2254 = vpack.c.bf16 %v2248, %v2248
        %v2255 = vpack.c.bf16 %v2240, %v2240
        %v2256 = vpack.c.bf16 %v2243, %v2243
        %s2257 = scalar_lea.vmem [#allocation2], 576
        %v2258 = vld [vmem:[%s2257] sm:$0xff]
        %v2259 = vld [vmem:[%s2257 + $0x8] sm:$0xf]
        %v2260 = vld [vmem:[%s2257 + $0xc] sm:$0xff]
        %v2261 = vld [vmem:[%s2257 + $0x14] sm:$0xf]
        %v2262 = vld [vmem:[%s2257 + $0x18] sm:$0xff]
        %v2263 = vld [vmem:[%s2257 + $0x20] sm:$0xf]
        %v2264 = vld [vmem:[%s2257 + $0x24] sm:$0xff]
        %v2265 = vld [vmem:[%s2257 + $0x2c] sm:$0xf]
        %v2266 = vld [vmem:[%s2257 + $0x30] sm:$0xff]
        %v2267 = vld [vmem:[%s2257 + $0x38] sm:$0xf]
        %v2268 = vld [vmem:[%s2257 + $0x3c] sm:$0xff]
        %v2269 = vld [vmem:[%s2257 + $0x44] sm:$0xf]
        %v2270 = vld [vmem:[%s2257 + $0x48] sm:$0xff]
        %v2271 = vld [vmem:[%s2257 + $0x50] sm:$0xf]
        %v2272 = vld [vmem:[%s2257 + $0x54] sm:$0xff]
        %v2273 = vld [vmem:[%s2257 + $0x5c] sm:$0xf]
        %v2274 = vld [vmem:[%s2257 + $0x60] sm:$0xff]
        %v2275 = vld [vmem:[%s2257 + $0x68] sm:$0xf]
        %v2276 = vld [vmem:[%s2257 + $0x6c] sm:$0xff]
        %v2277 = vld [vmem:[%s2257 + $0x74] sm:$0xf]
        %v2278 = vld [vmem:[%s2257 + $0x78] sm:$0xff]
        %v2279 = vld [vmem:[%s2257 + $0x80] sm:$0xf]
        %v2280 = vld [vmem:[%s2257 + $0x84] sm:$0xff]
        %v2281 = vld [vmem:[%s2257 + $0x8c] sm:$0xf]
        %v2282 = vld [vmem:[%s2257 + $0x90] sm:$0xff]
        %v2283 = vld [vmem:[%s2257 + $0x98] sm:$0xf]
        %v2284 = vld [vmem:[%s2257 + $0x9c] sm:$0xff]
        %v2285 = vld [vmem:[%s2257 + $0xa4] sm:$0xf]
        %v2286 = vld [vmem:[%s2257 + $0xa8] sm:$0xff]
        %v2287 = vld [vmem:[%s2257 + $0xb0] sm:$0xf]
        %v2288 = vld [vmem:[%s2257 + $0xb4] sm:$0xff]
        %v2289 = vld [vmem:[%s2257 + $0xbc] sm:$0xf]
        %v2290 = vld [vmem:[%s2257 + $0xc0] sm:$0xff]
        %v2291 = vld [vmem:[%s2257 + $0xc8] sm:$0xf]
        %v2292 = vld [vmem:[%s2257 + $0xcc] sm:$0xff]
        %v2293 = vld [vmem:[%s2257 + $0xd4] sm:$0xf]
        %v2294 = vld [vmem:[%s2257 + $0xd8] sm:$0xff]
        %v2295 = vld [vmem:[%s2257 + $0xe0] sm:$0xf]
        %v2296 = vld [vmem:[%s2257 + $0xe4] sm:$0xff]
        %v2297 = vld [vmem:[%s2257 + $0xec] sm:$0xf]
        %v2298 = vld [vmem:[%s2257 + $0xf0] sm:$0xff]
        %v2299 = vld [vmem:[%s2257 + $0xf8] sm:$0xf]
        %v2300 = vld [vmem:[%s2257 + $0xfc] sm:$0xff]
        %v2301 = vld [vmem:[%s2257 + $0x104] sm:$0xf]
        %v2302 = vld [vmem:[%s2257 + $0x108] sm:$0xff]
        %v2303 = vld [vmem:[%s2257 + $0x110] sm:$0xf]
        %v2304 = vld [vmem:[%s2257 + $0x114] sm:$0xff]
        %v2305 = vld [vmem:[%s2257 + $0x11c] sm:$0xf]
        %v2306 = vld [vmem:[%s2257 + $0x120] sm:$0xff]
        %v2307 = vld [vmem:[%s2257 + $0x128] sm:$0xf]
        %v2308 = vld [vmem:[%s2257 + $0x12c] sm:$0xff]
        %v2309 = vld [vmem:[%s2257 + $0x134] sm:$0xf]
        %v2310 = vld [vmem:[%s2257 + $0x138] sm:$0xff]
        %v2311 = vld [vmem:[%s2257 + $0x140] sm:$0xf]
        %v2312 = vld [vmem:[%s2257 + $0x144] sm:$0xff]
        %v2313 = vld [vmem:[%s2257 + $0x14c] sm:$0xf]
        %v2314 = vld [vmem:[%s2257 + $0x150] sm:$0xff]
        %v2315 = vld [vmem:[%s2257 + $0x158] sm:$0xf]
        %v2316 = vld [vmem:[%s2257 + $0x15c] sm:$0xff]
        %v2317 = vld [vmem:[%s2257 + $0x164] sm:$0xf]
        %v2318 = vld [vmem:[%s2257 + $0x168] sm:$0xff]
        %v2319 = vld [vmem:[%s2257 + $0x170] sm:$0xf]
        %v2320 = vld [vmem:[%s2257 + $0x174] sm:$0xff]
        %v2321 = vld [vmem:[%s2257 + $0x17c] sm:$0xf]
        %v2322 = vld [vmem:[%s2257 + $0x180] sm:$0xff]
        %v2323 = vld [vmem:[%s2257 + $0x188] sm:$0xf]
        %v2324 = vld [vmem:[%s2257 + $0x18c] sm:$0xff]
        %v2325 = vld [vmem:[%s2257 + $0x194] sm:$0xf]
        %v2326 = vld [vmem:[%s2257 + $0x198] sm:$0xff]
        %v2327 = vld [vmem:[%s2257 + $0x1a0] sm:$0xf]
        %v2328 = vld [vmem:[%s2257 + $0x1a4] sm:$0xff]
        %v2329 = vld [vmem:[%s2257 + $0x1ac] sm:$0xf]
        %v2330 = vld [vmem:[%s2257 + $0x1b0] sm:$0xff]
        %v2331 = vld [vmem:[%s2257 + $0x1b8] sm:$0xf]
        %v2332 = vld [vmem:[%s2257 + $0x1bc] sm:$0xff]
        %v2333 = vld [vmem:[%s2257 + $0x1c4] sm:$0xf]
        %v2334 = vld [vmem:[%s2257 + $0x1c8] sm:$0xff]
        %v2335 = vld [vmem:[%s2257 + $0x1d0] sm:$0xf]
        %v2336 = vld [vmem:[%s2257 + $0x1d4] sm:$0xff]
        %v2337 = vld [vmem:[%s2257 + $0x1dc] sm:$0xf]
        %v2338 = vld [vmem:[%s2257 + $0x1e0] sm:$0xff]
        %v2339 = vld [vmem:[%s2257 + $0x1e8] sm:$0xf]
        %v2340 = vld [vmem:[%s2257 + $0x1ec] sm:$0xff]
        %v2341 = vld [vmem:[%s2257 + $0x1f4] sm:$0xf]
        %v2342 = vld [vmem:[%s2257 + $0x1f8] sm:$0xff]
        %v2343 = vld [vmem:[%s2257 + $0x200] sm:$0xf]
        %v2344 = vld [vmem:[%s2257 + $0x204] sm:$0xff]
        %v2345 = vld [vmem:[%s2257 + $0x20c] sm:$0xf]
        %v2346 = vld [vmem:[%s2257 + $0x210] sm:$0xff]
        %v2347 = vld [vmem:[%s2257 + $0x218] sm:$0xf]
        %v2348 = vld [vmem:[%s2257 + $0x21c] sm:$0xff]
        %v2349 = vld [vmem:[%s2257 + $0x224] sm:$0xf]
        %v2350 = vld [vmem:[%s2257 + $0x228] sm:$0xff]
        %v2351 = vld [vmem:[%s2257 + $0x230] sm:$0xf]
        %v2352 = vld [vmem:[%s2257 + $0x234] sm:$0xff]
        %v2353 = vld [vmem:[%s2257 + $0x23c] sm:$0xf]
        %v2450 = vunpack.c.l.b16 %v2258
        %v2451 = vunpack.c.h.b16 %v2258
        %v2452 = vunpack.c.l.b16 %v2259
        %v2453 = vunpack.c.l.b16 %v2260
        %v2454 = vunpack.c.h.b16 %v2260
        %v2455 = vunpack.c.l.b16 %v2261
        %v2456 = vunpack.c.l.b16 %v2262
        %v2457 = vunpack.c.h.b16 %v2262
        %v2458 = vunpack.c.l.b16 %v2263
        %v2459 = vunpack.c.l.b16 %v2264
        %v2460 = vunpack.c.h.b16 %v2264
        %v2461 = vunpack.c.l.b16 %v2265
        %v2462 = vunpack.c.l.b16 %v2266
        %v2463 = vunpack.c.h.b16 %v2266
        %v2464 = vunpack.c.l.b16 %v2267
        %v2465 = vunpack.c.l.b16 %v2268
        %v2466 = vunpack.c.h.b16 %v2268
        %v2467 = vunpack.c.l.b16 %v2269
        %v2468 = vunpack.c.l.b16 %v2270
        %v2469 = vunpack.c.h.b16 %v2270
        %v2470 = vunpack.c.l.b16 %v2271
        %v2471 = vunpack.c.l.b16 %v2272
        %v2472 = vunpack.c.h.b16 %v2272
        %v2473 = vunpack.c.l.b16 %v2273
        %v2474 = vunpack.c.l.b16 %v2274
        %v2475 = vunpack.c.h.b16 %v2274
        %v2476 = vunpack.c.l.b16 %v2275
        %v2477 = vunpack.c.l.b16 %v2276
        %v2478 = vunpack.c.h.b16 %v2276
        %v2479 = vunpack.c.l.b16 %v2277
        %v2480 = vunpack.c.l.b16 %v2278
        %v2481 = vunpack.c.h.b16 %v2278
        %v2482 = vunpack.c.l.b16 %v2279
        %v2483 = vunpack.c.l.b16 %v2280
        %v2484 = vunpack.c.h.b16 %v2280
        %v2485 = vunpack.c.l.b16 %v2281
        %v2486 = vunpack.c.l.b16 %v2282
        %v2487 = vunpack.c.h.b16 %v2282
        %v2488 = vunpack.c.l.b16 %v2283
        %v2489 = vunpack.c.l.b16 %v2284
        %v2490 = vunpack.c.h.b16 %v2284
        %v2491 = vunpack.c.l.b16 %v2285
        %v2492 = vunpack.c.l.b16 %v2286
        %v2493 = vunpack.c.h.b16 %v2286
        %v2494 = vunpack.c.l.b16 %v2287
        %v2495 = vunpack.c.l.b16 %v2288
        %v2496 = vunpack.c.h.b16 %v2288
        %v2497 = vunpack.c.l.b16 %v2289
        %v2498 = vunpack.c.l.b16 %v2290
        %v2499 = vunpack.c.h.b16 %v2290
        %v2500 = vunpack.c.l.b16 %v2291
        %v2501 = vunpack.c.l.b16 %v2292
        %v2502 = vunpack.c.h.b16 %v2292
        %v2503 = vunpack.c.l.b16 %v2293
        %v2504 = vunpack.c.l.b16 %v2294
        %v2505 = vunpack.c.h.b16 %v2294
        %v2506 = vunpack.c.l.b16 %v2295
        %v2507 = vunpack.c.l.b16 %v2296
        %v2508 = vunpack.c.h.b16 %v2296
        %v2509 = vunpack.c.l.b16 %v2297
        %v2510 = vunpack.c.l.b16 %v2298
        %v2511 = vunpack.c.h.b16 %v2298
        %v2512 = vunpack.c.l.b16 %v2299
        %v2513 = vunpack.c.l.b16 %v2300
        %v2514 = vunpack.c.h.b16 %v2300
        %v2515 = vunpack.c.l.b16 %v2301
        %v2516 = vunpack.c.l.b16 %v2302
        %v2517 = vunpack.c.h.b16 %v2302
        %v2518 = vunpack.c.l.b16 %v2303
        %v2519 = vunpack.c.l.b16 %v2304
        %v2520 = vunpack.c.h.b16 %v2304
        %v2521 = vunpack.c.l.b16 %v2305
        %v2522 = vunpack.c.l.b16 %v2306
        %v2523 = vunpack.c.h.b16 %v2306
        %v2524 = vunpack.c.l.b16 %v2307
        %v2525 = vunpack.c.l.b16 %v2308
        %v2526 = vunpack.c.h.b16 %v2308
        %v2527 = vunpack.c.l.b16 %v2309
        %v2528 = vunpack.c.l.b16 %v2310
        %v2529 = vunpack.c.h.b16 %v2310
        %v2530 = vunpack.c.l.b16 %v2311
        %v2531 = vunpack.c.l.b16 %v2312
        %v2532 = vunpack.c.h.b16 %v2312
        %v2533 = vunpack.c.l.b16 %v2313
        %v2534 = vunpack.c.l.b16 %v2314
        %v2535 = vunpack.c.h.b16 %v2314
        %v2536 = vunpack.c.l.b16 %v2315
        %v2537 = vunpack.c.l.b16 %v2316
        %v2538 = vunpack.c.h.b16 %v2316
        %v2539 = vunpack.c.l.b16 %v2317
        %v2540 = vunpack.c.l.b16 %v2318
        %v2541 = vunpack.c.h.b16 %v2318
        %v2542 = vunpack.c.l.b16 %v2319
        %v2543 = vunpack.c.l.b16 %v2320
        %v2544 = vunpack.c.h.b16 %v2320
        %v2545 = vunpack.c.l.b16 %v2321
        %v2546 = vunpack.c.l.b16 %v2322
        %v2547 = vunpack.c.h.b16 %v2322
        %v2548 = vunpack.c.l.b16 %v2323
        %v2549 = vunpack.c.l.b16 %v2324
        %v2550 = vunpack.c.h.b16 %v2324
        %v2551 = vunpack.c.l.b16 %v2325
        %v2552 = vunpack.c.l.b16 %v2326
        %v2553 = vunpack.c.h.b16 %v2326
        %v2554 = vunpack.c.l.b16 %v2327
        %v2555 = vunpack.c.l.b16 %v2328
        %v2556 = vunpack.c.h.b16 %v2328
        %v2557 = vunpack.c.l.b16 %v2329
        %v2558 = vunpack.c.l.b16 %v2330
        %v2559 = vunpack.c.h.b16 %v2330
        %v2560 = vunpack.c.l.b16 %v2331
        %v2561 = vunpack.c.l.b16 %v2332
        %v2562 = vunpack.c.h.b16 %v2332
        %v2563 = vunpack.c.l.b16 %v2333
        %v2564 = vunpack.c.l.b16 %v2334
        %v2565 = vunpack.c.h.b16 %v2334
        %v2566 = vunpack.c.l.b16 %v2335
        %v2567 = vunpack.c.l.b16 %v2336
        %v2568 = vunpack.c.h.b16 %v2336
        %v2569 = vunpack.c.l.b16 %v2337
        %v2570 = vunpack.c.l.b16 %v2338
        %v2571 = vunpack.c.h.b16 %v2338
        %v2572 = vunpack.c.l.b16 %v2339
        %v2573 = vunpack.c.l.b16 %v2340
        %v2574 = vunpack.c.h.b16 %v2340
        %v2575 = vunpack.c.l.b16 %v2341
        %v2576 = vunpack.c.l.b16 %v2342
        %v2577 = vunpack.c.h.b16 %v2342
        %v2578 = vunpack.c.l.b16 %v2343
        %v2579 = vunpack.c.l.b16 %v2344
        %v2580 = vunpack.c.h.b16 %v2344
        %v2581 = vunpack.c.l.b16 %v2345
        %v2582 = vunpack.c.l.b16 %v2346
        %v2583 = vunpack.c.h.b16 %v2346
        %v2584 = vunpack.c.l.b16 %v2347
        %v2585 = vunpack.c.l.b16 %v2348
        %v2586 = vunpack.c.h.b16 %v2348
        %v2587 = vunpack.c.l.b16 %v2349
        %v2588 = vunpack.c.l.b16 %v2350
        %v2589 = vunpack.c.h.b16 %v2350
        %v2590 = vunpack.c.l.b16 %v2351
        %v2591 = vunpack.c.l.b16 %v2352
        %v2592 = vunpack.c.h.b16 %v2352
        %v2593 = vunpack.c.l.b16 %v2353
        %v2594 = vpack.c.b16 %v2453, %v2450
        %v2595 = vpack.c.b16 %v2454, %v2451
        %v2596 = vpack.c.b16 %v2455, %v2452
        %v2597 = vpack.c.b16 %v2459, %v2456
        %v2598 = vpack.c.b16 %v2460, %v2457
        %v2599 = vpack.c.b16 %v2461, %v2458
        %v2600 = vpack.c.b16 %v2465, %v2462
        %v2601 = vpack.c.b16 %v2466, %v2463
        %v2602 = vpack.c.b16 %v2467, %v2464
        %v2603 = vpack.c.b16 %v2471, %v2468
        %v2604 = vpack.c.b16 %v2472, %v2469
        %v2605 = vpack.c.b16 %v2473, %v2470
        %v2606 = vpack.c.b16 %v2477, %v2474
        %v2607 = vpack.c.b16 %v2478, %v2475
        %v2608 = vpack.c.b16 %v2479, %v2476
        %v2609 = vpack.c.b16 %v2483, %v2480
        %v2610 = vpack.c.b16 %v2484, %v2481
        %v2611 = vpack.c.b16 %v2485, %v2482
        %v2612 = vpack.c.b16 %v2489, %v2486
        %v2613 = vpack.c.b16 %v2490, %v2487
        %v2614 = vpack.c.b16 %v2491, %v2488
        %v2615 = vpack.c.b16 %v2495, %v2492
        %v2616 = vpack.c.b16 %v2496, %v2493
        %v2617 = vpack.c.b16 %v2497, %v2494
        %v2618 = vpack.c.b16 %v2501, %v2498
        %v2619 = vpack.c.b16 %v2502, %v2499
        %v2620 = vpack.c.b16 %v2503, %v2500
        %v2621 = vpack.c.b16 %v2507, %v2504
        %v2622 = vpack.c.b16 %v2508, %v2505
        %v2623 = vpack.c.b16 %v2509, %v2506
        %v2624 = vpack.c.b16 %v2513, %v2510
        %v2625 = vpack.c.b16 %v2514, %v2511
        %v2626 = vpack.c.b16 %v2515, %v2512
        %v2627 = vpack.c.b16 %v2519, %v2516
        %v2628 = vpack.c.b16 %v2520, %v2517
        %v2629 = vpack.c.b16 %v2521, %v2518
        %v2630 = vpack.c.b16 %v2525, %v2522
        %v2631 = vpack.c.b16 %v2526, %v2523
        %v2632 = vpack.c.b16 %v2527, %v2524
        %v2633 = vpack.c.b16 %v2531, %v2528
        %v2634 = vpack.c.b16 %v2532, %v2529
        %v2635 = vpack.c.b16 %v2533, %v2530
        %v2636 = vpack.c.b16 %v2537, %v2534
        %v2637 = vpack.c.b16 %v2538, %v2535
        %v2638 = vpack.c.b16 %v2539, %v2536
        %v2639 = vpack.c.b16 %v2543, %v2540
        %v2640 = vpack.c.b16 %v2544, %v2541
        %v2641 = vpack.c.b16 %v2545, %v2542
        %v2642 = vpack.c.b16 %v2549, %v2546
        %v2643 = vpack.c.b16 %v2550, %v2547
        %v2644 = vpack.c.b16 %v2551, %v2548
        %v2645 = vpack.c.b16 %v2555, %v2552
        %v2646 = vpack.c.b16 %v2556, %v2553
        %v2647 = vpack.c.b16 %v2557, %v2554
        %v2648 = vpack.c.b16 %v2561, %v2558
        %v2649 = vpack.c.b16 %v2562, %v2559
        %v2650 = vpack.c.b16 %v2563, %v2560
        %v2651 = vpack.c.b16 %v2567, %v2564
        %v2652 = vpack.c.b16 %v2568, %v2565
        %v2653 = vpack.c.b16 %v2569, %v2566
        %v2654 = vpack.c.b16 %v2573, %v2570
        %v2655 = vpack.c.b16 %v2574, %v2571
        %v2656 = vpack.c.b16 %v2575, %v2572
        %v2657 = vpack.c.b16 %v2579, %v2576
        %v2658 = vpack.c.b16 %v2580, %v2577
        %v2659 = vpack.c.b16 %v2581, %v2578
        %v2660 = vpack.c.b16 %v2585, %v2582
        %v2661 = vpack.c.b16 %v2586, %v2583
        %v2662 = vpack.c.b16 %v2587, %v2584
        %v2663 = vpack.c.b16 %v2591, %v2588
        %v2664 = vpack.c.b16 %v2592, %v2589
        %v2665 = vpack.c.b16 %v2593, %v2590
        %2738 = vmatprep.subr.bf16.mxu0 %v2595
        %2739 = vmatpush1.bf16.msra.mxu0 %v2594
        %2740 = vmatprep.subr.bf16.mxu0 %v2598
        %2741 = vmatpush1.bf16.msra.mxu0 %v2597
        %2742 = vmatprep.subr.bf16.mxu0 %v2601
        %2743 = vmatpush1.bf16.msra.mxu0 %v2600
        %2744 = vmatprep.subr.bf16.mxu0 %v2604
        %2745 = vmatpush1.bf16.msra.mxu0 %v2603
        %2746 = vmatprep.subr.bf16.mxu0 %v2607
        %2747 = vmatpush1.bf16.msra.mxu0 %v2606
        %2748 = vmatprep.subr.bf16.mxu0 %v2610
        %2749 = vmatpush1.bf16.msra.mxu0 %v2609
        %2750 = vmatprep.subr.bf16.mxu0 %v2613
        %2751 = vmatpush1.bf16.msra.mxu0 %v2612
        %2752 = vmatprep.subr.bf16.mxu0 %v2616
        %2753 = vmatpush1.bf16.msra.mxu0 %v2615
        %2754 = vmatprep.subr.bf16.mxu0 %v2619
        %2755 = vmatpush1.bf16.msra.mxu0 %v2618
        %2756 = vmatprep.subr.bf16.mxu0 %v2622
        %2757 = vmatpush1.bf16.msra.mxu0 %v2621
        %2758 = vmatprep.subr.bf16.mxu0 %v2625
        %2759 = vmatpush1.bf16.msra.mxu0 %v2624
        %2760 = vmatprep.subr.bf16.mxu0 %v2628
        %2761 = vmatpush1.bf16.msra.mxu0 %v2627
        %2762 = vmatprep.subr.bf16.mxu0 %v2631
        %2763 = vmatpush1.bf16.msra.mxu0 %v2630
        %2764 = vmatprep.subr.bf16.mxu0 %v2634
        %2765 = vmatpush1.bf16.msra.mxu0 %v2633
        %2766 = vmatprep.subr.bf16.mxu0 %v2637
        %2767 = vmatpush1.bf16.msra.mxu0 %v2636
        %2768 = vmatprep.subr.bf16.mxu0 %v2640
        %2769 = vmatpush1.bf16.msra.mxu0 %v2639
        %2770 = vmatprep.mubr.bf16.mxu0 %v2255
        %2771 = vmatmul.mubr.bf16.gmra.mrb[0].mxu0 %v2254
        %v2772 = vpop.f32.mrb[0].mxu0
        %v2773 = vadd.f32 0.0, %v2772
        %v2774 = vpop.f32.mrb[0].mxu0
        %v2775 = vadd.f32 0.0, %v2774
        %v2776 = vpop.f32.mrb[0].mxu0
        %v2777 = vpop.f32.mrb[0].mxu0
        %2778 = vdwg.mxu0
        %2779 = vmatprep.subr.bf16.mxu0 %v2643
        %2780 = vmatpush1.bf16.msra.mxu0 %v2642
        %2781 = vmatprep.subr.bf16.mxu0 %v2646
        %2782 = vmatpush1.bf16.msra.mxu0 %v2645
        %2783 = vmatprep.subr.bf16.mxu0 %v2649
        %2784 = vmatpush1.bf16.msra.mxu0 %v2648
        %2785 = vmatprep.subr.bf16.mxu0 %v2652
        %2786 = vmatpush1.bf16.msra.mxu0 %v2651
        %2787 = vmatprep.subr.bf16.mxu0 %v2655
        %2788 = vmatpush1.bf16.msra.mxu0 %v2654
        %2789 = vmatprep.subr.bf16.mxu0 %v2658
        %2790 = vmatpush1.bf16.msra.mxu0 %v2657
        %2791 = vmatprep.subr.bf16.mxu0 %v2661
        %2792 = vmatpush1.bf16.msra.mxu0 %v2660
        %2793 = vmatprep.subr.bf16.mxu0 %v2664
        %2794 = vmatpush1.bf16.msra.mxu0 %v2663
        %2795 = vmatprep.subr.bf16.mxu0 0
        %2796 = vmatpush1.bf16.msra.mxu0 0
        %2797 = vmatprep.subr.bf16.mxu0 0
        %2798 = vmatpush1.bf16.msra.mxu0 0
        %2799 = vmatprep.subr.bf16.mxu0 0
        %2800 = vmatpush1.bf16.msra.mxu0 0
        %2801 = vmatprep.subr.bf16.mxu0 0
        %2802 = vmatpush1.bf16.msra.mxu0 0
        %2803 = vmatprep.subr.bf16.mxu0 0
        %2804 = vmatpush1.bf16.msra.mxu0 0
        %2805 = vmatprep.subr.bf16.mxu0 0
        %2806 = vmatpush1.bf16.msra.mxu0 0
        %2807 = vmatprep.subr.bf16.mxu0 0
        %2808 = vmatpush1.bf16.msra.mxu0 0
        %2809 = vmatprep.subr.bf16.mxu0 0
        %2810 = vmatpush1.bf16.msra.mxu0 0
        %2811 = vmatprep.mubr.bf16.mxu0 0
        %2812 = vmatmul.mubr.bf16.gmra.mrb[0].mxu0 %v2256
        %v2813 = vpop.f32.mrb[0].mxu0
        %v2814 = vadd.f32 %v2773, %v2813
        %v2815 = vpop.f32.mrb[0].mxu0
        %v2816 = vadd.f32 %v2775, %v2815
        %v2817 = vpop.f32.mrb[0].mxu0
        %v2818 = vpop.f32.mrb[0].mxu0
        %2819 = vdwg.mxu0
        %2820 = vmatprep.subr.bf16.mxu0 0
        %2821 = vmatpush1.bf16.msra.mxu0 %v2596
        %2822 = vmatprep.subr.bf16.mxu0 0
        %2823 = vmatpush1.bf16.msra.mxu0 %v2599
        %2824 = vmatprep.subr.bf16.mxu0 0
        %2825 = vmatpush1.bf16.msra.mxu0 %v2602
        %2826 = vmatprep.subr.bf16.mxu0 0
        %2827 = vmatpush1.bf16.msra.mxu0 %v2605
        %2828 = vmatprep.subr.bf16.mxu0 0
        %2829 = vmatpush1.bf16.msra.mxu0 %v2608
        %2830 = vmatprep.subr.bf16.mxu0 0
        %2831 = vmatpush1.bf16.msra.mxu0 %v2611
        %2832 = vmatprep.subr.bf16.mxu0 0
        %2833 = vmatpush1.bf16.msra.mxu0 %v2614
        %2834 = vmatprep.subr.bf16.mxu0 0
        %2835 = vmatpush1.bf16.msra.mxu0 %v2617
        %2836 = vmatprep.subr.bf16.mxu0 0
        %2837 = vmatpush1.bf16.msra.mxu0 %v2620
        %2838 = vmatprep.subr.bf16.mxu0 0
        %2839 = vmatpush1.bf16.msra.mxu0 %v2623
        %2840 = vmatprep.subr.bf16.mxu0 0
        %2841 = vmatpush1.bf16.msra.mxu0 %v2626
        %2842 = vmatprep.subr.bf16.mxu0 0
        %2843 = vmatpush1.bf16.msra.mxu0 %v2629
        %2844 = vmatprep.subr.bf16.mxu0 0
        %2845 = vmatpush1.bf16.msra.mxu0 %v2632
        %2846 = vmatprep.subr.bf16.mxu0 0
        %2847 = vmatpush1.bf16.msra.mxu0 %v2635
        %2848 = vmatprep.subr.bf16.mxu0 0
        %2849 = vmatpush1.bf16.msra.mxu0 %v2638
        %2850 = vmatprep.subr.bf16.mxu0 0
        %2851 = vmatpush1.bf16.msra.mxu0 %v2641
        %2852 = vmatprep.mubr.bf16.mxu0 %v2255
        %2853 = vmatmul.mubr.bf16.gmra.mrb[0].mxu0 %v2254
        %v2854 = vpop.f32.mrb[0].mxu0
        %v2855 = vadd.f32 0.0, %v2854
        %v2856 = vpop.f32.mrb[0].mxu0
        %v2857 = vpop.f32.mrb[0].mxu0
        %v2858 = vpop.f32.mrb[0].mxu0
        %2859 = vdwg.mxu0
        %2860 = vmatprep.subr.bf16.mxu0 0
        %2861 = vmatpush1.bf16.msra.mxu0 %v2644
        %2862 = vmatprep.subr.bf16.mxu0 0
        %2863 = vmatpush1.bf16.msra.mxu0 %v2647
        %2864 = vmatprep.subr.bf16.mxu0 0
        %2865 = vmatpush1.bf16.msra.mxu0 %v2650
        %2866 = vmatprep.subr.bf16.mxu0 0
        %2867 = vmatpush1.bf16.msra.mxu0 %v2653
        %2868 = vmatprep.subr.bf16.mxu0 0
        %2869 = vmatpush1.bf16.msra.mxu0 %v2656
        %2870 = vmatprep.subr.bf16.mxu0 0
        %2871 = vmatpush1.bf16.msra.mxu0 %v2659
        %2872 = vmatprep.subr.bf16.mxu0 0
        %2873 = vmatpush1.bf16.msra.mxu0 %v2662
        %2874 = vmatprep.subr.bf16.mxu0 0
        %2875 = vmatpush1.bf16.msra.mxu0 %v2665
        %2876 = vmatprep.subr.bf16.mxu0 0
        %2877 = vmatpush1.bf16.msra.mxu0 0
        %2878 = vmatprep.subr.bf16.mxu0 0
        %2879 = vmatpush1.bf16.msra.mxu0 0
        %2880 = vmatprep.subr.bf16.mxu0 0
        %2881 = vmatpush1.bf16.msra.mxu0 0
        %2882 = vmatprep.subr.bf16.mxu0 0
        %2883 = vmatpush1.bf16.msra.mxu0 0
        %2884 = vmatprep.subr.bf16.mxu0 0
        %2885 = vmatpush1.bf16.msra.mxu0 0
        %2886 = vmatprep.subr.bf16.mxu0 0
        %2887 = vmatpush1.bf16.msra.mxu0 0
        %2888 = vmatprep.subr.bf16.mxu0 0
        %2889 = vmatpush1.bf16.msra.mxu0 0
        %2890 = vmatprep.subr.bf16.mxu0 0
        %2891 = vmatpush1.bf16.msra.mxu0 0
        %2892 = vmatprep.mubr.bf16.mxu0 0
        %2893 = vmatmul.mubr.bf16.gmra.mrb[0].mxu0 %v2256
        %v2894 = vpop.f32.mrb[0].mxu0
        %v2895 = vadd.f32 %v2855, %v2894
        %v2896 = vpop.f32.mrb[0].mxu0
        %v2897 = vpop.f32.mrb[0].mxu0
        %v2898 = vpop.f32.mrb[0].mxu0
        %2899 = vdwg.mxu0
        %v2901 = vrot.slane %v2251, 1
        %v2903 = vpack.c.bf16 %v2251, %v2251
        %v2904 = vpack.c.bf16 %v2901, %v2901
        %s2905 = scalar_lea.vmem [#allocation5], 256
        %v2906 = vld [vmem:[%s2905] sm:$0xff]
        %v2907 = vld [vmem:[%s2905 + $0x8] sm:$0xff]
        %v2908 = vld [vmem:[%s2905 + $0x10] sm:$0xff]
        %v2909 = vld [vmem:[%s2905 + $0x18] sm:$0xff]
        %v2910 = vld [vmem:[%s2905 + $0x20] sm:$0xff]
        %v2911 = vld [vmem:[%s2905 + $0x28] sm:$0xff]
        %v2912 = vld [vmem:[%s2905 + $0x30] sm:$0xff]
        %v2913 = vld [vmem:[%s2905 + $0x38] sm:$0xff]
        %v2914 = vld [vmem:[%s2905 + $0x40] sm:$0xff]
        %v2915 = vld [vmem:[%s2905 + $0x48] sm:$0xff]
        %v2916 = vld [vmem:[%s2905 + $0x50] sm:$0xff]
        %v2917 = vld [vmem:[%s2905 + $0x58] sm:$0xff]
        %v2918 = vld [vmem:[%s2905 + $0x60] sm:$0xff]
        %v2919 = vld [vmem:[%s2905 + $0x68] sm:$0xff]
        %v2920 = vld [vmem:[%s2905 + $0x70] sm:$0xff]
        %v2921 = vld [vmem:[%s2905 + $0x78] sm:$0xff]
        %v2922 = vld [vmem:[%s2905 + $0x80] sm:$0xff]
        %v2923 = vld [vmem:[%s2905 + $0x88] sm:$0xff]
        %v2924 = vld [vmem:[%s2905 + $0x90] sm:$0xff]
        %v2925 = vld [vmem:[%s2905 + $0x98] sm:$0xff]
        %v2926 = vld [vmem:[%s2905 + $0xa0] sm:$0xff]
        %v2927 = vld [vmem:[%s2905 + $0xa8] sm:$0xff]
        %v2928 = vld [vmem:[%s2905 + $0xb0] sm:$0xff]
        %v2929 = vld [vmem:[%s2905 + $0xb8] sm:$0xff]
        %v2930 = vld [vmem:[%s2905 + $0xc0] sm:$0xff]
        %v2931 = vld [vmem:[%s2905 + $0xc8] sm:$0xff]
        %v2932 = vld [vmem:[%s2905 + $0xd0] sm:$0xff]
        %v2933 = vld [vmem:[%s2905 + $0xd8] sm:$0xff]
        %v2934 = vld [vmem:[%s2905 + $0xe0] sm:$0xff]
        %v2935 = vld [vmem:[%s2905 + $0xe8] sm:$0xff]
        %v2936 = vld [vmem:[%s2905 + $0xf0] sm:$0xff]
        %v2937 = vld [vmem:[%s2905 + $0xf8] sm:$0xff]
        %v2970 = vunpack.c.l.b16 %v2906
        %v2971 = vunpack.c.h.b16 %v2906
        %v2972 = vunpack.c.l.b16 %v2907
        %v2973 = vunpack.c.h.b16 %v2907
        %v2974 = vunpack.c.l.b16 %v2908
        %v2975 = vunpack.c.h.b16 %v2908
        %v2976 = vunpack.c.l.b16 %v2909
        %v2977 = vunpack.c.h.b16 %v2909
        %v2978 = vunpack.c.l.b16 %v2910
        %v2979 = vunpack.c.h.b16 %v2910
        %v2980 = vunpack.c.l.b16 %v2911
        %v2981 = vunpack.c.h.b16 %v2911
        %v2982 = vunpack.c.l.b16 %v2912
        %v2983 = vunpack.c.h.b16 %v2912
        %v2984 = vunpack.c.l.b16 %v2913
        %v2985 = vunpack.c.h.b16 %v2913
        %v2986 = vunpack.c.l.b16 %v2914
        %v2987 = vunpack.c.h.b16 %v2914
        %v2988 = vunpack.c.l.b16 %v2915
        %v2989 = vunpack.c.h.b16 %v2915
        %v2990 = vunpack.c.l.b16 %v2916
        %v2991 = vunpack.c.h.b16 %v2916
        %v2992 = vunpack.c.l.b16 %v2917
        %v2993 = vunpack.c.h.b16 %v2917
        %v2994 = vunpack.c.l.b16 %v2918
        %v2995 = vunpack.c.h.b16 %v2918
        %v2996 = vunpack.c.l.b16 %v2919
        %v2997 = vunpack.c.h.b16 %v2919
        %v2998 = vunpack.c.l.b16 %v2920
        %v2999 = vunpack.c.h.b16 %v2920
        %v3000 = vunpack.c.l.b16 %v2921
        %v3001 = vunpack.c.h.b16 %v2921
        %v3002 = vunpack.c.l.b16 %v2922
        %v3003 = vunpack.c.h.b16 %v2922
        %v3004 = vunpack.c.l.b16 %v2923
        %v3005 = vunpack.c.h.b16 %v2923
        %v3006 = vunpack.c.l.b16 %v2924
        %v3007 = vunpack.c.h.b16 %v2924
        %v3008 = vunpack.c.l.b16 %v2925
        %v3009 = vunpack.c.h.b16 %v2925
        %v3010 = vunpack.c.l.b16 %v2926
        %v3011 = vunpack.c.h.b16 %v2926
        %v3012 = vunpack.c.l.b16 %v2927
        %v3013 = vunpack.c.h.b16 %v2927
        %v3014 = vunpack.c.l.b16 %v2928
        %v3015 = vunpack.c.h.b16 %v2928
        %v3016 = vunpack.c.l.b16 %v2929
        %v3017 = vunpack.c.h.b16 %v2929
        %v3018 = vunpack.c.l.b16 %v2930
        %v3019 = vunpack.c.h.b16 %v2930
        %v3020 = vunpack.c.l.b16 %v2931
        %v3021 = vunpack.c.h.b16 %v2931
        %v3022 = vunpack.c.l.b16 %v2932
        %v3023 = vunpack.c.h.b16 %v2932
        %v3024 = vunpack.c.l.b16 %v2933
        %v3025 = vunpack.c.h.b16 %v2933
        %v3026 = vunpack.c.l.b16 %v2934
        %v3027 = vunpack.c.h.b16 %v2934
        %v3028 = vunpack.c.l.b16 %v2935
        %v3029 = vunpack.c.h.b16 %v2935
        %v3030 = vunpack.c.l.b16 %v2936
        %v3031 = vunpack.c.h.b16 %v2936
        %v3032 = vunpack.c.l.b16 %v2937
        %v3033 = vunpack.c.h.b16 %v2937
        %v3034 = vpack.c.b16 %v2972, %v2970
        %v3035 = vpack.c.b16 %v2973, %v2971
        %v3036 = vpack.c.b16 %v2976, %v2974
        %v3037 = vpack.c.b16 %v2977, %v2975
        %v3038 = vpack.c.b16 %v2980, %v2978
        %v3039 = vpack.c.b16 %v2981, %v2979
        %v3040 = vpack.c.b16 %v2984, %v2982
        %v3041 = vpack.c.b16 %v2985, %v2983
        %v3042 = vpack.c.b16 %v2988, %v2986
        %v3043 = vpack.c.b16 %v2989, %v2987
        %v3044 = vpack.c.b16 %v2992, %v2990
        %v3045 = vpack.c.b16 %v2993, %v2991
        %v3046 = vpack.c.b16 %v2996, %v2994
        %v3047 = vpack.c.b16 %v2997, %v2995
        %v3048 = vpack.c.b16 %v3000, %v2998
        %v3049 = vpack.c.b16 %v3001, %v2999
        %v3050 = vpack.c.b16 %v3004, %v3002
        %v3051 = vpack.c.b16 %v3005, %v3003
        %v3052 = vpack.c.b16 %v3008, %v3006
        %v3053 = vpack.c.b16 %v3009, %v3007
        %v3054 = vpack.c.b16 %v3012, %v3010
        %v3055 = vpack.c.b16 %v3013, %v3011
        %v3056 = vpack.c.b16 %v3016, %v3014
        %v3057 = vpack.c.b16 %v3017, %v3015
        %v3058 = vpack.c.b16 %v3020, %v3018
        %v3059 = vpack.c.b16 %v3021, %v3019
        %v3060 = vpack.c.b16 %v3024, %v3022
        %v3061 = vpack.c.b16 %v3025, %v3023
        %v3062 = vpack.c.b16 %v3028, %v3026
        %v3063 = vpack.c.b16 %v3029, %v3027
        %v3064 = vpack.c.b16 %v3032, %v3030
        %v3065 = vpack.c.b16 %v3033, %v3031
        %3098 = vmatprep.subr.bf16.mxu0 %v3035
        %3099 = vmatpush1.bf16.msra.mxu0 %v3034
        %3100 = vmatprep.subr.bf16.mxu0 %v3037
        %3101 = vmatpush1.bf16.msra.mxu0 %v3036
        %3102 = vmatprep.subr.bf16.mxu0 %v3039
        %3103 = vmatpush1.bf16.msra.mxu0 %v3038
        %3104 = vmatprep.subr.bf16.mxu0 %v3041
        %3105 = vmatpush1.bf16.msra.mxu0 %v3040
        %3106 = vmatprep.subr.bf16.mxu0 %v3043
        %3107 = vmatpush1.bf16.msra.mxu0 %v3042
        %3108 = vmatprep.subr.bf16.mxu0 %v3045
        %3109 = vmatpush1.bf16.msra.mxu0 %v3044
        %3110 = vmatprep.subr.bf16.mxu0 %v3047
        %3111 = vmatpush1.bf16.msra.mxu0 %v3046
        %3112 = vmatprep.subr.bf16.mxu0 %v3049
        %3113 = vmatpush1.bf16.msra.mxu0 %v3048
        %3114 = vmatprep.subr.bf16.mxu0 %v3051
        %3115 = vmatpush1.bf16.msra.mxu0 %v3050
        %3116 = vmatprep.subr.bf16.mxu0 %v3053
        %3117 = vmatpush1.bf16.msra.mxu0 %v3052
        %3118 = vmatprep.subr.bf16.mxu0 %v3055
        %3119 = vmatpush1.bf16.msra.mxu0 %v3054
        %3120 = vmatprep.subr.bf16.mxu0 %v3057
        %3121 = vmatpush1.bf16.msra.mxu0 %v3056
        %3122 = vmatprep.subr.bf16.mxu0 %v3059
        %3123 = vmatpush1.bf16.msra.mxu0 %v3058
        %3124 = vmatprep.subr.bf16.mxu0 %v3061
        %3125 = vmatpush1.bf16.msra.mxu0 %v3060
        %3126 = vmatprep.subr.bf16.mxu0 %v3063
        %3127 = vmatpush1.bf16.msra.mxu0 %v3062
        %3128 = vmatprep.subr.bf16.mxu0 %v3065
        %3129 = vmatpush1.bf16.msra.mxu0 %v3064
        %3130 = vmatprep.mubr.bf16.mxu0 %v2904
        %3131 = vmatmul.mubr.bf16.gmra.mrb[0].mxu0 %v2903
        %v3132 = vpop.f32.mrb[0].mxu0
        %v3133 = vadd.f32 0.0, %v3132
        %v3134 = vpop.f32.mrb[0].mxu0
        %v3135 = vadd.f32 0.0, %v3134
        %v3136 = vpop.f32.mrb[0].mxu0
        %v3137 = vpop.f32.mrb[0].mxu0
        %3138 = vdwg.mxu0
        %v3139 = vlaneseq
        %v3140 = vshrl.u32 %v3139, 7
        %v3141 = vsub.s32 0, %v3140
        %v3142 = vrot.slane %v3133, %v3141
        %v3143 = vadd.f32 %v2814, %v3142
        %v3144 = vlaneseq
        %v3145 = vshrl.u32 %v3144, 7
        %v3146 = vsub.s32 1, %v3145
        %v3147 = vrot.slane %v571, %v3146
        %v3148 = vadd.f32 %v3143, %v3147
        %v3149 = vlaneseq
        %v3150 = vshrl.u32 %v3149, 7
        %v3151 = vsub.s32 0, %v3150
        %v3152 = vrot.slane %v3135, %v3151
        %v3153 = vadd.f32 %v2816, %v3152
        %v3154 = vlaneseq
        %v3155 = vshrl.u32 %v3154, 7
        %v3156 = vsub.s32 1, %v3155
        %v3157 = vrot.slane %v570, %v3156
        %v3158 = vadd.f32 %v3153, %v3157
        %s3159 = scalar_lea.vmem [#allocation7], 128
        %v3160 = vld [vmem:[%s3159] sm:$0xff]
        %v3161 = vld [vmem:[%s3159 + $0x8] sm:$0xff]
        %v3162 = vld [vmem:[%s3159 + $0x10] sm:$0xff]
        %v3163 = vld [vmem:[%s3159 + $0x18] sm:$0xff]
        %v3164 = vld [vmem:[%s3159 + $0x20] sm:$0xff]
        %v3165 = vld [vmem:[%s3159 + $0x28] sm:$0xff]
        %v3166 = vld [vmem:[%s3159 + $0x30] sm:$0xff]
        %v3167 = vld [vmem:[%s3159 + $0x38] sm:$0xff]
        %v3168 = vld [vmem:[%s3159 + $0x40] sm:$0xff]
        %v3169 = vld [vmem:[%s3159 + $0x48] sm:$0xff]
        %v3170 = vld [vmem:[%s3159 + $0x50] sm:$0xff]
        %v3171 = vld [vmem:[%s3159 + $0x58] sm:$0xff]
        %v3172 = vld [vmem:[%s3159 + $0x60] sm:$0xff]
        %v3173 = vld [vmem:[%s3159 + $0x68] sm:$0xff]
        %v3174 = vld [vmem:[%s3159 + $0x70] sm:$0xff]
        %v3175 = vld [vmem:[%s3159 + $0x78] sm:$0xff]
        %v3192 = vunpack.c.l.b16 %v3160
        %v3193 = vunpack.c.h.b16 %v3160
        %v3194 = vunpack.c.l.b16 %v3161
        %v3195 = vunpack.c.h.b16 %v3161
        %v3196 = vunpack.c.l.b16 %v3162
        %v3197 = vunpack.c.h.b16 %v3162
        %v3198 = vunpack.c.l.b16 %v3163
        %v3199 = vunpack.c.h.b16 %v3163
        %v3200 = vunpack.c.l.b16 %v3164
        %v3201 = vunpack.c.h.b16 %v3164
        %v3202 = vunpack.c.l.b16 %v3165
        %v3203 = vunpack.c.h.b16 %v3165
        %v3204 = vunpack.c.l.b16 %v3166
        %v3205 = vunpack.c.h.b16 %v3166
        %v3206 = vunpack.c.l.b16 %v3167
        %v3207 = vunpack.c.h.b16 %v3167
        %v3208 = vunpack.c.l.b16 %v3168
        %v3209 = vunpack.c.h.b16 %v3168
        %v3210 = vunpack.c.l.b16 %v3169
        %v3211 = vunpack.c.h.b16 %v3169
        %v3212 = vunpack.c.l.b16 %v3170
        %v3213 = vunpack.c.h.b16 %v3170
        %v3214 = vunpack.c.l.b16 %v3171
        %v3215 = vunpack.c.h.b16 %v3171
        %v3216 = vunpack.c.l.b16 %v3172
        %v3217 = vunpack.c.h.b16 %v3172
        %v3218 = vunpack.c.l.b16 %v3173
        %v3219 = vunpack.c.h.b16 %v3173
        %v3220 = vunpack.c.l.b16 %v3174
        %v3221 = vunpack.c.h.b16 %v3174
        %v3222 = vunpack.c.l.b16 %v3175
        %v3223 = vunpack.c.h.b16 %v3175
        %v3224 = vpack.c.b16 %v3194, %v3192
        %v3225 = vpack.c.b16 %v3195, %v3193
        %v3226 = vpack.c.b16 %v3198, %v3196
        %v3227 = vpack.c.b16 %v3199, %v3197
        %v3228 = vpack.c.b16 %v3202, %v3200
        %v3229 = vpack.c.b16 %v3203, %v3201
        %v3230 = vpack.c.b16 %v3206, %v3204
        %v3231 = vpack.c.b16 %v3207, %v3205
        %v3232 = vpack.c.b16 %v3210, %v3208
        %v3233 = vpack.c.b16 %v3211, %v3209
        %v3234 = vpack.c.b16 %v3214, %v3212
        %v3235 = vpack.c.b16 %v3215, %v3213
        %v3236 = vpack.c.b16 %v3218, %v3216
        %v3237 = vpack.c.b16 %v3219, %v3217
        %v3238 = vpack.c.b16 %v3222, %v3220
        %v3239 = vpack.c.b16 %v3223, %v3221
        %3256 = vmatprep.subr.bf16.mxu0 %v3225
        %3257 = vmatpush1.bf16.msra.mxu0 %v3224
        %3258 = vmatprep.subr.bf16.mxu0 %v3227
        %3259 = vmatpush1.bf16.msra.mxu0 %v3226
        %3260 = vmatprep.subr.bf16.mxu0 %v3229
        %3261 = vmatpush1.bf16.msra.mxu0 %v3228
        %3262 = vmatprep.subr.bf16.mxu0 %v3231
        %3263 = vmatpush1.bf16.msra.mxu0 %v3230
        %3264 = vmatprep.subr.bf16.mxu0 %v3233
        %3265 = vmatpush1.bf16.msra.mxu0 %v3232
        %3266 = vmatprep.subr.bf16.mxu0 %v3235
        %3267 = vmatpush1.bf16.msra.mxu0 %v3234
        %3268 = vmatprep.subr.bf16.mxu0 %v3237
        %3269 = vmatpush1.bf16.msra.mxu0 %v3236
        %3270 = vmatprep.subr.bf16.mxu0 %v3239
        %3271 = vmatpush1.bf16.msra.mxu0 %v3238
        %3272 = vmatprep.subr.bf16.mxu0 0
        %3273 = vmatpush1.bf16.msra.mxu0 0
        %3274 = vmatprep.subr.bf16.mxu0 0
        %3275 = vmatpush1.bf16.msra.mxu0 0
        %3276 = vmatprep.subr.bf16.mxu0 0
        %3277 = vmatpush1.bf16.msra.mxu0 0
        %3278 = vmatprep.subr.bf16.mxu0 0
        %3279 = vmatpush1.bf16.msra.mxu0 0
        %3280 = vmatprep.subr.bf16.mxu0 0
        %3281 = vmatpush1.bf16.msra.mxu0 0
        %3282 = vmatprep.subr.bf16.mxu0 0
        %3283 = vmatpush1.bf16.msra.mxu0 0
        %3284 = vmatprep.subr.bf16.mxu0 0
        %3285 = vmatpush1.bf16.msra.mxu0 0
        %3286 = vmatprep.subr.bf16.mxu0 0
        %3287 = vmatpush1.bf16.msra.mxu0 0
        %3288 = vmatprep.mubr.bf16.mxu0 0
        %3289 = vmatmul.mubr.bf16.gmra.mrb[0].mxu0 %v2201
        %v3290 = vpop.f32.mrb[0].mxu0
        %v3291 = vadd.f32 0.0, %v3290
        %v3292 = vpop.f32.mrb[0].mxu0
        %v3293 = vadd.f32 0.0, %v3292
        %v3294 = vpop.f32.mrb[0].mxu0
        %v3295 = vadd.f32 0.0, %v3294
        %v3296 = vpop.f32.mrb[0].mxu0
        %v3297 = vadd.f32 0.0, %v3296
        %3298 = vmatprep.mubr.bf16.mxu0 0
        %3299 = vmatmul.mubr.bf16.gmra.mrb[0].mxu0 %v2202
        %v3300 = vpop.f32.mrb[0].mxu0
        %v3301 = vadd.f32 0.0, %v3300
        %v3302 = vpop.f32.mrb[0].mxu0
        %v3303 = vadd.f32 0.0, %v3302
        %v3304 = vpop.f32.mrb[0].mxu0
        %v3305 = vadd.f32 0.0, %v3304
        %v3306 = vpop.f32.mrb[0].mxu0
        %v3307 = vadd.f32 0.0, %v3306
        %3308 = vmatprep.mubr.bf16.mxu0 0
        %3309 = vmatmul.mubr.bf16.gmra.mrb[0].mxu0 %v2203
        %v3310 = vpop.f32.mrb[0].mxu0
        %v3311 = vadd.f32 0.0, %v3310
        %v3312 = vpop.f32.mrb[0].mxu0
        %v3313 = vadd.f32 0.0, %v3312
        %v3314 = vpop.f32.mrb[0].mxu0
        %v3315 = vadd.f32 0.0, %v3314
        %v3316 = vpop.f32.mrb[0].mxu0
        %v3317 = vadd.f32 0.0, %v3316
        %3318 = vmatprep.mubr.bf16.mxu0 0
        %3319 = vmatmul.mubr.bf16.gmra.mrb[0].mxu0 %v2204
        %v3320 = vpop.f32.mrb[0].mxu0
        %v3321 = vadd.f32 0.0, %v3320
        %v3322 = vpop.f32.mrb[0].mxu0
        %v3323 = vadd.f32 0.0, %v3322
        %v3324 = vpop.f32.mrb[0].mxu0
        %v3325 = vadd.f32 0.0, %v3324
        %v3326 = vpop.f32.mrb[0].mxu0
        %v3327 = vadd.f32 0.0, %v3326
        %3328 = vdwg.mxu0
        %v3329 = vpack.c.bf16 %v3158, %v3148
        %v3330 = vpack.c.bf16 %v2895, %v2895
        %v3331 = vpack.c.bf16 %v3297, %v3293
        %v3332 = vpack.c.bf16 %v3307, %v3303
        %v3333 = vpack.c.bf16 %v3317, %v3313
        %v3334 = vpack.c.bf16 %v3327, %v3323
        %3335 = vmatprep.subr.bf16.mxu0 0
        %3336 = vmatpush1.bf16.msra.mxu0 %v3331
        %3337 = vmatprep.subr.bf16.mxu0 0
        %3338 = vmatpush1.bf16.msra.mxu0 %v3332
        %3339 = vmatprep.subr.bf16.mxu0 0
        %3340 = vmatpush1.bf16.msra.mxu0 %v3333
        %3341 = vmatprep.subr.bf16.mxu0 0
        %3342 = vmatpush1.bf16.msra.mxu0 %v3334
        %3343 = vmatprep.subr.bf16.mxu0 0
        %3344 = vmatpush1.bf16.msra.mxu0 0
        %3345 = vmatprep.subr.bf16.mxu0 0
        %3346 = vmatpush1.bf16.msra.mxu0 0
        %3347 = vmatprep.subr.bf16.mxu0 0
        %3348 = vmatpush1.bf16.msra.mxu0 0
        %3349 = vmatprep.subr.bf16.mxu0 0
        %3350 = vmatpush1.bf16.msra.mxu0 0
        %3351 = vmatprep.subr.bf16.mxu0 0
        %3352 = vmatpush1.bf16.msra.mxu0 0
        %3353 = vmatprep.subr.bf16.mxu0 0
        %3354 = vmatpush1.bf16.msra.mxu0 0
        %3355 = vmatprep.subr.bf16.mxu0 0
        %3356 = vmatpush1.bf16.msra.mxu0 0
        %3357 = vmatprep.subr.bf16.mxu0 0
        %3358 = vmatpush1.bf16.msra.mxu0 0
        %3359 = vmatprep.subr.bf16.mxu0 0
        %3360 = vmatpush1.bf16.msra.mxu0 0
        %3361 = vmatprep.subr.bf16.mxu0 0
        %3362 = vmatpush1.bf16.msra.mxu0 0
        %3363 = vmatprep.subr.bf16.mxu0 0
        %3364 = vmatpush1.bf16.msra.mxu0 0
        %3365 = vmatprep.subr.bf16.mxu0 0
        %3366 = vmatpush1.bf16.msra.mxu0 0
        %3367 = vmatprep.mubr.bf16.mxu0 0
        %3368 = vmatmul.mubr.bf16.gmra.mrb[0].mxu0 %v2000
        %v3369 = vpop.f32.mrb[0].mxu0
        %v3370 = vadd.f32 0.0, %v3369
        %v3371 = vpop.f32.mrb[0].mxu0
        %v3372 = vpop.f32.mrb[0].mxu0
        %v3373 = vadd.f32 0.0, %v3372
        %v3374 = vpop.f32.mrb[0].mxu0
        %3375 = vmatprep.mubr.bf16.mxu0 0
        %3376 = vmatmul.mubr.bf16.gmra.mrb[0].mxu0 %v2003
        %v3377 = vpop.f32.mrb[0].mxu0
        %v3378 = vadd.f32 0.0, %v3377
        %v3379 = vpop.f32.mrb[0].mxu0
        %v3380 = vpop.f32.mrb[0].mxu0
        %v3381 = vadd.f32 0.0, %v3380
        %v3382 = vpop.f32.mrb[0].mxu0
        %3383 = vmatprep.mubr.bf16.mxu0 0
        %3384 = vmatmul.mubr.bf16.gmra.mrb[0].mxu0 %v2006
        %v3385 = vpop.f32.mrb[0].mxu0
        %v3386 = vadd.f32 0.0, %v3385
        %v3387 = vpop.f32.mrb[0].mxu0
        %v3388 = vpop.f32.mrb[0].mxu0
        %v3389 = vadd.f32 0.0, %v3388
        %v3390 = vpop.f32.mrb[0].mxu0
        %3391 = vmatprep.mubr.bf16.mxu0 0
        %3392 = vmatmul.mubr.bf16.gmra.mrb[0].mxu0 %v2009
        %v3393 = vpop.f32.mrb[0].mxu0
        %v3394 = vadd.f32 0.0, %v3393
        %v3395 = vpop.f32.mrb[0].mxu0
        %v3396 = vpop.f32.mrb[0].mxu0
        %v3397 = vadd.f32 0.0, %v3396
        %v3398 = vpop.f32.mrb[0].mxu0
        %3399 = vdwg.mxu0
        %v3400 = vadd.f32 %v3291, %v3370
        %v3401 = vadd.f32 %v3295, %v3373
        %v3402 = vadd.f32 %v3301, %v3378
        %v3403 = vadd.f32 %v3305, %v3381
        %v3404 = vadd.f32 %v3311, %v3386
        %v3405 = vadd.f32 %v3315, %v3389
        %v3406 = vadd.f32 %v3321, %v3394
        %v3407 = vadd.f32 %v3325, %v3397
        %v3409 = vsel %vm723, %v3330, 0
        %3411 = vmatprep.subr.bf16.mxu0 0
        %3412 = vmatpush1.bf16.msra.mxu0 %v3329
        %3413 = vmatprep.subr.bf16.mxu0 0
        %3414 = vmatpush1.bf16.msra.mxu0 %v3409
        %3415 = vmatprep.subr.bf16.mxu0 0
        %3416 = vmatpush1.bf16.msra.mxu0 0
        %3417 = vmatprep.subr.bf16.mxu0 0
        %3418 = vmatpush1.bf16.msra.mxu0 0
        %3419 = vmatprep.subr.bf16.mxu0 0
        %3420 = vmatpush1.bf16.msra.mxu0 0
        %3421 = vmatprep.subr.bf16.mxu0 0
        %3422 = vmatpush1.bf16.msra.mxu0 0
        %3423 = vmatprep.subr.bf16.mxu0 0
        %3424 = vmatpush1.bf16.msra.mxu0 0
        %3425 = vmatprep.subr.bf16.mxu0 0
        %3426 = vmatpush1.bf16.msra.mxu0 0
        %3427 = vmatprep.subr.bf16.mxu0 0
        %3428 = vmatpush1.bf16.msra.mxu0 0
        %3429 = vmatprep.subr.bf16.mxu0 0
        %3430 = vmatpush1.bf16.msra.mxu0 0
        %3431 = vmatprep.subr.bf16.mxu0 0
        %3432 = vmatpush1.bf16.msra.mxu0 0
        %3433 = vmatprep.subr.bf16.mxu0 0
        %3434 = vmatpush1.bf16.msra.mxu0 0
        %3435 = vmatprep.subr.bf16.mxu0 0
        %3436 = vmatpush1.bf16.msra.mxu0 0
        %3437 = vmatprep.subr.bf16.mxu0 0
        %3438 = vmatpush1.bf16.msra.mxu0 0
        %3439 = vmatprep.subr.bf16.mxu0 0
        %3440 = vmatpush1.bf16.msra.mxu0 0
        %3441 = vmatprep.subr.bf16.mxu0 0
        %3442 = vmatpush1.bf16.msra.mxu0 0
        %3443 = vmatprep.mubr.bf16.mxu0 0
        %3444 = vmatmul.mubr.bf16.gmra.mrb[0].mxu0 %v2106
        %v3445 = vpop.f32.mrb[0].mxu0
        %v3446 = vadd.f32 0.0, %v3445
        %v3447 = vpop.f32.mrb[0].mxu0
        %v3448 = vpop.f32.mrb[0].mxu0
        %v3449 = vadd.f32 0.0, %v3448
        %v3450 = vpop.f32.mrb[0].mxu0
        %3451 = vmatprep.mubr.bf16.mxu0 0
        %3452 = vmatmul.mubr.bf16.gmra.mrb[0].mxu0 %v2109
        %v3453 = vpop.f32.mrb[0].mxu0
        %v3454 = vadd.f32 0.0, %v3453
        %v3455 = vpop.f32.mrb[0].mxu0
        %v3456 = vpop.f32.mrb[0].mxu0
        %v3457 = vadd.f32 0.0, %v3456
        %v3458 = vpop.f32.mrb[0].mxu0
        %3459 = vmatprep.mubr.bf16.mxu0 0
        %3460 = vmatmul.mubr.bf16.gmra.mrb[0].mxu0 %v2112
        %v3461 = vpop.f32.mrb[0].mxu0
        %v3462 = vadd.f32 0.0, %v3461
        %v3463 = vpop.f32.mrb[0].mxu0
        %v3464 = vpop.f32.mrb[0].mxu0
        %v3465 = vadd.f32 0.0, %v3464
        %v3466 = vpop.f32.mrb[0].mxu0
        %3467 = vmatprep.mubr.bf16.mxu0 0
        %3468 = vmatmul.mubr.bf16.gmra.mrb[0].mxu0 %v2115
        %v3469 = vpop.f32.mrb[0].mxu0
        %v3470 = vadd.f32 0.0, %v3469
        %v3471 = vpop.f32.mrb[0].mxu0
        %v3472 = vpop.f32.mrb[0].mxu0
        %v3473 = vadd.f32 0.0, %v3472
        %v3474 = vpop.f32.mrb[0].mxu0
        %3475 = vdwg.mxu0
        %v3476 = vadd.f32 %v3400, %v3446
        %v3477 = vadd.f32 %v3401, %v3449
        %v3478 = vadd.f32 %v3402, %v3454
        %v3479 = vadd.f32 %v3403, %v3457
        %v3480 = vadd.f32 %v3404, %v3462
        %v3481 = vadd.f32 %v3405, %v3465
        %v3482 = vadd.f32 %v3406, %v3470
        %v3483 = vadd.f32 %v3407, %v3473
        %v3484 = vmax.f32 %v3476, 0.0
        %v3485 = vmax.f32 %v3477, 0.0
        %v3486 = vmax.f32 %v3478, 0.0
        %v3487 = vmax.f32 %v3479, 0.0
        %v3488 = vmax.f32 %v3480, 0.0
        %v3489 = vmax.f32 %v3481, 0.0
        %v3490 = vmax.f32 %v3482, 0.0
        %v3491 = vmax.f32 %v3483, 0.0
        %v3492 = vld [vmem:[%s14] sm:$0x1]
        %v3493 = vpack.c.bf16 %v3485, %v3484
        %v3494 = vpack.c.bf16 %v3487, %v3486
        %v3495 = vpack.c.bf16 %v3489, %v3488
        %v3496 = vpack.c.bf16 %v3491, %v3490
        %v3498 = vsel %vm613, %v3492, 0
        %3500 = vmatprep.subr.bf16.mxu0 0
        %3501 = vmatpush1.bf16.msra.mxu0 %v3493
        %3502 = vmatprep.subr.bf16.mxu0 0
        %3503 = vmatpush1.bf16.msra.mxu0 %v3494
        %3504 = vmatprep.subr.bf16.mxu0 0
        %3505 = vmatpush1.bf16.msra.mxu0 %v3495
        %3506 = vmatprep.subr.bf16.mxu0 0
        %3507 = vmatpush1.bf16.msra.mxu0 %v3496
        %3508 = vmatprep.subr.bf16.mxu0 0
        %3509 = vmatpush1.bf16.msra.mxu0 0
        %3510 = vmatprep.subr.bf16.mxu0 0
        %3511 = vmatpush1.bf16.msra.mxu0 0
        %3512 = vmatprep.subr.bf16.mxu0 0
        %3513 = vmatpush1.bf16.msra.mxu0 0
        %3514 = vmatprep.subr.bf16.mxu0 0
        %3515 = vmatpush1.bf16.msra.mxu0 0
        %3516 = vmatprep.subr.bf16.mxu0 0
        %3517 = vmatpush1.bf16.msra.mxu0 0
        %3518 = vmatprep.subr.bf16.mxu0 0
        %3519 = vmatpush1.bf16.msra.mxu0 0
        %3520 = vmatprep.subr.bf16.mxu0 0
        %3521 = vmatpush1.bf16.msra.mxu0 0
        %3522 = vmatprep.subr.bf16.mxu0 0
        %3523 = vmatpush1.bf16.msra.mxu0 0
        %3524 = vmatprep.subr.bf16.mxu0 0
        %3525 = vmatpush1.bf16.msra.mxu0 0
        %3526 = vmatprep.subr.bf16.mxu0 0
        %3527 = vmatpush1.bf16.msra.mxu0 0
        %3528 = vmatprep.subr.bf16.mxu0 0
        %3529 = vmatpush1.bf16.msra.mxu0 0
        %3530 = vmatprep.subr.bf16.mxu0 0
        %3531 = vmatpush1.bf16.msra.mxu0 0
        %3532 = vmatprep.mubr.bf16.mxu0 0
        %3533 = vmatmul.mubr.bf16.gmra.mrb[0].mxu0 %v3498
        %v3534 = vpop.f32.mrb[0].mxu0
        %v3535 = vadd.f32 0.0, %v3534
        %v3536 = vpop.f32.mrb[0].mxu0
        %v3537 = vpop.f32.mrb[0].mxu0
        %v3538 = vpop.f32.mrb[0].mxu0
        %3539 = vdwg.mxu0
        %v3540 = vpack.c.bf16 %v3535, %v3535
        %v3541 = vld [vmem:[%s3] sm:$0xf]
        %v3542 = vld [vmem:[%s3 + $0x4] sm:$0xf]
        %v3543 = vld [vmem:[%s3 + $0x8] sm:$0xf]
        %v3544 = vld [vmem:[%s3 + $0xc] sm:$0xf]
        %v3545 = vld [vmem:[%s3 + $0x10] sm:$0xf]
        %v3546 = vld [vmem:[%s3 + $0x14] sm:$0xf]
        %v3547 = vld [vmem:[%s3 + $0x18] sm:$0xf]
        %v3548 = vld [vmem:[%s3 + $0x1c] sm:$0xf]
        %v3549 = vld [vmem:[%s3 + $0x20] sm:$0xf]
        %v3550 = vld [vmem:[%s3 + $0x24] sm:$0xf]
        %v3551 = vld [vmem:[%s3 + $0x28] sm:$0xf]
        %v3552 = vld [vmem:[%s3 + $0x2c] sm:$0xf]
        %v3553 = vld [vmem:[%s3 + $0x30] sm:$0xf]
        %v3554 = vld [vmem:[%s3 + $0x34] sm:$0xf]
        %v3555 = vld [vmem:[%s3 + $0x38] sm:$0xf]
        %v3556 = vld [vmem:[%s3 + $0x3c] sm:$0xf]
        %v3557 = vld [vmem:[%s4] sm:$0x1]
        %v3574 = vunpack.c.l.b16 %v3541
        %v3575 = vunpack.c.l.b16 %v3542
        %v3576 = vunpack.c.l.b16 %v3543
        %v3577 = vunpack.c.l.b16 %v3544
        %v3578 = vunpack.c.l.b16 %v3545
        %v3579 = vunpack.c.l.b16 %v3546
        %v3580 = vunpack.c.l.b16 %v3547
        %v3581 = vunpack.c.l.b16 %v3548
        %v3582 = vunpack.c.l.b16 %v3549
        %v3583 = vunpack.c.l.b16 %v3550
        %v3584 = vunpack.c.l.b16 %v3551
        %v3585 = vunpack.c.l.b16 %v3552
        %v3586 = vunpack.c.l.b16 %v3553
        %v3587 = vunpack.c.l.b16 %v3554
        %v3588 = vunpack.c.l.b16 %v3555
        %v3589 = vunpack.c.l.b16 %v3556
        %v3590 = vpack.c.b16 %v3575, %v3574
        %v3591 = vpack.c.b16 %v3577, %v3576
        %v3592 = vpack.c.b16 %v3579, %v3578
        %v3593 = vpack.c.b16 %v3581, %v3580
        %v3594 = vpack.c.b16 %v3583, %v3582
        %v3595 = vpack.c.b16 %v3585, %v3584
        %v3596 = vpack.c.b16 %v3587, %v3586
        %v3597 = vpack.c.b16 %v3589, %v3588
        %3606 = vmatprep.subr.bf16.mxu0 0
        %3607 = vmatpush1.bf16.msra.mxu0 %v3590
        %3608 = vmatprep.subr.bf16.mxu0 0
        %3609 = vmatpush1.bf16.msra.mxu0 %v3591
        %3610 = vmatprep.subr.bf16.mxu0 0
        %3611 = vmatpush1.bf16.msra.mxu0 %v3592
        %3612 = vmatprep.subr.bf16.mxu0 0
        %3613 = vmatpush1.bf16.msra.mxu0 %v3593
        %3614 = vmatprep.subr.bf16.mxu0 0
        %3615 = vmatpush1.bf16.msra.mxu0 %v3594
        %3616 = vmatprep.subr.bf16.mxu0 0
        %3617 = vmatpush1.bf16.msra.mxu0 %v3595
        %3618 = vmatprep.subr.bf16.mxu0 0
        %3619 = vmatpush1.bf16.msra.mxu0 %v3596
        %3620 = vmatprep.subr.bf16.mxu0 0
        %3621 = vmatpush1.bf16.msra.mxu0 %v3597
        %3622 = vmatprep.subr.bf16.mxu0 0
        %3623 = vmatpush1.bf16.msra.mxu0 0
        %3624 = vmatprep.subr.bf16.mxu0 0
        %3625 = vmatpush1.bf16.msra.mxu0 0
        %3626 = vmatprep.subr.bf16.mxu0 0
        %3627 = vmatpush1.bf16.msra.mxu0 0
        %3628 = vmatprep.subr.bf16.mxu0 0
        %3629 = vmatpush1.bf16.msra.mxu0 0
        %3630 = vmatprep.subr.bf16.mxu0 0
        %3631 = vmatpush1.bf16.msra.mxu0 0
        %3632 = vmatprep.subr.bf16.mxu0 0
        %3633 = vmatpush1.bf16.msra.mxu0 0
        %3634 = vmatprep.subr.bf16.mxu0 0
        %3635 = vmatpush1.bf16.msra.mxu0 0
        %3636 = vmatprep.subr.bf16.mxu0 0
        %3637 = vmatpush1.bf16.msra.mxu0 0
        %3638 = vmatprep.mubr.bf16.mxu0 0
        %3639 = vmatmul.mubr.bf16.gmra.mrb[0].mxu0 %v3540
        %v3640 = vpop.f32.mrb[0].mxu0
        %v3641 = vadd.f32 %v3557, %v3640
        %v3642 = vpop.f32.mrb[0].mxu0
        %v3643 = vpop.f32.mrb[0].mxu0
        %v3644 = vpop.f32.mrb[0].mxu0
        %3645 = vdwg.mxu0
        %vm3646 = vcmask 253952
        %3647 = vst.msk [vmem:[%s528] sm:$0x1] %vm3646, %v3641
        %s3648 = sand.u32 %s359, 1
        %s3649 = scalar_lea.sflag [#allocation4], %s3648
        %s3650 = sand.u32 %s359, 1
        %s3651 = scalar_lea.vmem [#allocation8], %s3650
        // Predicated region
        $region93: #{tpu_custom_call.1} parent=79 // pred_check
          %p3652 = pneg %p369
        $region94: #{tpu_custom_call.1} parent=79 // pred_check_branch
          %3654 = sbr.rel (%p3652) target = $region96
        $region95: #{tpu_custom_call.1} parent=79 // pred_region
          %s3656 = ssub.s32 16, 16
          %3657 = vsyncadd %s3649, %s3656
          %s3658 = smul.addr %s31, 16
          %s3659 = scalar_lea.hbm %s15, %s3658
          %s3661 = sshll.u32 %s3651, 4
          %s3662 = int_to_ptr.vmem [resolvable:$true] %s3661
          %3664 = dma.vmem_to_hbm [thread:$0]  %s3662, 16, %s3659, %s3649
        $region96: #{tpu_custom_call.1} parent=79 // pred_fallthru
          _
      $region80: #{tpu_custom_call.1} parent=5 // pred_fallthru
        _
      %p3665 = scmp.le.s32.totalorder 2, %s26
      // Predicated region
      $region97: #{tpu_custom_call.1} parent=5 // pred_check
        %p3666 = pneg %p3665
      $region98: #{tpu_custom_call.1} parent=5 // pred_check_branch
        %3668 = sbr.rel (%p3666) target = $region100
      $region99: #{tpu_custom_call.1} parent=5 // pred_region
        %s3669 = ssub.s32 %s26, 2
        // Predicated region
        $region101: #{tpu_custom_call.1} parent=99 // pred_check
          %p3670 = pneg %p375
        $region102: #{tpu_custom_call.1} parent=99 // pred_check_branch
          %3672 = sbr.rel (%p3670) target = $region104
        $region103: #{tpu_custom_call.1} parent=99 // pred_region
          %s3673 = sand.u32 %s360, 1
          %s3674 = scalar_lea.sflag [#allocation4], %s3673
          %s3675 = sand.u32 %s360, 1
          %s3676 = scalar_lea.vmem [#allocation8], %s3675
          %3677 = dma.done %s3674, 16
        $region104: #{tpu_custom_call.1} parent=99 // pred_fallthru
          _
      $region100: #{tpu_custom_call.1} parent=5 // pred_fallthru
        _
    $region6: #{tpu_custom_call.1} parent=1 // loop_footer
      %s30 = sadd.s32 1, %s26
    $region7: #{tpu_custom_call.1} parent=1 // loop_footer_branch
      %25 = sbr.rel target = $region3
    $region8: #{tpu_custom_call.1} parent=1 // loop_exit
      _
    %3678 = vsyncpa [#allocation3], 1
    %s3679 = scalar_lea.sflag [#allocation3], 1
    %3680 = vsyncpa %s3679, 1
    %3681 = vsyncpa [#allocation6], 1
    %3682 = vsyncpa [#allocation4], 1
    %s3683 = scalar_lea.sflag [#allocation4], 1
    %3684 = vsyncpa %s3683, 1

</llo_original>
